<compile_context>
chip_gen: v7x
topology: tpu7x:2x2x1
jax: 0.10.0
libtpu: 0.0.40
codegen_flags: <defaults>
</compile_context>

<pallas_src>
import functools

import jax
import jax.numpy as jnp
from jax import lax
from jax.experimental import pallas as pl
from jax.experimental.pallas import tpu as pltpu


def _round_up(x, m):
    return (x + m - 1) // m * m


def _resblock_kernel(x_hbm, w1_ref, b1_ref, w2_ref, b2_ref, ws_ref, bs_ref,
                     colmask_ref, out_ref, xbuf, h1buf, sem,
                     *, W, TH, Cout_p, num_h, has_shortcut):
    """One (image, row-tile) step of the fused residual block.

    x_hbm    : (N, (H+6)*(W+4), Cin_p)  bf16, zero-padded + flattened input, HBM
    w1_ref   : (9, Cin_p, Cout_p)       bf16 conv1 weights, k = (oy+1)*3 + (ox+1)
    b1_ref   : (1, Cout_p)              f32
    w2_ref   : (9, Cout_p, Cout_p)      bf16 conv2 weights
    b2_ref   : (1, Cout_p)              f32
    ws_ref   : (Cin_p, Cout_p)          bf16 1x1 shortcut weights (unused if identity)
    bs_ref   : (1, Cout_p)              f32
    colmask  : ((TH+2)*(W+4), 1)        f32 {0,1}; keeps only real image columns
    out_ref  : (TH, W, Cout_p)          f32 output row tile
    xbuf     : (2, (TH+6)*(W+4), Cin_p) bf16 double-buffered halo window
    h1buf    : ((TH+2)*(W+4)+16, Cout_p) bf16 conv1 activation (+ sentinels)
    sem      : DMA semaphores, shape (2,)
    """
    WW = W + 4                 # padded width  (2 halo cols each side)
    RH = TH + 6                # window rows   (3 halo rows each side)
    M1 = (TH + 2) * WW         # flattened conv1-output rows
    M2 = TH * WW               # flattened conv2-output rows
    OFF = 8                    # sublane-aligned offset of h1 inside h1buf

    n = pl.program_id(0)
    h = pl.program_id(1)
    r0 = h * TH                # first output image row of this tile
    slot = h % 2

    def window_copy(row_start, dst_slot):
        return pltpu.make_async_copy(
            x_hbm.at[n, pl.ds(row_start * WW, RH * WW), :],
            xbuf.at[dst_slot], sem.at[dst_slot])

    # prime the pipeline at the first row tile of each image
    @pl.when(h == 0)
    def _():
        window_copy(r0, slot).start()

    window_copy(r0, slot).wait()

    # prefetch the next row tile while we compute on this one
    @pl.when(h + 1 < num_h)
    def _():
        window_copy(r0 + TH, 1 - slot).start()

    xw = xbuf[slot]            # (RH*WW, Cin_p) bf16, current halo window

    # ---------------- conv1 (3x3, pad 1) + bias + ReLU ----------------------
    # tap (oy, ox) of the flattened window is a contiguous row slice.
    acc1 = jnp.zeros((M1, Cout_p), jnp.float32)
    for k in range(9):
        oy, ox = k // 3 - 1, k % 3 - 1
        s = (2 + oy) * WW + ox
        acc1 = acc1 + jnp.dot(xw[s:s + M1, :], w1_ref[k],
                              preferred_element_type=jnp.float32)
    h1 = jnp.maximum(acc1 + b1_ref[...], 0.0)
    # zero the halo columns -> they act as conv2's zero padding
    h1 = h1 * colmask_ref[...]

    # stash h1 (bf16) at a sublane-aligned offset; the two sentinel rows absorb
    # the +-1 flattened overrun of the corner taps (only feeds masked columns).
    h1buf[OFF - 1:OFF, :] = jnp.zeros((1, Cout_p), jnp.bfloat16)
    h1buf[OFF + M1:OFF + M1 + 1, :] = jnp.zeros((1, Cout_p), jnp.bfloat16)
    h1buf[OFF:OFF + M1, :] = h1.astype(jnp.bfloat16)

    # zero the halo *rows* of h1 at the image top/bottom (conv2 zero padding)
    @pl.when(h == 0)
    def _():
        h1buf[OFF:OFF + WW, :] = jnp.zeros((WW, Cout_p), jnp.bfloat16)

    @pl.when(h == num_h - 1)
    def _():
        h1buf[OFF + (TH + 1) * WW:OFF + M1, :] = jnp.zeros((WW, Cout_p),
                                                           jnp.bfloat16)

    # ---------------- conv2 (3x3, pad 1) + bias ------------------------------
    acc2 = jnp.zeros((M2, Cout_p), jnp.float32)
    for k in range(9):
        oy, ox = k // 3 - 1, k % 3 - 1
        s = OFF + (1 + oy) * WW + ox
        acc2 = acc2 + jnp.dot(h1buf[s:s + M2, :], w2_ref[k],
                              preferred_element_type=jnp.float32)
    acc2 = acc2 + b2_ref[...]

    # ---------------- shortcut ------------------------------------------------
    xc = xw[3 * WW:3 * WW + M2, :]        # center rows/cols of the window
    if has_shortcut:
        sc = jnp.dot(xc, ws_ref[...],
                     preferred_element_type=jnp.float32) + bs_ref[...]
    else:
        sc = xc.astype(jnp.float32)       # identity (Cin == Cout)

    # ---------------- residual add + final ReLU -------------------------------
    res = jnp.maximum(acc2 + sc, 0.0)                       # (M2, Cout_p) f32
    out_ref[...] = res.reshape(TH, WW, Cout_p)[:, 2:W + 2, :]


def residual_block_pallas(x_nhwc, params, *, tile_h=8):
    """x_nhwc: (N, H, W, Cin) float32. Returns (N, H, W, Cout) float32."""
    N, H, W, Cin = x_nhwc.shape
    w1, b1, w2, b2, ws, bs = params
    Cout = w1.shape[-1]
    has_shortcut = ws is not None
    if not has_shortcut:
        assert Cin == Cout, "identity shortcut requires Cin == Cout"

    LANE = 128
    Cin_p = _round_up(Cin, LANE)
    Cout_p = _round_up(Cout, LANE)
    # TODO(synk): derive TILE_H from the per-generation VMEM budget (v7x: 64 MiB
    #             per TC, ~half of v5e/v6e); 8 rows is plenty for these shapes.
    TH = tile_h if (H % tile_h == 0) else H
    num_h = H // TH
    WW = W + 4
    RH = TH + 6
    M1 = (TH + 2) * WW

    f32, bf16 = jnp.float32, jnp.bfloat16

    # Lane-dense channel padding + spatial halo padding done in one HBM-side copy,
    # cast to bf16 for the MXU, and (row, col) flattened so every halo window is a
    # single contiguous DMA.
    xp = jnp.pad(x_nhwc.astype(bf16),
                 ((0, 0), (3, 3), (2, 2), (0, Cin_p - Cin)))
    x_flat = xp.reshape(N, (H + 6) * WW, Cin_p)

    w1p = jnp.pad(w1, ((0, 0), (0, 0), (0, Cin_p - Cin), (0, Cout_p - Cout))
                  ).reshape(9, Cin_p, Cout_p).astype(bf16)
    w2p = jnp.pad(w2, ((0, 0), (0, 0), (0, Cout_p - Cout), (0, Cout_p - Cout))
                  ).reshape(9, Cout_p, Cout_p).astype(bf16)
    b1p = jnp.pad(b1, (0, Cout_p - Cout)).reshape(1, Cout_p).astype(f32)
    b2p = jnp.pad(b2, (0, Cout_p - Cout)).reshape(1, Cout_p).astype(f32)
    if has_shortcut:
        wsp = jnp.pad(ws, ((0, Cin_p - Cin), (0, Cout_p - Cout))).astype(bf16)
        bsp = jnp.pad(bs, (0, Cout_p - Cout)).reshape(1, Cout_p).astype(f32)
    else:  # dummies; identity branch is compiled out statically
        wsp = jnp.zeros((Cin_p, Cout_p), bf16)
        bsp = jnp.zeros((1, Cout_p), f32)

    # static column-validity mask for the flattened conv1 output
    q = jnp.arange(M1) % WW
    colmask = ((q >= 2) & (q < W + 2)).astype(f32).reshape(M1, 1)

    kernel = functools.partial(
        _resblock_kernel, W=W, TH=TH, Cout_p=Cout_p,
        num_h=num_h, has_shortcut=has_shortcut)

    flops = 2 * N * H * W * 9 * (Cin_p + Cout_p) * Cout_p
    if has_shortcut:
        flops += 2 * N * H * W * Cin_p * Cout_p
    bytes_accessed = (x_flat.size * 2 + N * H * W * Cout_p * 4
                      + (w1p.size + w2p.size + wsp.size) * 2)

    weight_bytes = ((w1p.size + w2p.size + wsp.size) * 2
                    + (b1p.size + b2p.size + bsp.size) * 4)
    vmem_bytes = (2 * RH * WW * Cin_p * 2        # double-buffered halo window
                  + (M1 + 16) * Cout_p * 2       # h1 scratch
                  + 2 * TH * W * Cout_p * 4      # double-buffered output block
                  + weight_bytes
                  + 4 * M1 * Cout_p * 4)         # f32 accumulators / temporaries
    vmem_limit = int(min(max(2 * vmem_bytes, 8 * 1024 * 1024),
                         64 * 1024 * 1024))

    out_padded = pl.pallas_call(
        kernel,
        out_shape=jax.ShapeDtypeStruct((N, H, W, Cout_p), f32),
        grid=(N, num_h),
        in_specs=[
            pl.BlockSpec(memory_space=pl.ANY),                           # x (HBM)
            pl.BlockSpec((9, Cin_p, Cout_p), lambda n, h: (0, 0, 0)),    # w1
            pl.BlockSpec((1, Cout_p), lambda n, h: (0, 0)),              # b1
            pl.BlockSpec((9, Cout_p, Cout_p), lambda n, h: (0, 0, 0)),   # w2
            pl.BlockSpec((1, Cout_p), lambda n, h: (0, 0)),              # b2
            pl.BlockSpec((Cin_p, Cout_p), lambda n, h: (0, 0)),          # ws
            pl.BlockSpec((1, Cout_p), lambda n, h: (0, 0)),              # bs
            pl.BlockSpec((M1, 1), lambda n, h: (0, 0)),                  # colmask
        ],
        out_specs=pl.BlockSpec((None, TH, W, Cout_p), lambda n, h: (n, h, 0, 0)),
        scratch_shapes=[
            pltpu.VMEM((2, RH * WW, Cin_p), bf16),     # double-buffered window
            pltpu.VMEM((M1 + 16, Cout_p), bf16),       # h1 (+ sentinel rows)
            pltpu.SemaphoreType.DMA((2,)),
        ],
        compiler_params=pltpu.CompilerParams(
            dimension_semantics=("parallel", "arbitrary"),
            vmem_limit_bytes=vmem_limit),
        cost_estimate=pl.CostEstimate(flops=flops, transcendentals=0,
                                      bytes_accessed=bytes_accessed),
    )(x_flat, w1p, b1p, w2p, b2p, wsp, bsp, colmask)

    return out_padded[..., :Cout]


def make_params(key, in_channels, out_channels):
    """Deterministic synthetic params; conv weights stored as (kh, kw, Cin, Cout)."""
    ks = jax.random.split(key, 6)
    scale1 = 1.0 / jnp.sqrt(in_channels * 9.0)
    scale2 = 1.0 / jnp.sqrt(out_channels * 9.0)
    w1 = scale1 * jax.random.normal(ks[0], (3, 3, in_channels, out_channels), jnp.float32)
    b1 = scale1 * jax.random.normal(ks[1], (out_channels,), jnp.float32)
    w2 = scale2 * jax.random.normal(ks[2], (3, 3, out_channels, out_channels), jnp.float32)
    b2 = scale2 * jax.random.normal(ks[3], (out_channels,), jnp.float32)
    if in_channels != out_channels:
        scale_s = 1.0 / jnp.sqrt(float(in_channels))
        ws = scale_s * jax.random.normal(ks[4], (in_channels, out_channels), jnp.float32)
        bs = scale_s * jax.random.normal(ks[5], (out_channels,), jnp.float32)
    else:
        ws, bs = None, None
    return (w1, b1, w2, b2, ws, bs)


def residual_block_ref(x_nhwc, params):
    """Pure-JAX NHWC reference matching the kernel's bf16-matmul / f32-accumulate numerics."""
    w1, b1, w2, b2, ws, bs = params
    f32, bf16 = jnp.float32, jnp.bfloat16
    xq = x_nhwc.astype(bf16).astype(f32)
    w1q = w1.astype(bf16).astype(f32)
    w2q = w2.astype(bf16).astype(f32)
    dn = ("NHWC", "HWIO", "NHWC")
    h = lax.conv_general_dilated(xq, w1q, (1, 1), "SAME", dimension_numbers=dn) + b1
    h = jnp.maximum(h, 0.0).astype(bf16).astype(f32)
    out = lax.conv_general_dilated(h, w2q, (1, 1), "SAME", dimension_numbers=dn) + b2
    if ws is not None:
        wsq = ws.astype(bf16).astype(f32)
        out = out + jnp.einsum("nhwc,cd->nhwd", xq, wsq) + bs
    else:
        out = out + xq
    return jnp.maximum(out, 0.0)


if __name__ == "__main__":
    key = jax.random.PRNGKey(0)
    kx, kp, kx2, kp2 = jax.random.split(key, 4)

    N, Cin, Hh, Ww, Cout = 2, 4, 16, 16, 8

    # PyTorch-convention NCHW input, transposed to NHWC for the kernel (glue only).
    x_nchw = jax.random.normal(kx, (N, Cin, Hh, Ww), jnp.float32)
    x_nhwc = jnp.transpose(x_nchw, (0, 2, 3, 1))

    # case 1: Cin != Cout -> 1x1-conv shortcut
    params = make_params(kp, Cin, Cout)
    out = jax.block_until_ready(residual_block_pallas(x_nhwc, params))
    ref = residual_block_ref(x_nhwc, params)
    assert out.shape == (N, Hh, Ww, Cout)
    err = float(jnp.max(jnp.abs(out - ref)))
    assert err < 5e-3, f"shortcut path mismatch: max abs err {err}"

    # case 2: Cin == Cout -> identity shortcut
    x2_nhwc = jnp.transpose(
        jax.random.normal(kx2, (N, Cout, Hh, Ww), jnp.float32), (0, 2, 3, 1))
    params2 = make_params(kp2, Cout, Cout)
    out2 = jax.block_until_ready(residual_block_pallas(x2_nhwc, params2))
    ref2 = residual_block_ref(x2_nhwc, params2)
    err2 = float(jnp.max(jnp.abs(out2 - ref2)))
    assert err2 < 5e-3, f"identity path mismatch: max abs err {err2}"

    print("KERNEL_OK")
</pallas_src>

<mosaic_0001>
module attributes {stable_mosaic.version = 11 : i64} {
  func.func @_resblock_kernel(%arg0: i32, %arg1: i32, %arg2: memref<2x440x128xbf16, #tpu.memory_space<any>>, %arg3: memref<9x128x128xbf16, #tpu.memory_space<vmem>>, %arg4: memref<1x128xf32, #tpu.memory_space<vmem>>, %arg5: memref<9x128x128xbf16, #tpu.memory_space<vmem>>, %arg6: memref<1x128xf32, #tpu.memory_space<vmem>>, %arg7: memref<128x128xbf16, #tpu.memory_space<vmem>>, %arg8: memref<1x128xf32, #tpu.memory_space<vmem>>, %arg9: memref<200x1xf32, #tpu.memory_space<vmem>>, %arg10: memref<1x8x16x128xf32, #tpu.memory_space<vmem>>, %arg11: memref<2x280x128xbf16, #tpu.memory_space<vmem>>, %arg12: memref<216x128xbf16, #tpu.memory_space<vmem>>, %arg13: memref<2x!tpu.dma_semaphore, #tpu.memory_space<semaphore_mem>>) attributes {dimension_semantics = [#tpu.dimension_semantics<parallel>, #tpu.dimension_semantics<arbitrary>], iteration_bounds = array<i64: 2, 2>, scalar_prefetch = 0 : i64, scratch_operands = 3 : i64, tpu.core_type = #tpu.core_type<tc>, window_params = [{}, {pipeline_mode = #tpu.pipeline_mode<synchronous>, transform_indices = @transform_1, window_bounds = array<i64: 9, 128, 128>}, {pipeline_mode = #tpu.pipeline_mode<synchronous>, transform_indices = @transform_2, window_bounds = array<i64: 1, 128>}, {pipeline_mode = #tpu.pipeline_mode<synchronous>, transform_indices = @transform_3, window_bounds = array<i64: 9, 128, 128>}, {pipeline_mode = #tpu.pipeline_mode<synchronous>, transform_indices = @transform_4, window_bounds = array<i64: 1, 128>}, {pipeline_mode = #tpu.pipeline_mode<synchronous>, transform_indices = @transform_5, window_bounds = array<i64: 128, 128>}, {pipeline_mode = #tpu.pipeline_mode<synchronous>, transform_indices = @transform_6, window_bounds = array<i64: 1, 128>}, {pipeline_mode = #tpu.pipeline_mode<synchronous>, transform_indices = @transform_7, window_bounds = array<i64: 200, 1>}, {transform_indices = @transform_8, window_bounds = array<i64: 1, 8, 16, 128>}]} {
    %c8_i32 = arith.constant 8 : i32
    %0 = arith.muli %arg1, %c8_i32 : i32
    %c2_i32 = arith.constant 2 : i32
    %c0_i32 = arith.constant 0 : i32
    %1 = arith.cmpi eq, %c2_i32, %c0_i32 : i32
    %c1_i32 = arith.constant 1 : i32
    %2 = arith.select %1, %c1_i32, %c2_i32 : i32
    %3 = arith.remsi %arg1, %2 : i32
    %c0_i32_0 = arith.constant 0 : i32
    %4 = arith.cmpi ne, %3, %c0_i32_0 : i32
    %c0_i32_1 = arith.constant 0 : i32
    %5 = arith.cmpi slt, %3, %c0_i32_1 : i32
    %c0_i32_2 = arith.constant 0 : i32
    %6 = arith.cmpi slt, %2, %c0_i32_2 : i32
    %7 = arith.xori %5, %6 : i1
    %8 = arith.andi %7, %4 : i1
    %9 = arith.addi %3, %2 : i32
    %10 = arith.select %8, %9, %3 : i32
    %c0_i32_3 = arith.constant 0 : i32
    %11 = arith.cmpi eq, %arg1, %c0_i32_3 : i32
    %12 = arith.extui %11 : i1 to i32
    %c0_i32_4 = arith.constant 0 : i32
    %13 = arith.cmpi ne, %12, %c0_i32_4 : i32
    scf.if %13 {
      %c20_i32_116 = arith.constant 20 : i32
      %157 = arith.muli %0, %c20_i32_116 : i32
      %c0_i32_117 = arith.constant 0 : i32
      %158 = tpu.memref_slice %arg2[%arg0, %157, %c0_i32_117] : memref<2x440x128xbf16, #tpu.memory_space<any>> -> memref<1x280x128xbf16, #tpu.memory_space<any>>
      %159 = tpu.memref_squeeze %158 : memref<1x280x128xbf16, #tpu.memory_space<any>> -> memref<280x128xbf16, #tpu.memory_space<any>>
      %c0_i32_118 = arith.constant 0 : i32
      %c0_i32_119 = arith.constant 0 : i32
      %160 = tpu.memref_slice %arg11[%10, %c0_i32_118, %c0_i32_119] : memref<2x280x128xbf16, #tpu.memory_space<vmem>> -> memref<1x280x128xbf16, #tpu.memory_space<vmem>>
      %161 = tpu.memref_squeeze %160 : memref<1x280x128xbf16, #tpu.memory_space<vmem>> -> memref<280x128xbf16, #tpu.memory_space<vmem>>
      %162 = tpu.memref_slice %arg13[%10] : memref<2x!tpu.dma_semaphore, #tpu.memory_space<semaphore_mem>> -> memref<1x!tpu.dma_semaphore, #tpu.memory_space<semaphore_mem>>
      %163 = tpu.memref_squeeze %162 : memref<1x!tpu.dma_semaphore, #tpu.memory_space<semaphore_mem>> -> memref<!tpu.dma_semaphore, #tpu.memory_space<semaphore_mem>>
      tpu.enqueue_dma source(%159 : memref<280x128xbf16, #tpu.memory_space<any>>) target(%161 : memref<280x128xbf16, #tpu.memory_space<vmem>>) target_semaphore(%163 : memref<!tpu.dma_semaphore, #tpu.memory_space<semaphore_mem>>)
    } else {
    }
    %c20_i32 = arith.constant 20 : i32
    %14 = arith.muli %0, %c20_i32 : i32
    %c0_i32_5 = arith.constant 0 : i32
    %15 = tpu.memref_slice %arg2[%arg0, %14, %c0_i32_5] : memref<2x440x128xbf16, #tpu.memory_space<any>> -> memref<1x280x128xbf16, #tpu.memory_space<any>>
    %16 = tpu.memref_squeeze %15 : memref<1x280x128xbf16, #tpu.memory_space<any>> -> memref<280x128xbf16, #tpu.memory_space<any>>
    %c0_i32_6 = arith.constant 0 : i32
    %c0_i32_7 = arith.constant 0 : i32
    %17 = tpu.memref_slice %arg11[%10, %c0_i32_6, %c0_i32_7] : memref<2x280x128xbf16, #tpu.memory_space<vmem>> -> memref<1x280x128xbf16, #tpu.memory_space<vmem>>
    %18 = tpu.memref_squeeze %17 : memref<1x280x128xbf16, #tpu.memory_space<vmem>> -> memref<280x128xbf16, #tpu.memory_space<vmem>>
    %19 = tpu.memref_slice %arg13[%10] : memref<2x!tpu.dma_semaphore, #tpu.memory_space<semaphore_mem>> -> memref<1x!tpu.dma_semaphore, #tpu.memory_space<semaphore_mem>>
    %20 = tpu.memref_squeeze %19 : memref<1x!tpu.dma_semaphore, #tpu.memory_space<semaphore_mem>> -> memref<!tpu.dma_semaphore, #tpu.memory_space<semaphore_mem>>
    tpu.wait_dma2 semaphore(%20 : memref<!tpu.dma_semaphore, #tpu.memory_space<semaphore_mem>>) src(%16 : memref<280x128xbf16, #tpu.memory_space<any>>) dst(%18 : memref<280x128xbf16, #tpu.memory_space<vmem>>)
    %c1_i32_8 = arith.constant 1 : i32
    %21 = arith.addi %arg1, %c1_i32_8 : i32
    %c2_i32_9 = arith.constant 2 : i32
    %22 = arith.cmpi slt, %21, %c2_i32_9 : i32
    %23 = arith.extui %22 : i1 to i32
    %c0_i32_10 = arith.constant 0 : i32
    %24 = arith.cmpi ne, %23, %c0_i32_10 : i32
    scf.if %24 {
      %c8_i32_116 = arith.constant 8 : i32
      %157 = arith.addi %0, %c8_i32_116 : i32
      %c1_i32_117 = arith.constant 1 : i32
      %158 = arith.subi %c1_i32_117, %10 : i32
      %c20_i32_118 = arith.constant 20 : i32
      %159 = arith.muli %157, %c20_i32_118 : i32
      %c0_i32_119 = arith.constant 0 : i32
      %160 = tpu.memref_slice %arg2[%arg0, %159, %c0_i32_119] : memref<2x440x128xbf16, #tpu.memory_space<any>> -> memref<1x280x128xbf16, #tpu.memory_space<any>>
      %161 = tpu.memref_squeeze %160 : memref<1x280x128xbf16, #tpu.memory_space<any>> -> memref<280x128xbf16, #tpu.memory_space<any>>
      %c0_i32_120 = arith.constant 0 : i32
      %c0_i32_121 = arith.constant 0 : i32
      %162 = tpu.memref_slice %arg11[%158, %c0_i32_120, %c0_i32_121] : memref<2x280x128xbf16, #tpu.memory_space<vmem>> -> memref<1x280x128xbf16, #tpu.memory_space<vmem>>
      %163 = tpu.memref_squeeze %162 : memref<1x280x128xbf16, #tpu.memory_space<vmem>> -> memref<280x128xbf16, #tpu.memory_space<vmem>>
      %164 = tpu.memref_slice %arg13[%158] : memref<2x!tpu.dma_semaphore, #tpu.memory_space<semaphore_mem>> -> memref<1x!tpu.dma_semaphore, #tpu.memory_space<semaphore_mem>>
      %165 = tpu.memref_squeeze %164 : memref<1x!tpu.dma_semaphore, #tpu.memory_space<semaphore_mem>> -> memref<!tpu.dma_semaphore, #tpu.memory_space<semaphore_mem>>
      tpu.enqueue_dma source(%161 : memref<280x128xbf16, #tpu.memory_space<any>>) target(%163 : memref<280x128xbf16, #tpu.memory_space<vmem>>) target_semaphore(%165 : memref<!tpu.dma_semaphore, #tpu.memory_space<semaphore_mem>>)
    } else {
    }
    %25 = arith.index_cast %10 : i32 to index
    %c0 = arith.constant 0 : index
    %c0_11 = arith.constant 0 : index
    %26 = vector.load %arg11[%25, %c0, %c0_11] : memref<2x280x128xbf16, #tpu.memory_space<vmem>>, vector<1x280x128xbf16>
    %27 = vector.shape_cast %26 : vector<1x280x128xbf16> to vector<280x128xbf16>
    %cst = arith.constant 0.000000e+00 : f32
    %28 = vector.broadcast %cst : f32 to vector<200x128xf32>
    %29 = vector.extract_strided_slice %27 {offsets = [19, 0], sizes = [200, 128], strides = [1, 1]} : vector<280x128xbf16> to vector<200x128xbf16>
    %c0_12 = arith.constant 0 : index
    %c0_13 = arith.constant 0 : index
    %c0_14 = arith.constant 0 : index
    %30 = vector.load %arg3[%c0_12, %c0_13, %c0_14] : memref<9x128x128xbf16, #tpu.memory_space<vmem>>, vector<1x128x128xbf16>
    %31 = vector.shape_cast %30 : vector<1x128x128xbf16> to vector<128x128xbf16>
    %cst_15 = arith.constant dense<0.000000e+00> : vector<200x128xf32>
    %32 = tpu.matmul %29, %31, %cst_15 {dimension_numbers = #tpu.dot_dimension_numbers<[1], [0], [0], [1], [0, 0, 1, 1], [], []>} : vector<200x128xbf16>, vector<128x128xbf16>, vector<200x128xf32> -> vector<200x128xf32>
    %33 = arith.addf %28, %32 : vector<200x128xf32>
    %34 = vector.extract_strided_slice %27 {offsets = [20, 0], sizes = [200, 128], strides = [1, 1]} : vector<280x128xbf16> to vector<200x128xbf16>
    %c1 = arith.constant 1 : index
    %c0_16 = arith.constant 0 : index
    %c0_17 = arith.constant 0 : index
    %35 = vector.load %arg3[%c1, %c0_16, %c0_17] : memref<9x128x128xbf16, #tpu.memory_space<vmem>>, vector<1x128x128xbf16>
    %36 = vector.shape_cast %35 : vector<1x128x128xbf16> to vector<128x128xbf16>
    %cst_18 = arith.constant dense<0.000000e+00> : vector<200x128xf32>
    %37 = tpu.matmul %34, %36, %cst_18 {dimension_numbers = #tpu.dot_dimension_numbers<[1], [0], [0], [1], [0, 0, 1, 1], [], []>} : vector<200x128xbf16>, vector<128x128xbf16>, vector<200x128xf32> -> vector<200x128xf32>
    %38 = arith.addf %33, %37 : vector<200x128xf32>
    %39 = vector.extract_strided_slice %27 {offsets = [21, 0], sizes = [200, 128], strides = [1, 1]} : vector<280x128xbf16> to vector<200x128xbf16>
    %c2 = arith.constant 2 : index
    %c0_19 = arith.constant 0 : index
    %c0_20 = arith.constant 0 : index
    %40 = vector.load %arg3[%c2, %c0_19, %c0_20] : memref<9x128x128xbf16, #tpu.memory_space<vmem>>, vector<1x128x128xbf16>
    %41 = vector.shape_cast %40 : vector<1x128x128xbf16> to vector<128x128xbf16>
    %cst_21 = arith.constant dense<0.000000e+00> : vector<200x128xf32>
    %42 = tpu.matmul %39, %41, %cst_21 {dimension_numbers = #tpu.dot_dimension_numbers<[1], [0], [0], [1], [0, 0, 1, 1], [], []>} : vector<200x128xbf16>, vector<128x128xbf16>, vector<200x128xf32> -> vector<200x128xf32>
    %43 = arith.addf %38, %42 : vector<200x128xf32>
    %44 = vector.extract_strided_slice %27 {offsets = [39, 0], sizes = [200, 128], strides = [1, 1]} : vector<280x128xbf16> to vector<200x128xbf16>
    %c3 = arith.constant 3 : index
    %c0_22 = arith.constant 0 : index
    %c0_23 = arith.constant 0 : index
    %45 = vector.load %arg3[%c3, %c0_22, %c0_23] : memref<9x128x128xbf16, #tpu.memory_space<vmem>>, vector<1x128x128xbf16>
    %46 = vector.shape_cast %45 : vector<1x128x128xbf16> to vector<128x128xbf16>
    %cst_24 = arith.constant dense<0.000000e+00> : vector<200x128xf32>
    %47 = tpu.matmul %44, %46, %cst_24 {dimension_numbers = #tpu.dot_dimension_numbers<[1], [0], [0], [1], [0, 0, 1, 1], [], []>} : vector<200x128xbf16>, vector<128x128xbf16>, vector<200x128xf32> -> vector<200x128xf32>
    %48 = arith.addf %43, %47 : vector<200x128xf32>
    %49 = vector.extract_strided_slice %27 {offsets = [40, 0], sizes = [200, 128], strides = [1, 1]} : vector<280x128xbf16> to vector<200x128xbf16>
    %c4 = arith.constant 4 : index
    %c0_25 = arith.constant 0 : index
    %c0_26 = arith.constant 0 : index
    %50 = vector.load %arg3[%c4, %c0_25, %c0_26] : memref<9x128x128xbf16, #tpu.memory_space<vmem>>, vector<1x128x128xbf16>
    %51 = vector.shape_cast %50 : vector<1x128x128xbf16> to vector<128x128xbf16>
    %cst_27 = arith.constant dense<0.000000e+00> : vector<200x128xf32>
    %52 = tpu.matmul %49, %51, %cst_27 {dimension_numbers = #tpu.dot_dimension_numbers<[1], [0], [0], [1], [0, 0, 1, 1], [], []>} : vector<200x128xbf16>, vector<128x128xbf16>, vector<200x128xf32> -> vector<200x128xf32>
    %53 = arith.addf %48, %52 : vector<200x128xf32>
    %54 = vector.extract_strided_slice %27 {offsets = [41, 0], sizes = [200, 128], strides = [1, 1]} : vector<280x128xbf16> to vector<200x128xbf16>
    %c5 = arith.constant 5 : index
    %c0_28 = arith.constant 0 : index
    %c0_29 = arith.constant 0 : index
    %55 = vector.load %arg3[%c5, %c0_28, %c0_29] : memref<9x128x128xbf16, #tpu.memory_space<vmem>>, vector<1x128x128xbf16>
    %56 = vector.shape_cast %55 : vector<1x128x128xbf16> to vector<128x128xbf16>
    %cst_30 = arith.constant dense<0.000000e+00> : vector<200x128xf32>
    %57 = tpu.matmul %54, %56, %cst_30 {dimension_numbers = #tpu.dot_dimension_numbers<[1], [0], [0], [1], [0, 0, 1, 1], [], []>} : vector<200x128xbf16>, vector<128x128xbf16>, vector<200x128xf32> -> vector<200x128xf32>
    %58 = arith.addf %53, %57 : vector<200x128xf32>
    %59 = vector.extract_strided_slice %27 {offsets = [59, 0], sizes = [200, 128], strides = [1, 1]} : vector<280x128xbf16> to vector<200x128xbf16>
    %c6 = arith.constant 6 : index
    %c0_31 = arith.constant 0 : index
    %c0_32 = arith.constant 0 : index
    %60 = vector.load %arg3[%c6, %c0_31, %c0_32] : memref<9x128x128xbf16, #tpu.memory_space<vmem>>, vector<1x128x128xbf16>
    %61 = vector.shape_cast %60 : vector<1x128x128xbf16> to vector<128x128xbf16>
    %cst_33 = arith.constant dense<0.000000e+00> : vector<200x128xf32>
    %62 = tpu.matmul %59, %61, %cst_33 {dimension_numbers = #tpu.dot_dimension_numbers<[1], [0], [0], [1], [0, 0, 1, 1], [], []>} : vector<200x128xbf16>, vector<128x128xbf16>, vector<200x128xf32> -> vector<200x128xf32>
    %63 = arith.addf %58, %62 : vector<200x128xf32>
    %64 = vector.extract_strided_slice %27 {offsets = [60, 0], sizes = [200, 128], strides = [1, 1]} : vector<280x128xbf16> to vector<200x128xbf16>
    %c7 = arith.constant 7 : index
    %c0_34 = arith.constant 0 : index
    %c0_35 = arith.constant 0 : index
    %65 = vector.load %arg3[%c7, %c0_34, %c0_35] : memref<9x128x128xbf16, #tpu.memory_space<vmem>>, vector<1x128x128xbf16>
    %66 = vector.shape_cast %65 : vector<1x128x128xbf16> to vector<128x128xbf16>
    %cst_36 = arith.constant dense<0.000000e+00> : vector<200x128xf32>
    %67 = tpu.matmul %64, %66, %cst_36 {dimension_numbers = #tpu.dot_dimension_numbers<[1], [0], [0], [1], [0, 0, 1, 1], [], []>} : vector<200x128xbf16>, vector<128x128xbf16>, vector<200x128xf32> -> vector<200x128xf32>
    %68 = arith.addf %63, %67 : vector<200x128xf32>
    %69 = vector.extract_strided_slice %27 {offsets = [61, 0], sizes = [200, 128], strides = [1, 1]} : vector<280x128xbf16> to vector<200x128xbf16>
    %c8 = arith.constant 8 : index
    %c0_37 = arith.constant 0 : index
    %c0_38 = arith.constant 0 : index
    %70 = vector.load %arg3[%c8, %c0_37, %c0_38] : memref<9x128x128xbf16, #tpu.memory_space<vmem>>, vector<1x128x128xbf16>
    %71 = vector.shape_cast %70 : vector<1x128x128xbf16> to vector<128x128xbf16>
    %cst_39 = arith.constant dense<0.000000e+00> : vector<200x128xf32>
    %72 = tpu.matmul %69, %71, %cst_39 {dimension_numbers = #tpu.dot_dimension_numbers<[1], [0], [0], [1], [0, 0, 1, 1], [], []>} : vector<200x128xbf16>, vector<128x128xbf16>, vector<200x128xf32> -> vector<200x128xf32>
    %73 = arith.addf %68, %72 : vector<200x128xf32>
    %c0_40 = arith.constant 0 : index
    %c0_41 = arith.constant 0 : index
    %74 = vector.load %arg4[%c0_40, %c0_41] : memref<1x128xf32, #tpu.memory_space<vmem>>, vector<1x128xf32>
    %75 = vector.broadcast %74 : vector<1x128xf32> to vector<200x128xf32>
    %76 = arith.addf %73, %75 : vector<200x128xf32>
    %cst_42 = arith.constant 0.000000e+00 : f32
    %77 = vector.broadcast %cst_42 : f32 to vector<200x128xf32>
    %78 = arith.maximumf %76, %77 : vector<200x128xf32>
    %c0_43 = arith.constant 0 : index
    %c0_44 = arith.constant 0 : index
    %79 = vector.load %arg9[%c0_43, %c0_44] : memref<200x1xf32, #tpu.memory_space<vmem>>, vector<200x1xf32>
    %80 = vector.broadcast %79 : vector<200x1xf32> to vector<200x128xf32>
    %81 = arith.mulf %78, %80 : vector<200x128xf32>
    %cst_45 = arith.constant 0.000000e+00 : bf16
    %82 = vector.broadcast %cst_45 : bf16 to vector<1x128xbf16>
    %c7_46 = arith.constant 7 : index
    %c0_47 = arith.constant 0 : index
    %83 = vector.load %arg12[%c7_46, %c0_47] : memref<216x128xbf16, #tpu.memory_space<vmem>>, vector<1x128xbf16>
    tpu.vector_store %arg12[%c7_46, %c0_47], %82 {strides = array<i32>} : memref<216x128xbf16, #tpu.memory_space<vmem>>, vector<1x128xbf16>,
    %cst_48 = arith.constant 0.000000e+00 : bf16
    %84 = vector.broadcast %cst_48 : bf16 to vector<1x128xbf16>
    %c208 = arith.constant 208 : index
    %c0_49 = arith.constant 0 : index
    %85 = vector.load %arg12[%c208, %c0_49] : memref<216x128xbf16, #tpu.memory_space<vmem>>, vector<1x128xbf16>
    tpu.vector_store %arg12[%c208, %c0_49], %84 {strides = array<i32>} : memref<216x128xbf16, #tpu.memory_space<vmem>>, vector<1x128xbf16>,
    %86 = arith.truncf %81 : vector<200x128xf32> to vector<200x128xbf16>
    %c8_50 = arith.constant 8 : index
    %c0_51 = arith.constant 0 : index
    %87 = vector.load %arg12[%c8_50, %c0_51] : memref<216x128xbf16, #tpu.memory_space<vmem>>, vector<200x128xbf16>
    tpu.vector_store %arg12[%c8_50, %c0_51], %86 {strides = array<i32>} : memref<216x128xbf16, #tpu.memory_space<vmem>>, vector<200x128xbf16>,
    %c0_i32_52 = arith.constant 0 : i32
    %88 = arith.cmpi eq, %arg1, %c0_i32_52 : i32
    %89 = arith.extui %88 : i1 to i32
    %c0_i32_53 = arith.constant 0 : i32
    %90 = arith.cmpi ne, %89, %c0_i32_53 : i32
    scf.if %90 {
      %cst_116 = arith.constant 0.000000e+00 : bf16
      %157 = vector.broadcast %cst_116 : bf16 to vector<20x128xbf16>
      %c8_117 = arith.constant 8 : index
      %c0_118 = arith.constant 0 : index
      %158 = vector.load %arg12[%c8_117, %c0_118] : memref<216x128xbf16, #tpu.memory_space<vmem>>, vector<20x128xbf16>
      tpu.vector_store %arg12[%c8_117, %c0_118], %157 {strides = array<i32>} : memref<216x128xbf16, #tpu.memory_space<vmem>>, vector<20x128xbf16>,
    } else {
    }
    %c1_i32_54 = arith.constant 1 : i32
    %91 = arith.cmpi eq, %arg1, %c1_i32_54 : i32
    %92 = arith.extui %91 : i1 to i32
    %c0_i32_55 = arith.constant 0 : i32
    %93 = arith.cmpi ne, %92, %c0_i32_55 : i32
    scf.if %93 {
      %cst_116 = arith.constant 0.000000e+00 : bf16
      %157 = vector.broadcast %cst_116 : bf16 to vector<20x128xbf16>
      %c188 = arith.constant 188 : index
      %c0_117 = arith.constant 0 : index
      %158 = vector.load %arg12[%c188, %c0_117] : memref<216x128xbf16, #tpu.memory_space<vmem>>, vector<20x128xbf16>
      tpu.vector_store %arg12[%c188, %c0_117], %157 {strides = array<i32>} : memref<216x128xbf16, #tpu.memory_space<vmem>>, vector<20x128xbf16>,
    } else {
    }
    %cst_56 = arith.constant 0.000000e+00 : f32
    %94 = vector.broadcast %cst_56 : f32 to vector<160x128xf32>
    %c7_57 = arith.constant 7 : index
    %c0_58 = arith.constant 0 : index
    %95 = vector.load %arg12[%c7_57, %c0_58] : memref<216x128xbf16, #tpu.memory_space<vmem>>, vector<160x128xbf16>
    %c0_59 = arith.constant 0 : index
    %c0_60 = arith.constant 0 : index
    %c0_61 = arith.constant 0 : index
    %96 = vector.load %arg5[%c0_59, %c0_60, %c0_61] : memref<9x128x128xbf16, #tpu.memory_space<vmem>>, vector<1x128x128xbf16>
    %97 = vector.shape_cast %96 : vector<1x128x128xbf16> to vector<128x128xbf16>
    %cst_62 = arith.constant dense<0.000000e+00> : vector<160x128xf32>
    %98 = tpu.matmul %95, %97, %cst_62 {dimension_numbers = #tpu.dot_dimension_numbers<[1], [0], [0], [1], [0, 0, 1, 1], [], []>} : vector<160x128xbf16>, vector<128x128xbf16>, vector<160x128xf32> -> vector<160x128xf32>
    %99 = arith.addf %94, %98 : vector<160x128xf32>
    %c8_63 = arith.constant 8 : index
    %c0_64 = arith.constant 0 : index
    %100 = vector.load %arg12[%c8_63, %c0_64] : memref<216x128xbf16, #tpu.memory_space<vmem>>, vector<160x128xbf16>
    %c1_65 = arith.constant 1 : index
    %c0_66 = arith.constant 0 : index
    %c0_67 = arith.constant 0 : index
    %101 = vector.load %arg5[%c1_65, %c0_66, %c0_67] : memref<9x128x128xbf16, #tpu.memory_space<vmem>>, vector<1x128x128xbf16>
    %102 = vector.shape_cast %101 : vector<1x128x128xbf16> to vector<128x128xbf16>
    %cst_68 = arith.constant dense<0.000000e+00> : vector<160x128xf32>
    %103 = tpu.matmul %100, %102, %cst_68 {dimension_numbers = #tpu.dot_dimension_numbers<[1], [0], [0], [1], [0, 0, 1, 1], [], []>} : vector<160x128xbf16>, vector<128x128xbf16>, vector<160x128xf32> -> vector<160x128xf32>
    %104 = arith.addf %99, %103 : vector<160x128xf32>
    %c9 = arith.constant 9 : index
    %c0_69 = arith.constant 0 : index
    %105 = vector.load %arg12[%c9, %c0_69] : memref<216x128xbf16, #tpu.memory_space<vmem>>, vector<160x128xbf16>
    %c2_70 = arith.constant 2 : index
    %c0_71 = arith.constant 0 : index
    %c0_72 = arith.constant 0 : index
    %106 = vector.load %arg5[%c2_70, %c0_71, %c0_72] : memref<9x128x128xbf16, #tpu.memory_space<vmem>>, vector<1x128x128xbf16>
    %107 = vector.shape_cast %106 : vector<1x128x128xbf16> to vector<128x128xbf16>
    %cst_73 = arith.constant dense<0.000000e+00> : vector<160x128xf32>
    %108 = tpu.matmul %105, %107, %cst_73 {dimension_numbers = #tpu.dot_dimension_numbers<[1], [0], [0], [1], [0, 0, 1, 1], [], []>} : vector<160x128xbf16>, vector<128x128xbf16>, vector<160x128xf32> -> vector<160x128xf32>
    %109 = arith.addf %104, %108 : vector<160x128xf32>
    %c27 = arith.constant 27 : index
    %c0_74 = arith.constant 0 : index
    %110 = vector.load %arg12[%c27, %c0_74] : memref<216x128xbf16, #tpu.memory_space<vmem>>, vector<160x128xbf16>
    %c3_75 = arith.constant 3 : index
    %c0_76 = arith.constant 0 : index
    %c0_77 = arith.constant 0 : index
    %111 = vector.load %arg5[%c3_75, %c0_76, %c0_77] : memref<9x128x128xbf16, #tpu.memory_space<vmem>>, vector<1x128x128xbf16>
    %112 = vector.shape_cast %111 : vector<1x128x128xbf16> to vector<128x128xbf16>
    %cst_78 = arith.constant dense<0.000000e+00> : vector<160x128xf32>
    %113 = tpu.matmul %110, %112, %cst_78 {dimension_numbers = #tpu.dot_dimension_numbers<[1], [0], [0], [1], [0, 0, 1, 1], [], []>} : vector<160x128xbf16>, vector<128x128xbf16>, vector<160x128xf32> -> vector<160x128xf32>
    %114 = arith.addf %109, %113 : vector<160x128xf32>
    %c28 = arith.constant 28 : index
    %c0_79 = arith.constant 0 : index
    %115 = vector.load %arg12[%c28, %c0_79] : memref<216x128xbf16, #tpu.memory_space<vmem>>, vector<160x128xbf16>
    %c4_80 = arith.constant 4 : index
    %c0_81 = arith.constant 0 : index
    %c0_82 = arith.constant 0 : index
    %116 = vector.load %arg5[%c4_80, %c0_81, %c0_82] : memref<9x128x128xbf16, #tpu.memory_space<vmem>>, vector<1x128x128xbf16>
    %117 = vector.shape_cast %116 : vector<1x128x128xbf16> to vector<128x128xbf16>
    %cst_83 = arith.constant dense<0.000000e+00> : vector<160x128xf32>
    %118 = tpu.matmul %115, %117, %cst_83 {dimension_numbers = #tpu.dot_dimension_numbers<[1], [0], [0], [1], [0, 0, 1, 1], [], []>} : vector<160x128xbf16>, vector<128x128xbf16>, vector<160x128xf32> -> vector<160x128xf32>
    %119 = arith.addf %114, %118 : vector<160x128xf32>
    %c29 = arith.constant 29 : index
    %c0_84 = arith.constant 0 : index
    %120 = vector.load %arg12[%c29, %c0_84] : memref<216x128xbf16, #tpu.memory_space<vmem>>, vector<160x128xbf16>
    %c5_85 = arith.constant 5 : index
    %c0_86 = arith.constant 0 : index
    %c0_87 = arith.constant 0 : index
    %121 = vector.load %arg5[%c5_85, %c0_86, %c0_87] : memref<9x128x128xbf16, #tpu.memory_space<vmem>>, vector<1x128x128xbf16>
    %122 = vector.shape_cast %121 : vector<1x128x128xbf16> to vector<128x128xbf16>
    %cst_88 = arith.constant dense<0.000000e+00> : vector<160x128xf32>
    %123 = tpu.matmul %120, %122, %cst_88 {dimension_numbers = #tpu.dot_dimension_numbers<[1], [0], [0], [1], [0, 0, 1, 1], [], []>} : vector<160x128xbf16>, vector<128x128xbf16>, vector<160x128xf32> -> vector<160x128xf32>
    %124 = arith.addf %119, %123 : vector<160x128xf32>
    %c47 = arith.constant 47 : index
    %c0_89 = arith.constant 0 : index
    %125 = vector.load %arg12[%c47, %c0_89] : memref<216x128xbf16, #tpu.memory_space<vmem>>, vector<160x128xbf16>
    %c6_90 = arith.constant 6 : index
    %c0_91 = arith.constant 0 : index
    %c0_92 = arith.constant 0 : index
    %126 = vector.load %arg5[%c6_90, %c0_91, %c0_92] : memref<9x128x128xbf16, #tpu.memory_space<vmem>>, vector<1x128x128xbf16>
    %127 = vector.shape_cast %126 : vector<1x128x128xbf16> to vector<128x128xbf16>
    %cst_93 = arith.constant dense<0.000000e+00> : vector<160x128xf32>
    %128 = tpu.matmul %125, %127, %cst_93 {dimension_numbers = #tpu.dot_dimension_numbers<[1], [0], [0], [1], [0, 0, 1, 1], [], []>} : vector<160x128xbf16>, vector<128x128xbf16>, vector<160x128xf32> -> vector<160x128xf32>
    %129 = arith.addf %124, %128 : vector<160x128xf32>
    %c48 = arith.constant 48 : index
    %c0_94 = arith.constant 0 : index
    %130 = vector.load %arg12[%c48, %c0_94] : memref<216x128xbf16, #tpu.memory_space<vmem>>, vector<160x128xbf16>
    %c7_95 = arith.constant 7 : index
    %c0_96 = arith.constant 0 : index
    %c0_97 = arith.constant 0 : index
    %131 = vector.load %arg5[%c7_95, %c0_96, %c0_97] : memref<9x128x128xbf16, #tpu.memory_space<vmem>>, vector<1x128x128xbf16>
    %132 = vector.shape_cast %131 : vector<1x128x128xbf16> to vector<128x128xbf16>
    %cst_98 = arith.constant dense<0.000000e+00> : vector<160x128xf32>
    %133 = tpu.matmul %130, %132, %cst_98 {dimension_numbers = #tpu.dot_dimension_numbers<[1], [0], [0], [1], [0, 0, 1, 1], [], []>} : vector<160x128xbf16>, vector<128x128xbf16>, vector<160x128xf32> -> vector<160x128xf32>
    %134 = arith.addf %129, %133 : vector<160x128xf32>
    %c49 = arith.constant 49 : index
    %c0_99 = arith.constant 0 : index
    %135 = vector.load %arg12[%c49, %c0_99] : memref<216x128xbf16, #tpu.memory_space<vmem>>, vector<160x128xbf16>
    %c8_100 = arith.constant 8 : index
    %c0_101 = arith.constant 0 : index
    %c0_102 = arith.constant 0 : index
    %136 = vector.load %arg5[%c8_100, %c0_101, %c0_102] : memref<9x128x128xbf16, #tpu.memory_space<vmem>>, vector<1x128x128xbf16>
    %137 = vector.shape_cast %136 : vector<1x128x128xbf16> to vector<128x128xbf16>
    %cst_103 = arith.constant dense<0.000000e+00> : vector<160x128xf32>
    %138 = tpu.matmul %135, %137, %cst_103 {dimension_numbers = #tpu.dot_dimension_numbers<[1], [0], [0], [1], [0, 0, 1, 1], [], []>} : vector<160x128xbf16>, vector<128x128xbf16>, vector<160x128xf32> -> vector<160x128xf32>
    %139 = arith.addf %134, %138 : vector<160x128xf32>
    %c0_104 = arith.constant 0 : index
    %c0_105 = arith.constant 0 : index
    %140 = vector.load %arg6[%c0_104, %c0_105] : memref<1x128xf32, #tpu.memory_space<vmem>>, vector<1x128xf32>
    %141 = vector.broadcast %140 : vector<1x128xf32> to vector<160x128xf32>
    %142 = arith.addf %139, %141 : vector<160x128xf32>
    %143 = vector.extract_strided_slice %27 {offsets = [60, 0], sizes = [160, 128], strides = [1, 1]} : vector<280x128xbf16> to vector<160x128xbf16>
    %c0_106 = arith.constant 0 : index
    %c0_107 = arith.constant 0 : index
    %144 = vector.load %arg7[%c0_106, %c0_107] : memref<128x128xbf16, #tpu.memory_space<vmem>>, vector<128x128xbf16>
    %cst_108 = arith.constant dense<0.000000e+00> : vector<160x128xf32>
    %145 = tpu.matmul %143, %144, %cst_108 {dimension_numbers = #tpu.dot_dimension_numbers<[1], [0], [0], [1], [0, 0, 1, 1], [], []>} : vector<160x128xbf16>, vector<128x128xbf16>, vector<160x128xf32> -> vector<160x128xf32>
    %c0_109 = arith.constant 0 : index
    %c0_110 = arith.constant 0 : index
    %146 = vector.load %arg8[%c0_109, %c0_110] : memref<1x128xf32, #tpu.memory_space<vmem>>, vector<1x128xf32>
    %147 = vector.broadcast %146 : vector<1x128xf32> to vector<160x128xf32>
    %148 = arith.addf %145, %147 : vector<160x128xf32>
    %149 = arith.addf %142, %148 : vector<160x128xf32>
    %cst_111 = arith.constant 0.000000e+00 : f32
    %150 = vector.broadcast %cst_111 : f32 to vector<160x128xf32>
    %151 = arith.maximumf %149, %150 : vector<160x128xf32>
    %152 = vector.shape_cast %151 : vector<160x128xf32> to vector<8x20x128xf32>
    %153 = vector.extract_strided_slice %152 {offsets = [0, 2, 0], sizes = [8, 16, 128], strides = [1, 1, 1]} : vector<8x20x128xf32> to vector<8x16x128xf32>
    %c0_112 = arith.constant 0 : index
    %c0_113 = arith.constant 0 : index
    %c0_114 = arith.constant 0 : index
    %c0_115 = arith.constant 0 : index
    %154 = vector.load %arg10[%c0_112, %c0_113, %c0_114, %c0_115] : memref<1x8x16x128xf32, #tpu.memory_space<vmem>>, vector<1x8x16x128xf32>
    %155 = vector.shape_cast %154 : vector<1x8x16x128xf32> to vector<8x16x128xf32>
    %156 = vector.shape_cast %153 : vector<8x16x128xf32> to vector<1x8x16x128xf32>
    tpu.vector_store %arg10[%c0_112, %c0_113, %c0_114, %c0_115], %156 {strides = array<i32>} : memref<1x8x16x128xf32, #tpu.memory_space<vmem>>, vector<1x8x16x128xf32>,
    return
  }
  func.func @transform_1(%arg0: i32, %arg1: i32) -> (i32, i32, i32) {
    %c0_i32 = arith.constant 0 : i32
    %c0_i32_0 = arith.constant 0 : i32
    %c0_i32_1 = arith.constant 0 : i32
    %c0_i32_2 = arith.constant 0 : i32
    return %c0_i32, %c0_i32_0, %c0_i32_1 : i32, i32, i32
  }
  func.func @transform_2(%arg0: i32, %arg1: i32) -> (i32, i32) {
    %c0_i32 = arith.constant 0 : i32
    %c0_i32_0 = arith.constant 0 : i32
    %c0_i32_1 = arith.constant 0 : i32
    return %c0_i32, %c0_i32_0 : i32, i32
  }
  func.func @transform_3(%arg0: i32, %arg1: i32) -> (i32, i32, i32) {
    %c0_i32 = arith.constant 0 : i32
    %c0_i32_0 = arith.constant 0 : i32
    %c0_i32_1 = arith.constant 0 : i32
    %c0_i32_2 = arith.constant 0 : i32
    return %c0_i32, %c0_i32_0, %c0_i32_1 : i32, i32, i32
  }
  func.func @transform_4(%arg0: i32, %arg1: i32) -> (i32, i32) {
    %c0_i32 = arith.constant 0 : i32
    %c0_i32_0 = arith.constant 0 : i32
    %c0_i32_1 = arith.constant 0 : i32
    return %c0_i32, %c0_i32_0 : i32, i32
  }
  func.func @transform_5(%arg0: i32, %arg1: i32) -> (i32, i32) {
    %c0_i32 = arith.constant 0 : i32
    %c0_i32_0 = arith.constant 0 : i32
    %c0_i32_1 = arith.constant 0 : i32
    return %c0_i32, %c0_i32_0 : i32, i32
  }
  func.func @transform_6(%arg0: i32, %arg1: i32) -> (i32, i32) {
    %c0_i32 = arith.constant 0 : i32
    %c0_i32_0 = arith.constant 0 : i32
    %c0_i32_1 = arith.constant 0 : i32
    return %c0_i32, %c0_i32_0 : i32, i32
  }
  func.func @transform_7(%arg0: i32, %arg1: i32) -> (i32, i32) {
    %c0_i32 = arith.constant 0 : i32
    %c0_i32_0 = arith.constant 0 : i32
    %c0_i32_1 = arith.constant 0 : i32
    return %c0_i32, %c0_i32_0 : i32, i32
  }
  func.func @transform_8(%arg0: i32, %arg1: i32) -> (i32, i32, i32, i32) {
    %c0_i32 = arith.constant 0 : i32
    %c0_i32_0 = arith.constant 0 : i32
    %c0_i32_1 = arith.constant 0 : i32
    return %arg0, %arg1, %c0_i32, %c0_i32_0 : i32, i32, i32, i32
  }
}

</mosaic_0001>

<llo_original>
// kernel: tpu_custom_call.1
$region0: #{tpu_custom_call.1}
  #allocation0 [shape = 'u32[]', space=smem, size = 0x4, offset = 0x4, fixed_abs, tag = 'smem constant byte address 0x4 - core index']
  #allocation1 [shape = 'u32[144,128]{1,0:T(1,128)}', space=vmem, size = 0x12000, scoped, tag = 'internal scratch']
  #allocation2 [shape = 'bf16[2,280,128]{2,1,0:T(8,128)(2,1)}', space=vmem, size = 0x23000, scoped, tag = 'scratch operand']
  #allocation3 [shape = 'bf16[216,128]{1,0:T(8,128)(2,1)}', space=vmem, size = 0xd800, scoped, tag = 'scratch operand']
  #allocation4 [shape = 's32[2]{0}', space=sflag, size = 0x8, scoped, tag = 'scratch operand']
  #allocation11 [shape = 's32[]', space=sflag, size = 0x4, offset = 0, fixed_abs, tag = 'sflag constant byte address 0x0 - dummy sync flag']
  #allocation12 [shape = 's32[]', space=sflag, size = 0x4, offset = 0, fixed_abs, tag = 'sflag constant byte address 0x0 - dummy sync flag']
  #allocation13 [shape = 'u32[]', space=smem, size = 0x4, offset = 0x44, fixed_abs, tag = 'smem constant byte address 0x44 - assertion arg 0']
  #allocation14 [shape = 'u32[]', space=smem, size = 0x4, offset = 0x48, fixed_abs, tag = 'smem constant byte address 0x48 - assertion arg 1']
  #allocation15 [shape = 's32[]', space=sflag, size = 0x4, offset = 0, fixed_abs, tag = 'sflag constant byte address 0x0 - dummy sync flag']
  #allocation16 [shape = 's32[]', space=sflag, size = 0x4, offset = 0, fixed_abs, tag = 'sflag constant byte address 0x0 - dummy sync flag']
  %s0 = inlined_call_operand.hbm [shape: bf16[2,440,128], index: 0, kind: input, shape index: {}]
  %s1 = inlined_call_operand.hbm [shape: bf16[9,128,128], index: 1, kind: input, shape index: {}]
  %s2 = inlined_call_operand.vmem [shape: f32[1,128], index: 2, kind: input, shape index: {}]
  %s3 = inlined_call_operand.hbm [shape: bf16[9,128,128], index: 3, kind: input, shape index: {}]
  %s4 = inlined_call_operand.vmem [shape: f32[1,128], index: 4, kind: input, shape index: {}]
  %s5 = inlined_call_operand.vmem [shape: bf16[128,128], index: 5, kind: input, shape index: {}]
  %s6 = inlined_call_operand.vmem [shape: f32[1,128], index: 6, kind: input, shape index: {}]
  %s7 = inlined_call_operand.vmem [shape: f32[200,1], index: 7, kind: input, shape index: {}]
  %s8 = inlined_call_operand.hbm [shape: f32[2,16,16,128], index: 8, kind: output, shape index: {}]
  %s9 = sld [smem:[#allocation0]]
  $region93: #{tpu_custom_call.1} parent=0
    _
  %s11 = ssub.s32 1, %s9
  %s12 = scalar_select 0, %s11, %s9
  $region1: #{tpu_custom_call.1} parent=0
    #allocation5 [shape = 'u8[294912]{0}', space=vmem, size = 0x48000, scoped, tag = 'input window, operand 1, single buffered']
    #allocation6 [shape = 's32[2]{0}', space=sflag, size = 0x8, scoped, tag = 'scoped memory for tpu_custom_call.1']
    #allocation7 [shape = 's32[2]{0}', space=sflag, size = 0x8, scoped, tag = 'scoped memory for tpu_custom_call.1']
    #allocation8 [shape = 'u8[294912]{0}', space=vmem, size = 0x48000, scoped, tag = 'input window, operand 3, single buffered']
    #allocation9 [shape = 's32[1]{0}', space=sflag, size = 0x4, scoped, tag = 'scoped memory for tpu_custom_call.1']
    #allocation10 [shape = 'u8[131072]{0}', space=vmem, size = 0x20000, scoped, tag = 'output window, operand 0']
    %13 = vsyncpa [#allocation6], 0
    %14 = vsyncpa [#allocation9], 0
    %15 = vsyncpa [#allocation7], 0
    %s16 = scalar_lea.sflag [#allocation7], 1
    %17 = vsyncpa %s16, 0
    loop: start=0, step=1, limit=6
    $region2: #{tpu_custom_call.1} parent=1 // loop_pre_header
      _
    $region3: #{tpu_custom_call.1} parent=1 // loop_header
      %s19 = sphi 0, %s23
      %p20 = scmp.ge.s32.totalorder %s19, 6
      %s26 = sphi 0, %s38
      %s27 = sphi 0, %s34
      %s28 = sphi 0, %s26
      %s29 = sphi 0, %s27
      %s30 = sphi 0, %s28
      %s31 = sphi 0, %s29
      %s39 = sphi 0, %s39
      %s41 = sphi 0, %s39
      %s42 = sphi 0, %s41
      %s56 = sphi 0, %s42
      %s60 = sphi 0, %s60
      %s62 = sphi 0, %s60
      %s63 = sphi 0, %s62
      %s77 = sphi 0, %s63
      %s81 = sphi 0, %s81
      %s83 = sphi 0, %s81
      %s84 = sphi 0, %s83
      %s98 = sphi 0, %s84
      %s102 = sphi 0, %s102
      %s104 = sphi 0, %s102
      %s105 = sphi 0, %s104
      %s119 = sphi 0, %s105
      %s123 = sphi 0, %s123
      %s125 = sphi 0, %s123
      %s126 = sphi 0, %s125
      %s140 = sphi 0, %s126
      %s144 = sphi 0, %s144
      %s146 = sphi 0, %s144
      %s147 = sphi 0, %s146
      %s161 = sphi 0, %s147
      %s165 = sphi 0, %s165
      %s167 = sphi 0, %s165
      %s168 = sphi 0, %s167
      %s182 = sphi 0, %s168
      %s190 = sphi 0, %s192
      %s193 = sphi 0, %s190
      %s194 = sphi 0, %s193
      %s210 = sphi 0, %s194
    $region4: #{tpu_custom_call.1} parent=1 // loop_header_branch
      %22 = sbr.rel (%p20) target = $region8
    $region5: #{tpu_custom_call.1} parent=1 // loop_body
      %s24 = ssub.s32 %s19, 1
      %s25 = ssub.s32 %s19, 2
      %s32 = sadd.s32 1, %s27
      %p33 = scmp.ge.s32.totalorder %s32, 2
      %s34 = scalar_select %p33, 0, %s32
      %s35 = sadd.s32 1, %s26
      %s36 = scalar_select %p33, %s35, %s26
      %p37 = scmp.ge.s32.totalorder %s36, 2
      %s38 = scalar_select %p37, 0, %s36
      %s40 = sadd.s32 %s39, 1
      %p43 = scmp.eq.s32.totalorder %s19, 3
      %p44 = scmp.ne.s32.totalorder %s39, %s41
      %p45 = scmp.eq.s32.totalorder %s19, 0
      %p46 = por %p44, %p45
      %p47 = scmp.ne.s32.totalorder %s39, %s41
      %p48 = scmp.eq.s32.totalorder %s24, 3
      %p49 = por %p47, %p48
      %p50 = scmp.ne.s32.totalorder %s41, %s42
      %p51 = scmp.eq.s32.totalorder %s24, 0
      %p52 = por %p50, %p51
      %p53 = scmp.ne.s32.totalorder %s41, %s42
      %p54 = scmp.eq.s32.totalorder %s25, 3
      %p55 = por %p53, %p54
      %p57 = scmp.ne.s32.totalorder %s42, %s56
      %p58 = scmp.eq.s32.totalorder %s25, 0
      %p59 = por %p57, %p58
      %s61 = sadd.s32 %s60, 1
      %p64 = scmp.eq.s32.totalorder %s19, 3
      %p65 = scmp.ne.s32.totalorder %s60, %s62
      %p66 = scmp.eq.s32.totalorder %s19, 0
      %p67 = por %p65, %p66
      %p68 = scmp.ne.s32.totalorder %s60, %s62
      %p69 = scmp.eq.s32.totalorder %s24, 3
      %p70 = por %p68, %p69
      %p71 = scmp.ne.s32.totalorder %s62, %s63
      %p72 = scmp.eq.s32.totalorder %s24, 0
      %p73 = por %p71, %p72
      %p74 = scmp.ne.s32.totalorder %s62, %s63
      %p75 = scmp.eq.s32.totalorder %s25, 3
      %p76 = por %p74, %p75
      %p78 = scmp.ne.s32.totalorder %s63, %s77
      %p79 = scmp.eq.s32.totalorder %s25, 0
      %p80 = por %p78, %p79
      %s82 = sadd.s32 %s81, 1
      %p85 = scmp.eq.s32.totalorder %s19, 3
      %p86 = scmp.ne.s32.totalorder %s81, %s83
      %p87 = scmp.eq.s32.totalorder %s19, 0
      %p88 = por %p86, %p87
      %p89 = scmp.ne.s32.totalorder %s81, %s83
      %p90 = scmp.eq.s32.totalorder %s24, 3
      %p91 = por %p89, %p90
      %p92 = scmp.ne.s32.totalorder %s83, %s84
      %p93 = scmp.eq.s32.totalorder %s24, 0
      %p94 = por %p92, %p93
      %p95 = scmp.ne.s32.totalorder %s83, %s84
      %p96 = scmp.eq.s32.totalorder %s25, 3
      %p97 = por %p95, %p96
      %p99 = scmp.ne.s32.totalorder %s84, %s98
      %p100 = scmp.eq.s32.totalorder %s25, 0
      %p101 = por %p99, %p100
      %s103 = sadd.s32 %s102, 1
      %p106 = scmp.eq.s32.totalorder %s19, 3
      %p107 = scmp.ne.s32.totalorder %s102, %s104
      %p108 = scmp.eq.s32.totalorder %s19, 0
      %p109 = por %p107, %p108
      %p110 = scmp.ne.s32.totalorder %s102, %s104
      %p111 = scmp.eq.s32.totalorder %s24, 3
      %p112 = por %p110, %p111
      %p113 = scmp.ne.s32.totalorder %s104, %s105
      %p114 = scmp.eq.s32.totalorder %s24, 0
      %p115 = por %p113, %p114
      %p116 = scmp.ne.s32.totalorder %s104, %s105
      %p117 = scmp.eq.s32.totalorder %s25, 3
      %p118 = por %p116, %p117
      %p120 = scmp.ne.s32.totalorder %s105, %s119
      %p121 = scmp.eq.s32.totalorder %s25, 0
      %p122 = por %p120, %p121
      %s124 = sadd.s32 %s123, 1
      %p127 = scmp.eq.s32.totalorder %s19, 3
      %p128 = scmp.ne.s32.totalorder %s123, %s125
      %p129 = scmp.eq.s32.totalorder %s19, 0
      %p130 = por %p128, %p129
      %p131 = scmp.ne.s32.totalorder %s123, %s125
      %p132 = scmp.eq.s32.totalorder %s24, 3
      %p133 = por %p131, %p132
      %p134 = scmp.ne.s32.totalorder %s125, %s126
      %p135 = scmp.eq.s32.totalorder %s24, 0
      %p136 = por %p134, %p135
      %p137 = scmp.ne.s32.totalorder %s125, %s126
      %p138 = scmp.eq.s32.totalorder %s25, 3
      %p139 = por %p137, %p138
      %p141 = scmp.ne.s32.totalorder %s126, %s140
      %p142 = scmp.eq.s32.totalorder %s25, 0
      %p143 = por %p141, %p142
      %s145 = sadd.s32 %s144, 1
      %p148 = scmp.eq.s32.totalorder %s19, 3
      %p149 = scmp.ne.s32.totalorder %s144, %s146
      %p150 = scmp.eq.s32.totalorder %s19, 0
      %p151 = por %p149, %p150
      %p152 = scmp.ne.s32.totalorder %s144, %s146
      %p153 = scmp.eq.s32.totalorder %s24, 3
      %p154 = por %p152, %p153
      %p155 = scmp.ne.s32.totalorder %s146, %s147
      %p156 = scmp.eq.s32.totalorder %s24, 0
      %p157 = por %p155, %p156
      %p158 = scmp.ne.s32.totalorder %s146, %s147
      %p159 = scmp.eq.s32.totalorder %s25, 3
      %p160 = por %p158, %p159
      %p162 = scmp.ne.s32.totalorder %s147, %s161
      %p163 = scmp.eq.s32.totalorder %s25, 0
      %p164 = por %p162, %p163
      %s166 = sadd.s32 %s165, 1
      %p169 = scmp.eq.s32.totalorder %s19, 3
      %p170 = scmp.ne.s32.totalorder %s165, %s167
      %p171 = scmp.eq.s32.totalorder %s19, 0
      %p172 = por %p170, %p171
      %p173 = scmp.ne.s32.totalorder %s165, %s167
      %p174 = scmp.eq.s32.totalorder %s24, 3
      %p175 = por %p173, %p174
      %p176 = scmp.ne.s32.totalorder %s167, %s168
      %p177 = scmp.eq.s32.totalorder %s24, 0
      %p178 = por %p176, %p177
      %p179 = scmp.ne.s32.totalorder %s167, %s168
      %p180 = scmp.eq.s32.totalorder %s25, 3
      %p181 = por %p179, %p180
      %p183 = scmp.ne.s32.totalorder %s168, %s182
      %p184 = scmp.eq.s32.totalorder %s25, 0
      %p185 = por %p183, %p184
      %s186 = ssub.s32 %s26, %s38
      %s187 = ssub.s32 %s27, %s34
      %s188 = sor.u32 %s186, %s187
      %p189 = scmp.eq.s32.totalorder %s188, 0
      %s191 = sadd.s32 %s190, 1
      %s192 = scalar_select %p189, %s190, %s191
      %p195 = pneg %p189
      %p196 = scmp.eq.s32.totalorder %s19, 3
      %p197 = por %p195, %p196
      %p198 = scmp.ne.s32.totalorder %s190, %s193
      %p199 = scmp.eq.s32.totalorder %s19, 0
      %p200 = por %p198, %p199
      %p201 = scmp.ne.s32.totalorder %s190, %s193
      %p202 = scmp.eq.s32.totalorder %s24, 3
      %p203 = por %p201, %p202
      %p204 = scmp.ne.s32.totalorder %s193, %s194
      %p205 = scmp.eq.s32.totalorder %s24, 0
      %p206 = por %p204, %p205
      %p207 = scmp.ne.s32.totalorder %s193, %s194
      %p208 = scmp.eq.s32.totalorder %s25, 3
      %p209 = por %p207, %p208
      %p211 = scmp.ne.s32.totalorder %s194, %s210
      %p212 = scmp.eq.s32.totalorder %s25, 0
      %p213 = por %p211, %p212
      %p214 = scmp.le.s32.totalorder 1, %s19
      %p215 = scmp.lt.s32.totalorder %s19, 5
      %p216 = pnand %p214, %p215
      %p217 = pneg %p216
      // Predicated region
      $region9: #{tpu_custom_call.1} parent=5 // pred_check
        _
      $region10: #{tpu_custom_call.1} parent=5 // pred_check_branch
        %219 = sbr.rel (%p216) target = $region12
      $region11: #{tpu_custom_call.1} parent=5 // pred_region
        %s220 = ssub.s32 %s19, 1
        // Predicated region
        $region13: #{tpu_custom_call.1} parent=11 // pred_check
          %p221 = pneg %p52
        $region14: #{tpu_custom_call.1} parent=11 // pred_check_branch
          %223 = sbr.rel (%p221) target = $region16
        $region15: #{tpu_custom_call.1} parent=11 // pred_region
          %s225 = ssub.s32 9216, 9216
          %226 = vsyncadd [#allocation6], %s225
          %s227 = sshll.u32 [#allocation5], 4
          %s228 = int_to_ptr.vmem [resolvable:$true] %s227
          %233 = dma.hbm_to_vmem [thread:$0]  %s1, 9216, %s228, [#allocation6], 64, 64, 4
        $region16: #{tpu_custom_call.1} parent=11 // pred_fallthru
          _
        // Predicated region
        $region17: #{tpu_custom_call.1} parent=11 // pred_check
          %p234 = pneg %p73
        $region18: #{tpu_custom_call.1} parent=11 // pred_check_branch
          %236 = sbr.rel (%p234) target = $region20
        $region19: #{tpu_custom_call.1} parent=11 // pred_region
          _
        $region20: #{tpu_custom_call.1} parent=11 // pred_fallthru
          _
        // Predicated region
        $region21: #{tpu_custom_call.1} parent=11 // pred_check
          %p237 = pneg %p94
        $region22: #{tpu_custom_call.1} parent=11 // pred_check_branch
          %239 = sbr.rel (%p237) target = $region24
        $region23: #{tpu_custom_call.1} parent=11 // pred_region
          %s241 = ssub.s32 9216, 9216
          %242 = vsyncadd [#allocation9], %s241
          %s243 = sshll.u32 [#allocation8], 4
          %s244 = int_to_ptr.vmem [resolvable:$true] %s243
          %249 = dma.hbm_to_vmem [thread:$0]  %s3, 9216, %s244, [#allocation9], 64, 64, 4
        $region24: #{tpu_custom_call.1} parent=11 // pred_fallthru
          _
        // Predicated region
        $region25: #{tpu_custom_call.1} parent=11 // pred_check
          %p250 = pneg %p115
        $region26: #{tpu_custom_call.1} parent=11 // pred_check_branch
          %252 = sbr.rel (%p250) target = $region28
        $region27: #{tpu_custom_call.1} parent=11 // pred_region
          _
        $region28: #{tpu_custom_call.1} parent=11 // pred_fallthru
          _
        // Predicated region
        $region29: #{tpu_custom_call.1} parent=11 // pred_check
          %p253 = pneg %p136
        $region30: #{tpu_custom_call.1} parent=11 // pred_check_branch
          %255 = sbr.rel (%p253) target = $region32
        $region31: #{tpu_custom_call.1} parent=11 // pred_region
          _
        $region32: #{tpu_custom_call.1} parent=11 // pred_fallthru
          _
        // Predicated region
        $region33: #{tpu_custom_call.1} parent=11 // pred_check
          %p256 = pneg %p157
        $region34: #{tpu_custom_call.1} parent=11 // pred_check_branch
          %258 = sbr.rel (%p256) target = $region36
        $region35: #{tpu_custom_call.1} parent=11 // pred_region
          _
        $region36: #{tpu_custom_call.1} parent=11 // pred_fallthru
          _
        // Predicated region
        $region37: #{tpu_custom_call.1} parent=11 // pred_check
          %p259 = pneg %p178
        $region38: #{tpu_custom_call.1} parent=11 // pred_check_branch
          %261 = sbr.rel (%p259) target = $region40
        $region39: #{tpu_custom_call.1} parent=11 // pred_region
          _
        $region40: #{tpu_custom_call.1} parent=11 // pred_fallthru
          _
      $region12: #{tpu_custom_call.1} parent=5 // pred_fallthru
        _
      %p262 = scmp.lt.s32.totalorder %s19, 4
      // Predicated region
      $region41: #{tpu_custom_call.1} parent=5 // pred_check
        %p263 = pneg %p262
      $region42: #{tpu_custom_call.1} parent=5 // pred_check_branch
        %265 = sbr.rel (%p263) target = $region44
      $region43: #{tpu_custom_call.1} parent=5 // pred_region
        _
      $region44: #{tpu_custom_call.1} parent=5 // pred_fallthru
        _
      %p266 = scmp.le.s32.totalorder 1, %s19
      %p267 = scmp.lt.s32.totalorder %s19, 5
      %p268 = pnand %p266, %p267
      %p269 = pneg %p268
      // Predicated region
      $region45: #{tpu_custom_call.1} parent=5 // pred_check
        _
      $region46: #{tpu_custom_call.1} parent=5 // pred_check_branch
        %271 = sbr.rel (%p268) target = $region48
      $region47: #{tpu_custom_call.1} parent=5 // pred_region
        %s272 = ssub.s32 %s19, 1
        // Predicated region
        $region49: #{tpu_custom_call.1} parent=47 // pred_check
          %p273 = pneg %p52
        $region50: #{tpu_custom_call.1} parent=47 // pred_check_branch
          %275 = sbr.rel (%p273) target = $region52
        $region51: #{tpu_custom_call.1} parent=47 // pred_region
          %276 = dma.done [#allocation6], 9216
        $region52: #{tpu_custom_call.1} parent=47 // pred_fallthru
          _
        // Predicated region
        $region53: #{tpu_custom_call.1} parent=47 // pred_check
          %p277 = pneg %p94
        $region54: #{tpu_custom_call.1} parent=47 // pred_check_branch
          %279 = sbr.rel (%p277) target = $region56
        $region55: #{tpu_custom_call.1} parent=47 // pred_region
          %280 = dma.done [#allocation9], 9216
        $region56: #{tpu_custom_call.1} parent=47 // pred_fallthru
          _
        %p281 = pneg %p52
        %p282 = pneg %p49
        %p283 = pneg %p73
        %p284 = pneg %p70
        %p285 = pneg %p94
        %p286 = pneg %p91
        %p287 = pneg %p115
        %p288 = pneg %p112
        %p289 = pneg %p136
        %p290 = pneg %p133
        %p291 = pneg %p157
        %p292 = pneg %p154
        %p293 = pneg %p178
        %p294 = pneg %p175
        %p295 = pneg %p206
        %p296 = pneg %p203
        %s297 = sand.u32 %s193, 1
        %s298 = scalar_lea.sflag [#allocation7], %s297
        %s299 = sand.u32 %s193, 1
        %s300 = smul.addr %s299, 128
        %s301 = scalar_lea.vmem [#allocation10], %s300
        %s302 = smul.u32 8, %s29
        %s304 = smul.u32 %s29, 8
        %p305 = scmp.lt.s32.totalorder %s29, 0
        %s306 = ssub.s32 0, %s29
        %s307 = scalar_select %p305, %s306, %s29
        %s308 = sand.u32 %s307, 1
        %s309 = ssub.s32 0, %s308
        %s310 = scalar_select %p305, %s309, %s308
        %p311 = scmp.ne.s32.totalorder %s310, 0
        %p312 = scmp.lt.s32.totalorder %s310, 0
        %p313 = pnand %p312, %p311
        %p314 = pneg %p313
        %s315 = sadd.s32 %s310, 2
        %s316 = scalar_select %p314, %s315, %s310
        %p317 = scmp.eq.s32.totalorder %s29, 0
        // Predicated region
        $region57: #{tpu_custom_call.1} parent=47 // pred_check
          %p318 = pneg %p317
        $region58: #{tpu_custom_call.1} parent=47 // pred_check_branch
          %320 = sbr.rel (%p318) target = $region60
        $region59: #{tpu_custom_call.1} parent=47 // pred_region
          %s321 = smul.u32 %s29, 160
          %s322 = sshra.s32 %s321, 3
          %s323 = sand.u32 %s321, 7
          %s324 = smul.u32 %s28, 55
          %s325 = sadd.s32 %s322, %s324
          %s326 = smul.addr %s325, 64
          %s327 = scalar_lea.hbm %s0, %s326
          %s328 = smul.u32 %s316, 35
          %s329 = smul.addr %s328, 4
          %s330 = scalar_lea.vmem [#allocation2], %s329
          %s331 = scalar_lea.sflag [#allocation4], %s316
          // Predicated region
          $region61: #{tpu_custom_call.1} parent=59 // pred_check
            _
          $region62: #{tpu_custom_call.1} parent=59 // pred_check_branch
            %333 = sbr.rel target = $region64
          $region63: #{tpu_custom_call.1} parent=59 // pred_region
            %334 = sst [smem:[#allocation13]] [#allocation12]
            %335 = sst [smem:[#allocation14]] [#allocation11]
          $region64: #{tpu_custom_call.1} parent=59 // pred_fallthru
            _
          %337 = shalt.err (0)
          %s339 = sshll.u32 %s330, 4
          %s340 = int_to_ptr.vmem [resolvable:$true] %s339
          %342 = dma.hbm_to_vmem [thread:$0]  %s327, 2240, %s340, %s331
        $region60: #{tpu_custom_call.1} parent=47 // pred_fallthru
          _
        %s343 = smul.u32 %s316, 35
        %s344 = smul.addr %s343, 4
        %s345 = scalar_lea.vmem [#allocation2], %s344
        %s346 = scalar_lea.sflag [#allocation4], %s316
        %s347 = smul.u32 4, 35
        %s348 = smul.u32 %s347, 1
        %s349 = sshll.u32 %s348, 4
        %350 = dma.done %s346, %s349
        %s351 = sadd.s32 %s29, 1
        %p352 = scmp.lt.s32.totalorder %s351, 2
        // Predicated region
        $region65: #{tpu_custom_call.1} parent=47 // pred_check
          %p353 = pneg %p352
        $region66: #{tpu_custom_call.1} parent=47 // pred_check_branch
          %355 = sbr.rel (%p353) target = $region68
        $region67: #{tpu_custom_call.1} parent=47 // pred_region
          %s356 = sadd.s32 %s304, 8
          %s357 = ssub.s32 1, %s316
          %s358 = smul.u32 %s356, 20
          %s359 = sshra.s32 %s358, 3
          %s360 = sand.u32 %s358, 7
          %s361 = smul.u32 %s28, 55
          %s362 = sadd.s32 %s359, %s361
          %s363 = smul.addr %s362, 64
          %s364 = scalar_lea.hbm %s0, %s363
          %s365 = smul.u32 %s357, 35
          %s366 = smul.addr %s365, 4
          %s367 = scalar_lea.vmem [#allocation2], %s366
          %s368 = scalar_lea.sflag [#allocation4], %s357
          // Predicated region
          $region69: #{tpu_custom_call.1} parent=67 // pred_check
            _
          $region70: #{tpu_custom_call.1} parent=67 // pred_check_branch
            %370 = sbr.rel target = $region72
          $region71: #{tpu_custom_call.1} parent=67 // pred_region
            %371 = sst [smem:[#allocation13]] [#allocation16]
            %372 = sst [smem:[#allocation14]] [#allocation15]
          $region72: #{tpu_custom_call.1} parent=67 // pred_fallthru
            _
          %374 = shalt.err (0)
          %s376 = sshll.u32 %s367, 4
          %s377 = int_to_ptr.vmem [resolvable:$true] %s376
          %379 = dma.hbm_to_vmem [thread:$0]  %s364, 2240, %s377, %s368
        $region68: #{tpu_custom_call.1} parent=47 // pred_fallthru
          _
        %v380 = vld [vmem:[%s345 + $0x8] sm:$0xf]
        %v381 = vld [vmem:[%s345 + $0xc] sm:$0xf]
        %v382 = vld [vmem:[%s345 + $0x10] sm:$0xf]
        %v383 = vld [vmem:[%s345 + $0x14] sm:$0xf]
        %v384 = vld [vmem:[%s345 + $0x18] sm:$0xf]
        %v385 = vld [vmem:[%s345 + $0x1c] sm:$0xf]
        %v386 = vld [vmem:[%s345 + $0x20] sm:$0xf]
        %v387 = vld [vmem:[%s345 + $0x24] sm:$0xf]
        %v388 = vld [vmem:[%s345 + $0x28] sm:$0xf]
        %v389 = vld [vmem:[%s345 + $0x2c] sm:$0xf]
        %v390 = vld [vmem:[%s345 + $0x30] sm:$0xf]
        %v391 = vld [vmem:[%s345 + $0x34] sm:$0xf]
        %v392 = vld [vmem:[%s345 + $0x38] sm:$0xf]
        %v393 = vld [vmem:[%s345 + $0x3c] sm:$0xf]
        %v394 = vld [vmem:[%s345 + $0x40] sm:$0xf]
        %v395 = vld [vmem:[%s345 + $0x44] sm:$0xf]
        %v396 = vld [vmem:[%s345 + $0x48] sm:$0xf]
        %v397 = vld [vmem:[%s345 + $0x4c] sm:$0xf]
        %v398 = vld [vmem:[%s345 + $0x50] sm:$0xf]
        %v399 = vld [vmem:[%s345 + $0x54] sm:$0xf]
        %v400 = vld [vmem:[%s345 + $0x58] sm:$0xf]
        %v401 = vld [vmem:[%s345 + $0x5c] sm:$0xf]
        %v402 = vld [vmem:[%s345 + $0x60] sm:$0xf]
        %v403 = vld [vmem:[%s345 + $0x64] sm:$0xf]
        %v404 = vld [vmem:[%s345 + $0x68] sm:$0xf]
        %v405 = vld [vmem:[%s345 + $0x6c] sm:$0xf]
        %v406 = vld [vmem:[%s345 + $0x70] sm:$0xf]
        %v407 = vld [vmem:[%s345 + $0x74] sm:$0xf]
        %v408 = vld [vmem:[%s345 + $0x78] sm:$0xf]
        %v409 = vld [vmem:[%s345 + $0x7c] sm:$0xf]
        %v410 = vld [vmem:[%s345 + $0x80] sm:$0xf]
        %v411 = vld [vmem:[#allocation5] sm:$0xf]
        %v412 = vld [vmem:[#allocation5 + $0x4] sm:$0xf]
        %v413 = vld [vmem:[#allocation5 + $0x8] sm:$0xf]
        %v414 = vld [vmem:[#allocation5 + $0xc] sm:$0xf]
        %v415 = vld [vmem:[#allocation5 + $0x10] sm:$0xf]
        %v416 = vld [vmem:[#allocation5 + $0x14] sm:$0xf]
        %v417 = vld [vmem:[#allocation5 + $0x18] sm:$0xf]
        %v418 = vld [vmem:[#allocation5 + $0x1c] sm:$0xf]
        %v419 = vld [vmem:[#allocation5 + $0x20] sm:$0xf]
        %v420 = vld [vmem:[#allocation5 + $0x24] sm:$0xf]
        %v421 = vld [vmem:[#allocation5 + $0x28] sm:$0xf]
        %v422 = vld [vmem:[#allocation5 + $0x2c] sm:$0xf]
        %v423 = vld [vmem:[#allocation5 + $0x30] sm:$0xf]
        %v424 = vld [vmem:[#allocation5 + $0x34] sm:$0xf]
        %v425 = vld [vmem:[#allocation5 + $0x38] sm:$0xf]
        %v426 = vld [vmem:[#allocation5 + $0x3c] sm:$0xf]
        %s427 = scalar_lea.vmem [#allocation5], 64
        %v428 = vld [vmem:[%s427] sm:$0xf]
        %v429 = vld [vmem:[%s427 + $0x4] sm:$0xf]
        %v430 = vld [vmem:[%s427 + $0x8] sm:$0xf]
        %v431 = vld [vmem:[%s427 + $0xc] sm:$0xf]
        %v432 = vld [vmem:[%s427 + $0x10] sm:$0xf]
        %v433 = vld [vmem:[%s427 + $0x14] sm:$0xf]
        %v434 = vld [vmem:[%s427 + $0x18] sm:$0xf]
        %v435 = vld [vmem:[%s427 + $0x1c] sm:$0xf]
        %v436 = vld [vmem:[%s427 + $0x20] sm:$0xf]
        %v437 = vld [vmem:[%s427 + $0x24] sm:$0xf]
        %v438 = vld [vmem:[%s427 + $0x28] sm:$0xf]
        %v439 = vld [vmem:[%s427 + $0x2c] sm:$0xf]
        %v440 = vld [vmem:[%s427 + $0x30] sm:$0xf]
        %v441 = vld [vmem:[%s427 + $0x34] sm:$0xf]
        %v442 = vld [vmem:[%s427 + $0x38] sm:$0xf]
        %v443 = vld [vmem:[%s427 + $0x3c] sm:$0xf]
        %v470 = vunpack.c.l.b16 %v380
        %v471 = vunpack.c.l.b16 %v381
        %v472 = vunpack.c.l.b16 %v382
        %v473 = vunpack.c.l.b16 %v383
        %v474 = vunpack.c.l.b16 %v384
        %v475 = vunpack.c.l.b16 %v385
        %v476 = vunpack.c.l.b16 %v386
        %v477 = vunpack.c.l.b16 %v387
        %v478 = vunpack.c.l.b16 %v388
        %v479 = vunpack.c.l.b16 %v389
        %v480 = vunpack.c.l.b16 %v390
        %v481 = vunpack.c.l.b16 %v391
        %v482 = vunpack.c.l.b16 %v392
        %v483 = vunpack.c.l.b16 %v393
        %v484 = vunpack.c.l.b16 %v394
        %v485 = vunpack.c.l.b16 %v395
        %v486 = vunpack.c.l.b16 %v396
        %v487 = vunpack.c.l.b16 %v397
        %v488 = vunpack.c.l.b16 %v398
        %v489 = vunpack.c.l.b16 %v399
        %v490 = vunpack.c.l.b16 %v400
        %v491 = vunpack.c.l.b16 %v401
        %v492 = vunpack.c.l.b16 %v402
        %v493 = vunpack.c.l.b16 %v403
        %v494 = vunpack.c.l.b16 %v404
        %v495 = vunpack.c.l.b16 %v405
        %v496 = vpack.c.b16 %v471, %v470
        %v497 = vpack.c.b16 %v473, %v472
        %v498 = vpack.c.b16 %v475, %v474
        %v499 = vpack.c.b16 %v477, %v476
        %v500 = vpack.c.b16 %v479, %v478
        %v501 = vpack.c.b16 %v481, %v480
        %v502 = vpack.c.b16 %v483, %v482
        %v503 = vpack.c.b16 %v485, %v484
        %v504 = vpack.c.b16 %v487, %v486
        %v505 = vpack.c.b16 %v489, %v488
        %v506 = vpack.c.b16 %v491, %v490
        %v507 = vpack.c.b16 %v493, %v492
        %v508 = vpack.c.b16 %v495, %v494
        %vm509 = vcmask 1045504
        %v510 = vrot.slane %v496, 2
        %v511 = vrot.slane %v497, 2
        %v512 = vsel %vm509, %v510, %v511
        %v513 = vrot.slane %v498, 2
        %v514 = vsel %vm509, %v511, %v513
        %v515 = vrot.slane %v499, 2
        %v516 = vsel %vm509, %v513, %v515
        %v517 = vrot.slane %v500, 2
        %v518 = vsel %vm509, %v515, %v517
        %v519 = vrot.slane %v501, 2
        %v520 = vsel %vm509, %v517, %v519
        %v521 = vrot.slane %v502, 2
        %v522 = vsel %vm509, %v519, %v521
        %v523 = vrot.slane %v503, 2
        %v524 = vsel %vm509, %v521, %v523
        %v525 = vrot.slane %v504, 2
        %v526 = vsel %vm509, %v523, %v525
        %v527 = vrot.slane %v505, 2
        %v528 = vsel %vm509, %v525, %v527
        %v529 = vrot.slane %v506, 2
        %v530 = vsel %vm509, %v527, %v529
        %v531 = vrot.slane %v507, 2
        %v532 = vsel %vm509, %v529, %v531
        %v533 = vrot.slane %v508, 2
        %v534 = vsel %vm509, %v531, %v533
        %v564 = vunpack.c.l.b16 %v428
        %v565 = vunpack.c.l.b16 %v429
        %v566 = vunpack.c.l.b16 %v430
        %v567 = vunpack.c.l.b16 %v431
        %v568 = vunpack.c.l.b16 %v432
        %v569 = vunpack.c.l.b16 %v433
        %v570 = vunpack.c.l.b16 %v434
        %v571 = vunpack.c.l.b16 %v435
        %v572 = vunpack.c.l.b16 %v436
        %v573 = vunpack.c.l.b16 %v437
        %v574 = vunpack.c.l.b16 %v438
        %v575 = vunpack.c.l.b16 %v439
        %v576 = vunpack.c.l.b16 %v440
        %v577 = vunpack.c.l.b16 %v441
        %v578 = vunpack.c.l.b16 %v442
        %v579 = vunpack.c.l.b16 %v443
        %v580 = vpack.c.b16 %v565, %v564
        %v581 = vpack.c.b16 %v567, %v566
        %v582 = vpack.c.b16 %v569, %v568
        %v583 = vpack.c.b16 %v571, %v570
        %v584 = vpack.c.b16 %v573, %v572
        %v585 = vpack.c.b16 %v575, %v574
        %v586 = vpack.c.b16 %v577, %v576
        %v587 = vpack.c.b16 %v579, %v578
        %596 = vmatprep.subr.bf16.mxu0 0
        %597 = vmatpush1.bf16.msra.mxu0 %v580
        %598 = vmatprep.subr.bf16.mxu0 0
        %599 = vmatpush1.bf16.msra.mxu0 %v581
        %600 = vmatprep.subr.bf16.mxu0 0
        %601 = vmatpush1.bf16.msra.mxu0 %v582
        %602 = vmatprep.subr.bf16.mxu0 0
        %603 = vmatpush1.bf16.msra.mxu0 %v583
        %604 = vmatprep.subr.bf16.mxu0 0
        %605 = vmatpush1.bf16.msra.mxu0 %v584
        %606 = vmatprep.subr.bf16.mxu0 0
        %607 = vmatpush1.bf16.msra.mxu0 %v585
        %608 = vmatprep.subr.bf16.mxu0 0
        %609 = vmatpush1.bf16.msra.mxu0 %v586
        %610 = vmatprep.subr.bf16.mxu0 0
        %611 = vmatpush1.bf16.msra.mxu0 %v587
        %612 = vmatprep.subr.bf16.mxu0 0
        %613 = vmatpush1.bf16.msra.mxu0 0
        %614 = vmatprep.subr.bf16.mxu0 0
        %615 = vmatpush1.bf16.msra.mxu0 0
        %616 = vmatprep.subr.bf16.mxu0 0
        %617 = vmatpush1.bf16.msra.mxu0 0
        %618 = vmatprep.subr.bf16.mxu0 0
        %619 = vmatpush1.bf16.msra.mxu0 0
        %620 = vmatprep.subr.bf16.mxu0 0
        %621 = vmatpush1.bf16.msra.mxu0 0
        %622 = vmatprep.subr.bf16.mxu0 0
        %623 = vmatpush1.bf16.msra.mxu0 0
        %624 = vmatprep.subr.bf16.mxu0 0
        %625 = vmatpush1.bf16.msra.mxu0 0
        %626 = vmatprep.subr.bf16.mxu0 0
        %627 = vmatpush1.bf16.msra.mxu0 0
        %628 = vmatprep.mubr.bf16.mxu0 0
        %629 = vmatmul.mubr.bf16.gmra.mrb[0].mxu0 %v512
        %v630 = vpop.f32.mrb[0].mxu0
        %v631 = vadd.f32 0.0, %v630
        %v632 = vpop.f32.mrb[0].mxu0
        %v633 = vpop.f32.mrb[0].mxu0
        %v634 = vadd.f32 0.0, %v633
        %v635 = vpop.f32.mrb[0].mxu0
        %636 = vmatprep.mubr.bf16.mxu0 0
        %637 = vmatmul.mubr.bf16.gmra.mrb[0].mxu0 %v514
        %v638 = vpop.f32.mrb[0].mxu0
        %v639 = vadd.f32 0.0, %v638
        %v640 = vpop.f32.mrb[0].mxu0
        %v641 = vpop.f32.mrb[0].mxu0
        %v642 = vadd.f32 0.0, %v641
        %v643 = vpop.f32.mrb[0].mxu0
        %644 = vmatprep.mubr.bf16.mxu0 0
        %645 = vmatmul.mubr.bf16.gmra.mrb[0].mxu0 %v516
        %v646 = vpop.f32.mrb[0].mxu0
        %v647 = vadd.f32 0.0, %v646
        %v648 = vpop.f32.mrb[0].mxu0
        %v649 = vpop.f32.mrb[0].mxu0
        %v650 = vadd.f32 0.0, %v649
        %v651 = vpop.f32.mrb[0].mxu0
        %652 = vmatprep.mubr.bf16.mxu0 0
        %653 = vmatmul.mubr.bf16.gmra.mrb[0].mxu0 %v518
        %v654 = vpop.f32.mrb[0].mxu0
        %v655 = vadd.f32 0.0, %v654
        %v656 = vpop.f32.mrb[0].mxu0
        %v657 = vpop.f32.mrb[0].mxu0
        %v658 = vadd.f32 0.0, %v657
        %v659 = vpop.f32.mrb[0].mxu0
        %660 = vmatprep.mubr.bf16.mxu0 0
        %661 = vmatmul.mubr.bf16.gmra.mrb[0].mxu0 %v520
        %v662 = vpop.f32.mrb[0].mxu0
        %v663 = vadd.f32 0.0, %v662
        %v664 = vpop.f32.mrb[0].mxu0
        %v665 = vpop.f32.mrb[0].mxu0
        %v666 = vadd.f32 0.0, %v665
        %v667 = vpop.f32.mrb[0].mxu0
        %668 = vmatprep.mubr.bf16.mxu0 0
        %669 = vmatmul.mubr.bf16.gmra.mrb[0].mxu0 %v522
        %v670 = vpop.f32.mrb[0].mxu0
        %v671 = vadd.f32 0.0, %v670
        %v672 = vpop.f32.mrb[0].mxu0
        %v673 = vpop.f32.mrb[0].mxu0
        %v674 = vadd.f32 0.0, %v673
        %v675 = vpop.f32.mrb[0].mxu0
        %676 = vmatprep.mubr.bf16.mxu0 0
        %677 = vmatmul.mubr.bf16.gmra.mrb[0].mxu0 %v524
        %v678 = vpop.f32.mrb[0].mxu0
        %v679 = vadd.f32 0.0, %v678
        %v680 = vpop.f32.mrb[0].mxu0
        %v681 = vpop.f32.mrb[0].mxu0
        %v682 = vadd.f32 0.0, %v681
        %v683 = vpop.f32.mrb[0].mxu0
        %684 = vmatprep.mubr.bf16.mxu0 0
        %685 = vmatmul.mubr.bf16.gmra.mrb[0].mxu0 %v526
        %v686 = vpop.f32.mrb[0].mxu0
        %v687 = vadd.f32 0.0, %v686
        %v688 = vpop.f32.mrb[0].mxu0
        %v689 = vpop.f32.mrb[0].mxu0
        %v690 = vadd.f32 0.0, %v689
        %v691 = vpop.f32.mrb[0].mxu0
        %692 = vmatprep.mubr.bf16.mxu0 0
        %693 = vmatmul.mubr.bf16.gmra.mrb[0].mxu0 %v528
        %v694 = vpop.f32.mrb[0].mxu0
        %v695 = vadd.f32 0.0, %v694
        %v696 = vpop.f32.mrb[0].mxu0
        %v697 = vpop.f32.mrb[0].mxu0
        %v698 = vadd.f32 0.0, %v697
        %v699 = vpop.f32.mrb[0].mxu0
        %700 = vmatprep.mubr.bf16.mxu0 0
        %701 = vmatmul.mubr.bf16.gmra.mrb[0].mxu0 %v530
        %v702 = vpop.f32.mrb[0].mxu0
        %v703 = vadd.f32 0.0, %v702
        %v704 = vpop.f32.mrb[0].mxu0
        %v705 = vpop.f32.mrb[0].mxu0
        %v706 = vadd.f32 0.0, %v705
        %v707 = vpop.f32.mrb[0].mxu0
        %708 = vmatprep.mubr.bf16.mxu0 0
        %709 = vmatmul.mubr.bf16.gmra.mrb[0].mxu0 %v532
        %v710 = vpop.f32.mrb[0].mxu0
        %v711 = vadd.f32 0.0, %v710
        %v712 = vpop.f32.mrb[0].mxu0
        %v713 = vpop.f32.mrb[0].mxu0
        %v714 = vadd.f32 0.0, %v713
        %v715 = vpop.f32.mrb[0].mxu0
        %716 = vmatprep.mubr.bf16.mxu0 0
        %717 = vmatmul.mubr.bf16.gmra.mrb[0].mxu0 %v534
        %v718 = vpop.f32.mrb[0].mxu0
        %v719 = vadd.f32 0.0, %v718
        %v720 = vpop.f32.mrb[0].mxu0
        %v721 = vpop.f32.mrb[0].mxu0
        %v722 = vadd.f32 0.0, %v721
        %v723 = vpop.f32.mrb[0].mxu0
        %724 = vmatprep.mubr.bf16.mxu0 0
        %725 = vmatmul.mubr.bf16.gmra.mrb[0].mxu0 %v533
        %v726 = vpop.f32.mrb[0].mxu0
        %v727 = vadd.f32 0.0, %v726
        %v728 = vpop.f32.mrb[0].mxu0
        %v729 = vpop.f32.mrb[0].mxu0
        %v730 = vpop.f32.mrb[0].mxu0
        %731 = vdwg.mxu0
        %vm732 = vsmask.f32 6400
        %v734 = vshrl.u32 %v496, 16
        %v736 = vrot.slane %v734, 1
        %v737 = vshll.u32 %v496, 16
        %v739 = vrot.slane %v737, 2
        %v740 = vor.u32 %v736, %v739
        %v742 = vshrl.u32 %v497, 16
        %v744 = vrot.slane %v742, 1
        %v745 = vshll.u32 %v497, 16
        %v747 = vrot.slane %v745, 2
        %v748 = vor.u32 %v744, %v747
        %v749 = vsel %vm732, %v740, %v748
        %v751 = vshrl.u32 %v498, 16
        %v753 = vrot.slane %v751, 1
        %v754 = vshll.u32 %v498, 16
        %v756 = vrot.slane %v754, 2
        %v757 = vor.u32 %v753, %v756
        %v758 = vsel %vm732, %v748, %v757
        %v760 = vshrl.u32 %v499, 16
        %v762 = vrot.slane %v760, 1
        %v763 = vshll.u32 %v499, 16
        %v765 = vrot.slane %v763, 2
        %v766 = vor.u32 %v762, %v765
        %v767 = vsel %vm732, %v757, %v766
        %v769 = vshrl.u32 %v500, 16
        %v771 = vrot.slane %v769, 1
        %v772 = vshll.u32 %v500, 16
        %v774 = vrot.slane %v772, 2
        %v775 = vor.u32 %v771, %v774
        %v776 = vsel %vm732, %v766, %v775
        %v778 = vshrl.u32 %v501, 16
        %v780 = vrot.slane %v778, 1
        %v781 = vshll.u32 %v501, 16
        %v783 = vrot.slane %v781, 2
        %v784 = vor.u32 %v780, %v783
        %v785 = vsel %vm732, %v775, %v784
        %v787 = vshrl.u32 %v502, 16
        %v789 = vrot.slane %v787, 1
        %v790 = vshll.u32 %v502, 16
        %v792 = vrot.slane %v790, 2
        %v793 = vor.u32 %v789, %v792
        %v794 = vsel %vm732, %v784, %v793
        %v796 = vshrl.u32 %v503, 16
        %v798 = vrot.slane %v796, 1
        %v799 = vshll.u32 %v503, 16
        %v801 = vrot.slane %v799, 2
        %v802 = vor.u32 %v798, %v801
        %v803 = vsel %vm732, %v793, %v802
        %v805 = vshrl.u32 %v504, 16
        %v807 = vrot.slane %v805, 1
        %v808 = vshll.u32 %v504, 16
        %v810 = vrot.slane %v808, 2
        %v811 = vor.u32 %v807, %v810
        %v812 = vsel %vm732, %v802, %v811
        %v814 = vshrl.u32 %v505, 16
        %v816 = vrot.slane %v814, 1
        %v817 = vshll.u32 %v505, 16
        %v819 = vrot.slane %v817, 2
        %v820 = vor.u32 %v816, %v819
        %v821 = vsel %vm732, %v811, %v820
        %v823 = vshrl.u32 %v506, 16
        %v825 = vrot.slane %v823, 1
        %v826 = vshll.u32 %v506, 16
        %v828 = vrot.slane %v826, 2
        %v829 = vor.u32 %v825, %v828
        %v830 = vsel %vm732, %v820, %v829
        %v832 = vshrl.u32 %v507, 16
        %v834 = vrot.slane %v832, 1
        %v835 = vshll.u32 %v507, 16
        %v837 = vrot.slane %v835, 2
        %v838 = vor.u32 %v834, %v837
        %v839 = vsel %vm732, %v829, %v838
        %v841 = vshrl.u32 %v508, 16
        %v843 = vrot.slane %v841, 1
        %v844 = vshll.u32 %v508, 16
        %v846 = vrot.slane %v844, 2
        %v847 = vor.u32 %v843, %v846
        %v848 = vsel %vm732, %v838, %v847
        %v878 = vunpack.c.l.b16 %v411
        %v879 = vunpack.c.l.b16 %v412
        %v880 = vunpack.c.l.b16 %v413
        %v881 = vunpack.c.l.b16 %v414
        %v882 = vunpack.c.l.b16 %v415
        %v883 = vunpack.c.l.b16 %v416
        %v884 = vunpack.c.l.b16 %v417
        %v885 = vunpack.c.l.b16 %v418
        %v886 = vunpack.c.l.b16 %v419
        %v887 = vunpack.c.l.b16 %v420
        %v888 = vunpack.c.l.b16 %v421
        %v889 = vunpack.c.l.b16 %v422
        %v890 = vunpack.c.l.b16 %v423
        %v891 = vunpack.c.l.b16 %v424
        %v892 = vunpack.c.l.b16 %v425
        %v893 = vunpack.c.l.b16 %v426
        %v894 = vpack.c.b16 %v879, %v878
        %v895 = vpack.c.b16 %v881, %v880
        %v896 = vpack.c.b16 %v883, %v882
        %v897 = vpack.c.b16 %v885, %v884
        %v898 = vpack.c.b16 %v887, %v886
        %v899 = vpack.c.b16 %v889, %v888
        %v900 = vpack.c.b16 %v891, %v890
        %v901 = vpack.c.b16 %v893, %v892
        %910 = vmatprep.subr.bf16.mxu0 0
        %911 = vmatpush1.bf16.msra.mxu0 %v894
        %912 = vmatprep.subr.bf16.mxu0 0
        %913 = vmatpush1.bf16.msra.mxu0 %v895
        %914 = vmatprep.subr.bf16.mxu0 0
        %915 = vmatpush1.bf16.msra.mxu0 %v896
        %916 = vmatprep.subr.bf16.mxu0 0
        %917 = vmatpush1.bf16.msra.mxu0 %v897
        %918 = vmatprep.subr.bf16.mxu0 0
        %919 = vmatpush1.bf16.msra.mxu0 %v898
        %920 = vmatprep.subr.bf16.mxu0 0
        %921 = vmatpush1.bf16.msra.mxu0 %v899
        %922 = vmatprep.subr.bf16.mxu0 0
        %923 = vmatpush1.bf16.msra.mxu0 %v900
        %924 = vmatprep.subr.bf16.mxu0 0
        %925 = vmatpush1.bf16.msra.mxu0 %v901
        %926 = vmatprep.subr.bf16.mxu0 0
        %927 = vmatpush1.bf16.msra.mxu0 0
        %928 = vmatprep.subr.bf16.mxu0 0
        %929 = vmatpush1.bf16.msra.mxu0 0
        %930 = vmatprep.subr.bf16.mxu0 0
        %931 = vmatpush1.bf16.msra.mxu0 0
        %932 = vmatprep.subr.bf16.mxu0 0
        %933 = vmatpush1.bf16.msra.mxu0 0
        %934 = vmatprep.subr.bf16.mxu0 0
        %935 = vmatpush1.bf16.msra.mxu0 0
        %936 = vmatprep.subr.bf16.mxu0 0
        %937 = vmatpush1.bf16.msra.mxu0 0
        %938 = vmatprep.subr.bf16.mxu0 0
        %939 = vmatpush1.bf16.msra.mxu0 0
        %940 = vmatprep.subr.bf16.mxu0 0
        %941 = vmatpush1.bf16.msra.mxu0 0
        %942 = vmatprep.mubr.bf16.mxu0 0
        %943 = vmatmul.mubr.bf16.gmra.mrb[0].mxu0 %v749
        %v944 = vpop.f32.mrb[0].mxu0
        %v945 = vadd.f32 %v631, %v944
        %v946 = vpop.f32.mrb[0].mxu0
        %v947 = vpop.f32.mrb[0].mxu0
        %v948 = vadd.f32 %v634, %v947
        %v949 = vpop.f32.mrb[0].mxu0
        %950 = vmatprep.mubr.bf16.mxu0 0
        %951 = vmatmul.mubr.bf16.gmra.mrb[0].mxu0 %v758
        %v952 = vpop.f32.mrb[0].mxu0
        %v953 = vadd.f32 %v639, %v952
        %v954 = vpop.f32.mrb[0].mxu0
        %v955 = vpop.f32.mrb[0].mxu0
        %v956 = vadd.f32 %v642, %v955
        %v957 = vpop.f32.mrb[0].mxu0
        %958 = vmatprep.mubr.bf16.mxu0 0
        %959 = vmatmul.mubr.bf16.gmra.mrb[0].mxu0 %v767
        %v960 = vpop.f32.mrb[0].mxu0
        %v961 = vadd.f32 %v647, %v960
        %v962 = vpop.f32.mrb[0].mxu0
        %v963 = vpop.f32.mrb[0].mxu0
        %v964 = vadd.f32 %v650, %v963
        %v965 = vpop.f32.mrb[0].mxu0
        %966 = vmatprep.mubr.bf16.mxu0 0
        %967 = vmatmul.mubr.bf16.gmra.mrb[0].mxu0 %v776
        %v968 = vpop.f32.mrb[0].mxu0
        %v969 = vadd.f32 %v655, %v968
        %v970 = vpop.f32.mrb[0].mxu0
        %v971 = vpop.f32.mrb[0].mxu0
        %v972 = vadd.f32 %v658, %v971
        %v973 = vpop.f32.mrb[0].mxu0
        %974 = vmatprep.mubr.bf16.mxu0 0
        %975 = vmatmul.mubr.bf16.gmra.mrb[0].mxu0 %v785
        %v976 = vpop.f32.mrb[0].mxu0
        %v977 = vadd.f32 %v663, %v976
        %v978 = vpop.f32.mrb[0].mxu0
        %v979 = vpop.f32.mrb[0].mxu0
        %v980 = vadd.f32 %v666, %v979
        %v981 = vpop.f32.mrb[0].mxu0
        %982 = vmatprep.mubr.bf16.mxu0 0
        %983 = vmatmul.mubr.bf16.gmra.mrb[0].mxu0 %v794
        %v984 = vpop.f32.mrb[0].mxu0
        %v985 = vadd.f32 %v671, %v984
        %v986 = vpop.f32.mrb[0].mxu0
        %v987 = vpop.f32.mrb[0].mxu0
        %v988 = vadd.f32 %v674, %v987
        %v989 = vpop.f32.mrb[0].mxu0
        %990 = vmatprep.mubr.bf16.mxu0 0
        %991 = vmatmul.mubr.bf16.gmra.mrb[0].mxu0 %v803
        %v992 = vpop.f32.mrb[0].mxu0
        %v993 = vadd.f32 %v679, %v992
        %v994 = vpop.f32.mrb[0].mxu0
        %v995 = vpop.f32.mrb[0].mxu0
        %v996 = vadd.f32 %v682, %v995
        %v997 = vpop.f32.mrb[0].mxu0
        %998 = vmatprep.mubr.bf16.mxu0 0
        %999 = vmatmul.mubr.bf16.gmra.mrb[0].mxu0 %v812
        %v1000 = vpop.f32.mrb[0].mxu0
        %v1001 = vadd.f32 %v687, %v1000
        %v1002 = vpop.f32.mrb[0].mxu0
        %v1003 = vpop.f32.mrb[0].mxu0
        %v1004 = vadd.f32 %v690, %v1003
        %v1005 = vpop.f32.mrb[0].mxu0
        %1006 = vmatprep.mubr.bf16.mxu0 0
        %1007 = vmatmul.mubr.bf16.gmra.mrb[0].mxu0 %v821
        %v1008 = vpop.f32.mrb[0].mxu0
        %v1009 = vadd.f32 %v695, %v1008
        %v1010 = vpop.f32.mrb[0].mxu0
        %v1011 = vpop.f32.mrb[0].mxu0
        %v1012 = vadd.f32 %v698, %v1011
        %v1013 = vpop.f32.mrb[0].mxu0
        %1014 = vmatprep.mubr.bf16.mxu0 0
        %1015 = vmatmul.mubr.bf16.gmra.mrb[0].mxu0 %v830
        %v1016 = vpop.f32.mrb[0].mxu0
        %v1017 = vadd.f32 %v703, %v1016
        %v1018 = vpop.f32.mrb[0].mxu0
        %v1019 = vpop.f32.mrb[0].mxu0
        %v1020 = vadd.f32 %v706, %v1019
        %v1021 = vpop.f32.mrb[0].mxu0
        %1022 = vmatprep.mubr.bf16.mxu0 0
        %1023 = vmatmul.mubr.bf16.gmra.mrb[0].mxu0 %v839
        %v1024 = vpop.f32.mrb[0].mxu0
        %v1025 = vadd.f32 %v711, %v1024
        %v1026 = vpop.f32.mrb[0].mxu0
        %v1027 = vpop.f32.mrb[0].mxu0
        %v1028 = vadd.f32 %v714, %v1027
        %v1029 = vpop.f32.mrb[0].mxu0
        %1030 = vmatprep.mubr.bf16.mxu0 0
        %1031 = vmatmul.mubr.bf16.gmra.mrb[0].mxu0 %v848
        %v1032 = vpop.f32.mrb[0].mxu0
        %v1033 = vadd.f32 %v719, %v1032
        %v1034 = vpop.f32.mrb[0].mxu0
        %v1035 = vpop.f32.mrb[0].mxu0
        %v1036 = vadd.f32 %v722, %v1035
        %v1037 = vpop.f32.mrb[0].mxu0
        %1038 = vmatprep.mubr.bf16.mxu0 0
        %1039 = vmatmul.mubr.bf16.gmra.mrb[0].mxu0 %v847
        %v1040 = vpop.f32.mrb[0].mxu0
        %v1041 = vadd.f32 %v727, %v1040
        %v1042 = vpop.f32.mrb[0].mxu0
        %v1043 = vpop.f32.mrb[0].mxu0
        %v1044 = vpop.f32.mrb[0].mxu0
        %1045 = vdwg.mxu0
        %s1046 = scalar_lea.vmem [#allocation5], 128
        %v1047 = vld [vmem:[%s1046] sm:$0xf]
        %v1048 = vld [vmem:[%s1046 + $0x4] sm:$0xf]
        %v1049 = vld [vmem:[%s1046 + $0x8] sm:$0xf]
        %v1050 = vld [vmem:[%s1046 + $0xc] sm:$0xf]
        %v1051 = vld [vmem:[%s1046 + $0x10] sm:$0xf]
        %v1052 = vld [vmem:[%s1046 + $0x14] sm:$0xf]
        %v1053 = vld [vmem:[%s1046 + $0x18] sm:$0xf]
        %v1054 = vld [vmem:[%s1046 + $0x1c] sm:$0xf]
        %v1055 = vld [vmem:[%s1046 + $0x20] sm:$0xf]
        %v1056 = vld [vmem:[%s1046 + $0x24] sm:$0xf]
        %v1057 = vld [vmem:[%s1046 + $0x28] sm:$0xf]
        %v1058 = vld [vmem:[%s1046 + $0x2c] sm:$0xf]
        %v1059 = vld [vmem:[%s1046 + $0x30] sm:$0xf]
        %v1060 = vld [vmem:[%s1046 + $0x34] sm:$0xf]
        %v1061 = vld [vmem:[%s1046 + $0x38] sm:$0xf]
        %v1062 = vld [vmem:[%s1046 + $0x3c] sm:$0xf]
        %vm1063 = vsmask.f32 5376
        %v1064 = vrot.slane %v734, 2
        %v1065 = vrot.slane %v737, 3
        %v1066 = vor.u32 %v1064, %v1065
        %v1067 = vrot.slane %v742, 2
        %v1068 = vrot.slane %v745, 3
        %v1069 = vor.u32 %v1067, %v1068
        %v1070 = vsel %vm1063, %v1066, %v1069
        %v1071 = vrot.slane %v751, 2
        %v1072 = vrot.slane %v754, 3
        %v1073 = vor.u32 %v1071, %v1072
        %v1074 = vsel %vm1063, %v1069, %v1073
        %v1075 = vrot.slane %v760, 2
        %v1076 = vrot.slane %v763, 3
        %v1077 = vor.u32 %v1075, %v1076
        %v1078 = vsel %vm1063, %v1073, %v1077
        %v1079 = vrot.slane %v769, 2
        %v1080 = vrot.slane %v772, 3
        %v1081 = vor.u32 %v1079, %v1080
        %v1082 = vsel %vm1063, %v1077, %v1081
        %v1083 = vrot.slane %v778, 2
        %v1084 = vrot.slane %v781, 3
        %v1085 = vor.u32 %v1083, %v1084
        %v1086 = vsel %vm1063, %v1081, %v1085
        %v1087 = vrot.slane %v787, 2
        %v1088 = vrot.slane %v790, 3
        %v1089 = vor.u32 %v1087, %v1088
        %v1090 = vsel %vm1063, %v1085, %v1089
        %v1091 = vrot.slane %v796, 2
        %v1092 = vrot.slane %v799, 3
        %v1093 = vor.u32 %v1091, %v1092
        %v1094 = vsel %vm1063, %v1089, %v1093
        %v1095 = vrot.slane %v805, 2
        %v1096 = vrot.slane %v808, 3
        %v1097 = vor.u32 %v1095, %v1096
        %v1098 = vsel %vm1063, %v1093, %v1097
        %v1099 = vrot.slane %v814, 2
        %v1100 = vrot.slane %v817, 3
        %v1101 = vor.u32 %v1099, %v1100
        %v1102 = vsel %vm1063, %v1097, %v1101
        %v1103 = vrot.slane %v823, 2
        %v1104 = vrot.slane %v826, 3
        %v1105 = vor.u32 %v1103, %v1104
        %v1106 = vsel %vm1063, %v1101, %v1105
        %v1107 = vrot.slane %v832, 2
        %v1108 = vrot.slane %v835, 3
        %v1109 = vor.u32 %v1107, %v1108
        %v1110 = vsel %vm1063, %v1105, %v1109
        %v1111 = vrot.slane %v841, 2
        %v1112 = vrot.slane %v844, 3
        %v1113 = vor.u32 %v1111, %v1112
        %v1114 = vsel %vm1063, %v1109, %v1113
        %v1144 = vunpack.c.l.b16 %v1047
        %v1145 = vunpack.c.l.b16 %v1048
        %v1146 = vunpack.c.l.b16 %v1049
        %v1147 = vunpack.c.l.b16 %v1050
        %v1148 = vunpack.c.l.b16 %v1051
        %v1149 = vunpack.c.l.b16 %v1052
        %v1150 = vunpack.c.l.b16 %v1053
        %v1151 = vunpack.c.l.b16 %v1054
        %v1152 = vunpack.c.l.b16 %v1055
        %v1153 = vunpack.c.l.b16 %v1056
        %v1154 = vunpack.c.l.b16 %v1057
        %v1155 = vunpack.c.l.b16 %v1058
        %v1156 = vunpack.c.l.b16 %v1059
        %v1157 = vunpack.c.l.b16 %v1060
        %v1158 = vunpack.c.l.b16 %v1061
        %v1159 = vunpack.c.l.b16 %v1062
        %v1160 = vpack.c.b16 %v1145, %v1144
        %v1161 = vpack.c.b16 %v1147, %v1146
        %v1162 = vpack.c.b16 %v1149, %v1148
        %v1163 = vpack.c.b16 %v1151, %v1150
        %v1164 = vpack.c.b16 %v1153, %v1152
        %v1165 = vpack.c.b16 %v1155, %v1154
        %v1166 = vpack.c.b16 %v1157, %v1156
        %v1167 = vpack.c.b16 %v1159, %v1158
        %1176 = vmatprep.subr.bf16.mxu0 0
        %1177 = vmatpush1.bf16.msra.mxu0 %v1160
        %1178 = vmatprep.subr.bf16.mxu0 0
        %1179 = vmatpush1.bf16.msra.mxu0 %v1161
        %1180 = vmatprep.subr.bf16.mxu0 0
        %1181 = vmatpush1.bf16.msra.mxu0 %v1162
        %1182 = vmatprep.subr.bf16.mxu0 0
        %1183 = vmatpush1.bf16.msra.mxu0 %v1163
        %1184 = vmatprep.subr.bf16.mxu0 0
        %1185 = vmatpush1.bf16.msra.mxu0 %v1164
        %1186 = vmatprep.subr.bf16.mxu0 0
        %1187 = vmatpush1.bf16.msra.mxu0 %v1165
        %1188 = vmatprep.subr.bf16.mxu0 0
        %1189 = vmatpush1.bf16.msra.mxu0 %v1166
        %1190 = vmatprep.subr.bf16.mxu0 0
        %1191 = vmatpush1.bf16.msra.mxu0 %v1167
        %1192 = vmatprep.subr.bf16.mxu0 0
        %1193 = vmatpush1.bf16.msra.mxu0 0
        %1194 = vmatprep.subr.bf16.mxu0 0
        %1195 = vmatpush1.bf16.msra.mxu0 0
        %1196 = vmatprep.subr.bf16.mxu0 0
        %1197 = vmatpush1.bf16.msra.mxu0 0
        %1198 = vmatprep.subr.bf16.mxu0 0
        %1199 = vmatpush1.bf16.msra.mxu0 0
        %1200 = vmatprep.subr.bf16.mxu0 0
        %1201 = vmatpush1.bf16.msra.mxu0 0
        %1202 = vmatprep.subr.bf16.mxu0 0
        %1203 = vmatpush1.bf16.msra.mxu0 0
        %1204 = vmatprep.subr.bf16.mxu0 0
        %1205 = vmatpush1.bf16.msra.mxu0 0
        %1206 = vmatprep.subr.bf16.mxu0 0
        %1207 = vmatpush1.bf16.msra.mxu0 0
        %1208 = vmatprep.mubr.bf16.mxu0 0
        %1209 = vmatmul.mubr.bf16.gmra.mrb[0].mxu0 %v1070
        %v1210 = vpop.f32.mrb[0].mxu0
        %v1211 = vadd.f32 0.0, %v1210
        %v1212 = vpop.f32.mrb[0].mxu0
        %v1213 = vpop.f32.mrb[0].mxu0
        %v1214 = vadd.f32 0.0, %v1213
        %v1215 = vpop.f32.mrb[0].mxu0
        %1216 = vmatprep.mubr.bf16.mxu0 0
        %1217 = vmatmul.mubr.bf16.gmra.mrb[0].mxu0 %v1074
        %v1218 = vpop.f32.mrb[0].mxu0
        %v1219 = vadd.f32 0.0, %v1218
        %v1220 = vpop.f32.mrb[0].mxu0
        %v1221 = vpop.f32.mrb[0].mxu0
        %v1222 = vadd.f32 0.0, %v1221
        %v1223 = vpop.f32.mrb[0].mxu0
        %1224 = vmatprep.mubr.bf16.mxu0 0
        %1225 = vmatmul.mubr.bf16.gmra.mrb[0].mxu0 %v1078
        %v1226 = vpop.f32.mrb[0].mxu0
        %v1227 = vadd.f32 0.0, %v1226
        %v1228 = vpop.f32.mrb[0].mxu0
        %v1229 = vpop.f32.mrb[0].mxu0
        %v1230 = vadd.f32 0.0, %v1229
        %v1231 = vpop.f32.mrb[0].mxu0
        %1232 = vmatprep.mubr.bf16.mxu0 0
        %1233 = vmatmul.mubr.bf16.gmra.mrb[0].mxu0 %v1082
        %v1234 = vpop.f32.mrb[0].mxu0
        %v1235 = vadd.f32 0.0, %v1234
        %v1236 = vpop.f32.mrb[0].mxu0
        %v1237 = vpop.f32.mrb[0].mxu0
        %v1238 = vadd.f32 0.0, %v1237
        %v1239 = vpop.f32.mrb[0].mxu0
        %1240 = vmatprep.mubr.bf16.mxu0 0
        %1241 = vmatmul.mubr.bf16.gmra.mrb[0].mxu0 %v1086
        %v1242 = vpop.f32.mrb[0].mxu0
        %v1243 = vadd.f32 0.0, %v1242
        %v1244 = vpop.f32.mrb[0].mxu0
        %v1245 = vpop.f32.mrb[0].mxu0
        %v1246 = vadd.f32 0.0, %v1245
        %v1247 = vpop.f32.mrb[0].mxu0
        %1248 = vmatprep.mubr.bf16.mxu0 0
        %1249 = vmatmul.mubr.bf16.gmra.mrb[0].mxu0 %v1090
        %v1250 = vpop.f32.mrb[0].mxu0
        %v1251 = vadd.f32 0.0, %v1250
        %v1252 = vpop.f32.mrb[0].mxu0
        %v1253 = vpop.f32.mrb[0].mxu0
        %v1254 = vadd.f32 0.0, %v1253
        %v1255 = vpop.f32.mrb[0].mxu0
        %1256 = vmatprep.mubr.bf16.mxu0 0
        %1257 = vmatmul.mubr.bf16.gmra.mrb[0].mxu0 %v1094
        %v1258 = vpop.f32.mrb[0].mxu0
        %v1259 = vadd.f32 0.0, %v1258
        %v1260 = vpop.f32.mrb[0].mxu0
        %v1261 = vpop.f32.mrb[0].mxu0
        %v1262 = vadd.f32 0.0, %v1261
        %v1263 = vpop.f32.mrb[0].mxu0
        %1264 = vmatprep.mubr.bf16.mxu0 0
        %1265 = vmatmul.mubr.bf16.gmra.mrb[0].mxu0 %v1098
        %v1266 = vpop.f32.mrb[0].mxu0
        %v1267 = vadd.f32 0.0, %v1266
        %v1268 = vpop.f32.mrb[0].mxu0
        %v1269 = vpop.f32.mrb[0].mxu0
        %v1270 = vadd.f32 0.0, %v1269
        %v1271 = vpop.f32.mrb[0].mxu0
        %1272 = vmatprep.mubr.bf16.mxu0 0
        %1273 = vmatmul.mubr.bf16.gmra.mrb[0].mxu0 %v1102
        %v1274 = vpop.f32.mrb[0].mxu0
        %v1275 = vadd.f32 0.0, %v1274
        %v1276 = vpop.f32.mrb[0].mxu0
        %v1277 = vpop.f32.mrb[0].mxu0
        %v1278 = vadd.f32 0.0, %v1277
        %v1279 = vpop.f32.mrb[0].mxu0
        %1280 = vmatprep.mubr.bf16.mxu0 0
        %1281 = vmatmul.mubr.bf16.gmra.mrb[0].mxu0 %v1106
        %v1282 = vpop.f32.mrb[0].mxu0
        %v1283 = vadd.f32 0.0, %v1282
        %v1284 = vpop.f32.mrb[0].mxu0
        %v1285 = vpop.f32.mrb[0].mxu0
        %v1286 = vadd.f32 0.0, %v1285
        %v1287 = vpop.f32.mrb[0].mxu0
        %1288 = vmatprep.mubr.bf16.mxu0 0
        %1289 = vmatmul.mubr.bf16.gmra.mrb[0].mxu0 %v1110
        %v1290 = vpop.f32.mrb[0].mxu0
        %v1291 = vadd.f32 0.0, %v1290
        %v1292 = vpop.f32.mrb[0].mxu0
        %v1293 = vpop.f32.mrb[0].mxu0
        %v1294 = vadd.f32 0.0, %v1293
        %v1295 = vpop.f32.mrb[0].mxu0
        %1296 = vmatprep.mubr.bf16.mxu0 0
        %1297 = vmatmul.mubr.bf16.gmra.mrb[0].mxu0 %v1114
        %v1298 = vpop.f32.mrb[0].mxu0
        %v1299 = vadd.f32 0.0, %v1298
        %v1300 = vpop.f32.mrb[0].mxu0
        %v1301 = vpop.f32.mrb[0].mxu0
        %v1302 = vadd.f32 0.0, %v1301
        %v1303 = vpop.f32.mrb[0].mxu0
        %1304 = vmatprep.mubr.bf16.mxu0 0
        %1305 = vmatmul.mubr.bf16.gmra.mrb[0].mxu0 %v1113
        %v1306 = vpop.f32.mrb[0].mxu0
        %v1307 = vadd.f32 0.0, %v1306
        %v1308 = vpop.f32.mrb[0].mxu0
        %v1309 = vpop.f32.mrb[0].mxu0
        %v1310 = vpop.f32.mrb[0].mxu0
        %1311 = vdwg.mxu0
        %v1312 = vadd.f32 %v945, %v1211
        %v1313 = vadd.f32 %v948, %v1214
        %v1314 = vadd.f32 %v953, %v1219
        %v1315 = vadd.f32 %v956, %v1222
        %v1316 = vadd.f32 %v961, %v1227
        %v1317 = vadd.f32 %v964, %v1230
        %v1318 = vadd.f32 %v969, %v1235
        %v1319 = vadd.f32 %v972, %v1238
        %v1320 = vadd.f32 %v977, %v1243
        %v1321 = vadd.f32 %v980, %v1246
        %v1322 = vadd.f32 %v985, %v1251
        %v1323 = vadd.f32 %v988, %v1254
        %v1324 = vadd.f32 %v993, %v1259
        %v1325 = vadd.f32 %v996, %v1262
        %v1326 = vadd.f32 %v1001, %v1267
        %v1327 = vadd.f32 %v1004, %v1270
        %v1328 = vadd.f32 %v1009, %v1275
        %v1329 = vadd.f32 %v1012, %v1278
        %v1330 = vadd.f32 %v1017, %v1283
        %v1331 = vadd.f32 %v1020, %v1286
        %v1332 = vadd.f32 %v1025, %v1291
        %v1333 = vadd.f32 %v1028, %v1294
        %v1334 = vadd.f32 %v1033, %v1299
        %v1335 = vadd.f32 %v1036, %v1302
        %v1336 = vadd.f32 %v1041, %v1307
        %s1337 = scalar_lea.vmem [#allocation5], 192
        %v1338 = vld [vmem:[%s1337] sm:$0xf]
        %v1339 = vld [vmem:[%s1337 + $0x4] sm:$0xf]
        %v1340 = vld [vmem:[%s1337 + $0x8] sm:$0xf]
        %v1341 = vld [vmem:[%s1337 + $0xc] sm:$0xf]
        %v1342 = vld [vmem:[%s1337 + $0x10] sm:$0xf]
        %v1343 = vld [vmem:[%s1337 + $0x14] sm:$0xf]
        %v1344 = vld [vmem:[%s1337 + $0x18] sm:$0xf]
        %v1345 = vld [vmem:[%s1337 + $0x1c] sm:$0xf]
        %v1346 = vld [vmem:[%s1337 + $0x20] sm:$0xf]
        %v1347 = vld [vmem:[%s1337 + $0x24] sm:$0xf]
        %v1348 = vld [vmem:[%s1337 + $0x28] sm:$0xf]
        %v1349 = vld [vmem:[%s1337 + $0x2c] sm:$0xf]
        %v1350 = vld [vmem:[%s1337 + $0x30] sm:$0xf]
        %v1351 = vld [vmem:[%s1337 + $0x34] sm:$0xf]
        %v1352 = vld [vmem:[%s1337 + $0x38] sm:$0xf]
        %v1353 = vld [vmem:[%s1337 + $0x3c] sm:$0xf]
        %v1356 = vunpack.c.l.b16 %v406
        %v1357 = vunpack.c.l.b16 %v407
        %v1358 = vpack.c.b16 %v1357, %v1356
        %vm1359 = vsmask.f32 4352
        %v1360 = vrot.slane %v742, 3
        %v1361 = vrot.slane %v745, 4
        %v1362 = vor.u32 %v1360, %v1361
        %v1363 = vrot.slane %v751, 3
        %v1364 = vrot.slane %v754, 4
        %v1365 = vor.u32 %v1363, %v1364
        %v1366 = vsel %vm1359, %v1362, %v1365
        %v1367 = vrot.slane %v760, 3
        %v1368 = vrot.slane %v763, 4
        %v1369 = vor.u32 %v1367, %v1368
        %v1370 = vsel %vm1359, %v1365, %v1369
        %v1371 = vrot.slane %v769, 3
        %v1372 = vrot.slane %v772, 4
        %v1373 = vor.u32 %v1371, %v1372
        %v1374 = vsel %vm1359, %v1369, %v1373
        %v1375 = vrot.slane %v778, 3
        %v1376 = vrot.slane %v781, 4
        %v1377 = vor.u32 %v1375, %v1376
        %v1378 = vsel %vm1359, %v1373, %v1377
        %v1379 = vrot.slane %v787, 3
        %v1380 = vrot.slane %v790, 4
        %v1381 = vor.u32 %v1379, %v1380
        %v1382 = vsel %vm1359, %v1377, %v1381
        %v1383 = vrot.slane %v796, 3
        %v1384 = vrot.slane %v799, 4
        %v1385 = vor.u32 %v1383, %v1384
        %v1386 = vsel %vm1359, %v1381, %v1385
        %v1387 = vrot.slane %v805, 3
        %v1388 = vrot.slane %v808, 4
        %v1389 = vor.u32 %v1387, %v1388
        %v1390 = vsel %vm1359, %v1385, %v1389
        %v1391 = vrot.slane %v814, 3
        %v1392 = vrot.slane %v817, 4
        %v1393 = vor.u32 %v1391, %v1392
        %v1394 = vsel %vm1359, %v1389, %v1393
        %v1395 = vrot.slane %v823, 3
        %v1396 = vrot.slane %v826, 4
        %v1397 = vor.u32 %v1395, %v1396
        %v1398 = vsel %vm1359, %v1393, %v1397
        %v1399 = vrot.slane %v832, 3
        %v1400 = vrot.slane %v835, 4
        %v1401 = vor.u32 %v1399, %v1400
        %v1402 = vsel %vm1359, %v1397, %v1401
        %v1403 = vrot.slane %v841, 3
        %v1404 = vrot.slane %v844, 4
        %v1405 = vor.u32 %v1403, %v1404
        %v1406 = vsel %vm1359, %v1401, %v1405
        %v1408 = vshrl.u32 %v1358, 16
        %v1410 = vrot.slane %v1408, 3
        %v1411 = vshll.u32 %v1358, 16
        %v1413 = vrot.slane %v1411, 4
        %v1414 = vor.u32 %v1410, %v1413
        %v1415 = vsel %vm1359, %v1405, %v1414
        %v1445 = vunpack.c.l.b16 %v1338
        %v1446 = vunpack.c.l.b16 %v1339
        %v1447 = vunpack.c.l.b16 %v1340
        %v1448 = vunpack.c.l.b16 %v1341
        %v1449 = vunpack.c.l.b16 %v1342
        %v1450 = vunpack.c.l.b16 %v1343
        %v1451 = vunpack.c.l.b16 %v1344
        %v1452 = vunpack.c.l.b16 %v1345
        %v1453 = vunpack.c.l.b16 %v1346
        %v1454 = vunpack.c.l.b16 %v1347
        %v1455 = vunpack.c.l.b16 %v1348
        %v1456 = vunpack.c.l.b16 %v1349
        %v1457 = vunpack.c.l.b16 %v1350
        %v1458 = vunpack.c.l.b16 %v1351
        %v1459 = vunpack.c.l.b16 %v1352
        %v1460 = vunpack.c.l.b16 %v1353
        %v1461 = vpack.c.b16 %v1446, %v1445
        %v1462 = vpack.c.b16 %v1448, %v1447
        %v1463 = vpack.c.b16 %v1450, %v1449
        %v1464 = vpack.c.b16 %v1452, %v1451
        %v1465 = vpack.c.b16 %v1454, %v1453
        %v1466 = vpack.c.b16 %v1456, %v1455
        %v1467 = vpack.c.b16 %v1458, %v1457
        %v1468 = vpack.c.b16 %v1460, %v1459
        %1477 = vmatprep.subr.bf16.mxu0 0
        %1478 = vmatpush1.bf16.msra.mxu0 %v1461
        %1479 = vmatprep.subr.bf16.mxu0 0
        %1480 = vmatpush1.bf16.msra.mxu0 %v1462
        %1481 = vmatprep.subr.bf16.mxu0 0
        %1482 = vmatpush1.bf16.msra.mxu0 %v1463
        %1483 = vmatprep.subr.bf16.mxu0 0
        %1484 = vmatpush1.bf16.msra.mxu0 %v1464
        %1485 = vmatprep.subr.bf16.mxu0 0
        %1486 = vmatpush1.bf16.msra.mxu0 %v1465
        %1487 = vmatprep.subr.bf16.mxu0 0
        %1488 = vmatpush1.bf16.msra.mxu0 %v1466
        %1489 = vmatprep.subr.bf16.mxu0 0
        %1490 = vmatpush1.bf16.msra.mxu0 %v1467
        %1491 = vmatprep.subr.bf16.mxu0 0
        %1492 = vmatpush1.bf16.msra.mxu0 %v1468
        %1493 = vmatprep.subr.bf16.mxu0 0
        %1494 = vmatpush1.bf16.msra.mxu0 0
        %1495 = vmatprep.subr.bf16.mxu0 0
        %1496 = vmatpush1.bf16.msra.mxu0 0
        %1497 = vmatprep.subr.bf16.mxu0 0
        %1498 = vmatpush1.bf16.msra.mxu0 0
        %1499 = vmatprep.subr.bf16.mxu0 0
        %1500 = vmatpush1.bf16.msra.mxu0 0
        %1501 = vmatprep.subr.bf16.mxu0 0
        %1502 = vmatpush1.bf16.msra.mxu0 0
        %1503 = vmatprep.subr.bf16.mxu0 0
        %1504 = vmatpush1.bf16.msra.mxu0 0
        %1505 = vmatprep.subr.bf16.mxu0 0
        %1506 = vmatpush1.bf16.msra.mxu0 0
        %1507 = vmatprep.subr.bf16.mxu0 0
        %1508 = vmatpush1.bf16.msra.mxu0 0
        %1509 = vmatprep.mubr.bf16.mxu0 0
        %1510 = vmatmul.mubr.bf16.gmra.mrb[0].mxu0 %v1366
        %v1511 = vpop.f32.mrb[0].mxu0
        %v1512 = vadd.f32 0.0, %v1511
        %v1513 = vpop.f32.mrb[0].mxu0
        %v1514 = vpop.f32.mrb[0].mxu0
        %v1515 = vadd.f32 0.0, %v1514
        %v1516 = vpop.f32.mrb[0].mxu0
        %1517 = vmatprep.mubr.bf16.mxu0 0
        %1518 = vmatmul.mubr.bf16.gmra.mrb[0].mxu0 %v1370
        %v1519 = vpop.f32.mrb[0].mxu0
        %v1520 = vadd.f32 0.0, %v1519
        %v1521 = vpop.f32.mrb[0].mxu0
        %v1522 = vpop.f32.mrb[0].mxu0
        %v1523 = vadd.f32 0.0, %v1522
        %v1524 = vpop.f32.mrb[0].mxu0
        %1525 = vmatprep.mubr.bf16.mxu0 0
        %1526 = vmatmul.mubr.bf16.gmra.mrb[0].mxu0 %v1374
        %v1527 = vpop.f32.mrb[0].mxu0
        %v1528 = vadd.f32 0.0, %v1527
        %v1529 = vpop.f32.mrb[0].mxu0
        %v1530 = vpop.f32.mrb[0].mxu0
        %v1531 = vadd.f32 0.0, %v1530
        %v1532 = vpop.f32.mrb[0].mxu0
        %1533 = vmatprep.mubr.bf16.mxu0 0
        %1534 = vmatmul.mubr.bf16.gmra.mrb[0].mxu0 %v1378
        %v1535 = vpop.f32.mrb[0].mxu0
        %v1536 = vadd.f32 0.0, %v1535
        %v1537 = vpop.f32.mrb[0].mxu0
        %v1538 = vpop.f32.mrb[0].mxu0
        %v1539 = vadd.f32 0.0, %v1538
        %v1540 = vpop.f32.mrb[0].mxu0
        %1541 = vmatprep.mubr.bf16.mxu0 0
        %1542 = vmatmul.mubr.bf16.gmra.mrb[0].mxu0 %v1382
        %v1543 = vpop.f32.mrb[0].mxu0
        %v1544 = vadd.f32 0.0, %v1543
        %v1545 = vpop.f32.mrb[0].mxu0
        %v1546 = vpop.f32.mrb[0].mxu0
        %v1547 = vadd.f32 0.0, %v1546
        %v1548 = vpop.f32.mrb[0].mxu0
        %1549 = vmatprep.mubr.bf16.mxu0 0
        %1550 = vmatmul.mubr.bf16.gmra.mrb[0].mxu0 %v1386
        %v1551 = vpop.f32.mrb[0].mxu0
        %v1552 = vadd.f32 0.0, %v1551
        %v1553 = vpop.f32.mrb[0].mxu0
        %v1554 = vpop.f32.mrb[0].mxu0
        %v1555 = vadd.f32 0.0, %v1554
        %v1556 = vpop.f32.mrb[0].mxu0
        %1557 = vmatprep.mubr.bf16.mxu0 0
        %1558 = vmatmul.mubr.bf16.gmra.mrb[0].mxu0 %v1390
        %v1559 = vpop.f32.mrb[0].mxu0
        %v1560 = vadd.f32 0.0, %v1559
        %v1561 = vpop.f32.mrb[0].mxu0
        %v1562 = vpop.f32.mrb[0].mxu0
        %v1563 = vadd.f32 0.0, %v1562
        %v1564 = vpop.f32.mrb[0].mxu0
        %1565 = vmatprep.mubr.bf16.mxu0 0
        %1566 = vmatmul.mubr.bf16.gmra.mrb[0].mxu0 %v1394
        %v1567 = vpop.f32.mrb[0].mxu0
        %v1568 = vadd.f32 0.0, %v1567
        %v1569 = vpop.f32.mrb[0].mxu0
        %v1570 = vpop.f32.mrb[0].mxu0
        %v1571 = vadd.f32 0.0, %v1570
        %v1572 = vpop.f32.mrb[0].mxu0
        %1573 = vmatprep.mubr.bf16.mxu0 0
        %1574 = vmatmul.mubr.bf16.gmra.mrb[0].mxu0 %v1398
        %v1575 = vpop.f32.mrb[0].mxu0
        %v1576 = vadd.f32 0.0, %v1575
        %v1577 = vpop.f32.mrb[0].mxu0
        %v1578 = vpop.f32.mrb[0].mxu0
        %v1579 = vadd.f32 0.0, %v1578
        %v1580 = vpop.f32.mrb[0].mxu0
        %1581 = vmatprep.mubr.bf16.mxu0 0
        %1582 = vmatmul.mubr.bf16.gmra.mrb[0].mxu0 %v1402
        %v1583 = vpop.f32.mrb[0].mxu0
        %v1584 = vadd.f32 0.0, %v1583
        %v1585 = vpop.f32.mrb[0].mxu0
        %v1586 = vpop.f32.mrb[0].mxu0
        %v1587 = vadd.f32 0.0, %v1586
        %v1588 = vpop.f32.mrb[0].mxu0
        %1589 = vmatprep.mubr.bf16.mxu0 0
        %1590 = vmatmul.mubr.bf16.gmra.mrb[0].mxu0 %v1406
        %v1591 = vpop.f32.mrb[0].mxu0
        %v1592 = vadd.f32 0.0, %v1591
        %v1593 = vpop.f32.mrb[0].mxu0
        %v1594 = vpop.f32.mrb[0].mxu0
        %v1595 = vadd.f32 0.0, %v1594
        %v1596 = vpop.f32.mrb[0].mxu0
        %1597 = vmatprep.mubr.bf16.mxu0 0
        %1598 = vmatmul.mubr.bf16.gmra.mrb[0].mxu0 %v1415
        %v1599 = vpop.f32.mrb[0].mxu0
        %v1600 = vadd.f32 0.0, %v1599
        %v1601 = vpop.f32.mrb[0].mxu0
        %v1602 = vpop.f32.mrb[0].mxu0
        %v1603 = vadd.f32 0.0, %v1602
        %v1604 = vpop.f32.mrb[0].mxu0
        %1605 = vmatprep.mubr.bf16.mxu0 0
        %1606 = vmatmul.mubr.bf16.gmra.mrb[0].mxu0 %v1414
        %v1607 = vpop.f32.mrb[0].mxu0
        %v1608 = vadd.f32 0.0, %v1607
        %v1609 = vpop.f32.mrb[0].mxu0
        %v1610 = vpop.f32.mrb[0].mxu0
        %v1611 = vpop.f32.mrb[0].mxu0
        %1612 = vdwg.mxu0
        %v1613 = vadd.f32 %v1312, %v1512
        %v1614 = vadd.f32 %v1313, %v1515
        %v1615 = vadd.f32 %v1314, %v1520
        %v1616 = vadd.f32 %v1315, %v1523
        %v1617 = vadd.f32 %v1316, %v1528
        %v1618 = vadd.f32 %v1317, %v1531
        %v1619 = vadd.f32 %v1318, %v1536
        %v1620 = vadd.f32 %v1319, %v1539
        %v1621 = vadd.f32 %v1320, %v1544
        %v1622 = vadd.f32 %v1321, %v1547
        %v1623 = vadd.f32 %v1322, %v1552
        %v1624 = vadd.f32 %v1323, %v1555
        %v1625 = vadd.f32 %v1324, %v1560
        %v1626 = vadd.f32 %v1325, %v1563
        %v1627 = vadd.f32 %v1326, %v1568
        %v1628 = vadd.f32 %v1327, %v1571
        %v1629 = vadd.f32 %v1328, %v1576
        %v1630 = vadd.f32 %v1329, %v1579
        %v1631 = vadd.f32 %v1330, %v1584
        %v1632 = vadd.f32 %v1331, %v1587
        %v1633 = vadd.f32 %v1332, %v1592
        %v1634 = vadd.f32 %v1333, %v1595
        %v1635 = vadd.f32 %v1334, %v1600
        %v1636 = vadd.f32 %v1335, %v1603
        %v1637 = vadd.f32 %v1336, %v1608
        %s1638 = scalar_lea.vmem [#allocation5], 256
        %v1639 = vld [vmem:[%s1638] sm:$0xf]
        %v1640 = vld [vmem:[%s1638 + $0x4] sm:$0xf]
        %v1641 = vld [vmem:[%s1638 + $0x8] sm:$0xf]
        %v1642 = vld [vmem:[%s1638 + $0xc] sm:$0xf]
        %v1643 = vld [vmem:[%s1638 + $0x10] sm:$0xf]
        %v1644 = vld [vmem:[%s1638 + $0x14] sm:$0xf]
        %v1645 = vld [vmem:[%s1638 + $0x18] sm:$0xf]
        %v1646 = vld [vmem:[%s1638 + $0x1c] sm:$0xf]
        %v1647 = vld [vmem:[%s1638 + $0x20] sm:$0xf]
        %v1648 = vld [vmem:[%s1638 + $0x24] sm:$0xf]
        %v1649 = vld [vmem:[%s1638 + $0x28] sm:$0xf]
        %v1650 = vld [vmem:[%s1638 + $0x2c] sm:$0xf]
        %v1651 = vld [vmem:[%s1638 + $0x30] sm:$0xf]
        %v1652 = vld [vmem:[%s1638 + $0x34] sm:$0xf]
        %v1653 = vld [vmem:[%s1638 + $0x38] sm:$0xf]
        %v1654 = vld [vmem:[%s1638 + $0x3c] sm:$0xf]
        %v1655 = vpack.c.b16 %v474, %v473
        %v1656 = vpack.c.b16 %v476, %v475
        %v1657 = vpack.c.b16 %v478, %v477
        %v1658 = vpack.c.b16 %v480, %v479
        %v1659 = vpack.c.b16 %v482, %v481
        %v1660 = vpack.c.b16 %v484, %v483
        %v1661 = vpack.c.b16 %v486, %v485
        %v1662 = vpack.c.b16 %v488, %v487
        %v1663 = vpack.c.b16 %v490, %v489
        %v1664 = vpack.c.b16 %v492, %v491
        %v1665 = vpack.c.b16 %v494, %v493
        %v1666 = vpack.c.b16 %v1356, %v495
        %v1667 = vpack.c.b16 %v1357, %v1357
        %v1697 = vunpack.c.l.b16 %v1639
        %v1698 = vunpack.c.l.b16 %v1640
        %v1699 = vunpack.c.l.b16 %v1641
        %v1700 = vunpack.c.l.b16 %v1642
        %v1701 = vunpack.c.l.b16 %v1643
        %v1702 = vunpack.c.l.b16 %v1644
        %v1703 = vunpack.c.l.b16 %v1645
        %v1704 = vunpack.c.l.b16 %v1646
        %v1705 = vunpack.c.l.b16 %v1647
        %v1706 = vunpack.c.l.b16 %v1648
        %v1707 = vunpack.c.l.b16 %v1649
        %v1708 = vunpack.c.l.b16 %v1650
        %v1709 = vunpack.c.l.b16 %v1651
        %v1710 = vunpack.c.l.b16 %v1652
        %v1711 = vunpack.c.l.b16 %v1653
        %v1712 = vunpack.c.l.b16 %v1654
        %v1713 = vpack.c.b16 %v1698, %v1697
        %v1714 = vpack.c.b16 %v1700, %v1699
        %v1715 = vpack.c.b16 %v1702, %v1701
        %v1716 = vpack.c.b16 %v1704, %v1703
        %v1717 = vpack.c.b16 %v1706, %v1705
        %v1718 = vpack.c.b16 %v1708, %v1707
        %v1719 = vpack.c.b16 %v1710, %v1709
        %v1720 = vpack.c.b16 %v1712, %v1711
        %1729 = vmatprep.subr.bf16.mxu0 0
        %1730 = vmatpush1.bf16.msra.mxu0 %v1713
        %1731 = vmatprep.subr.bf16.mxu0 0
        %1732 = vmatpush1.bf16.msra.mxu0 %v1714
        %1733 = vmatprep.subr.bf16.mxu0 0
        %1734 = vmatpush1.bf16.msra.mxu0 %v1715
        %1735 = vmatprep.subr.bf16.mxu0 0
        %1736 = vmatpush1.bf16.msra.mxu0 %v1716
        %1737 = vmatprep.subr.bf16.mxu0 0
        %1738 = vmatpush1.bf16.msra.mxu0 %v1717
        %1739 = vmatprep.subr.bf16.mxu0 0
        %1740 = vmatpush1.bf16.msra.mxu0 %v1718
        %1741 = vmatprep.subr.bf16.mxu0 0
        %1742 = vmatpush1.bf16.msra.mxu0 %v1719
        %1743 = vmatprep.subr.bf16.mxu0 0
        %1744 = vmatpush1.bf16.msra.mxu0 %v1720
        %1745 = vmatprep.subr.bf16.mxu0 0
        %1746 = vmatpush1.bf16.msra.mxu0 0
        %1747 = vmatprep.subr.bf16.mxu0 0
        %1748 = vmatpush1.bf16.msra.mxu0 0
        %1749 = vmatprep.subr.bf16.mxu0 0
        %1750 = vmatpush1.bf16.msra.mxu0 0
        %1751 = vmatprep.subr.bf16.mxu0 0
        %1752 = vmatpush1.bf16.msra.mxu0 0
        %1753 = vmatprep.subr.bf16.mxu0 0
        %1754 = vmatpush1.bf16.msra.mxu0 0
        %1755 = vmatprep.subr.bf16.mxu0 0
        %1756 = vmatpush1.bf16.msra.mxu0 0
        %1757 = vmatprep.subr.bf16.mxu0 0
        %1758 = vmatpush1.bf16.msra.mxu0 0
        %1759 = vmatprep.subr.bf16.mxu0 0
        %1760 = vmatpush1.bf16.msra.mxu0 0
        %1761 = vmatprep.mubr.bf16.mxu0 0
        %1762 = vmatmul.mubr.bf16.gmra.mrb[0].mxu0 %v1655
        %v1763 = vpop.f32.mrb[0].mxu0
        %v1764 = vadd.f32 0.0, %v1763
        %v1765 = vpop.f32.mrb[0].mxu0
        %v1766 = vpop.f32.mrb[0].mxu0
        %v1767 = vadd.f32 0.0, %v1766
        %v1768 = vpop.f32.mrb[0].mxu0
        %1769 = vmatprep.mubr.bf16.mxu0 0
        %1770 = vmatmul.mubr.bf16.gmra.mrb[0].mxu0 %v1656
        %v1771 = vpop.f32.mrb[0].mxu0
        %v1772 = vadd.f32 0.0, %v1771
        %v1773 = vpop.f32.mrb[0].mxu0
        %v1774 = vpop.f32.mrb[0].mxu0
        %v1775 = vadd.f32 0.0, %v1774
        %v1776 = vpop.f32.mrb[0].mxu0
        %1777 = vmatprep.mubr.bf16.mxu0 0
        %1778 = vmatmul.mubr.bf16.gmra.mrb[0].mxu0 %v1657
        %v1779 = vpop.f32.mrb[0].mxu0
        %v1780 = vadd.f32 0.0, %v1779
        %v1781 = vpop.f32.mrb[0].mxu0
        %v1782 = vpop.f32.mrb[0].mxu0
        %v1783 = vadd.f32 0.0, %v1782
        %v1784 = vpop.f32.mrb[0].mxu0
        %1785 = vmatprep.mubr.bf16.mxu0 0
        %1786 = vmatmul.mubr.bf16.gmra.mrb[0].mxu0 %v1658
        %v1787 = vpop.f32.mrb[0].mxu0
        %v1788 = vadd.f32 0.0, %v1787
        %v1789 = vpop.f32.mrb[0].mxu0
        %v1790 = vpop.f32.mrb[0].mxu0
        %v1791 = vadd.f32 0.0, %v1790
        %v1792 = vpop.f32.mrb[0].mxu0
        %1793 = vmatprep.mubr.bf16.mxu0 0
        %1794 = vmatmul.mubr.bf16.gmra.mrb[0].mxu0 %v1659
        %v1795 = vpop.f32.mrb[0].mxu0
        %v1796 = vadd.f32 0.0, %v1795
        %v1797 = vpop.f32.mrb[0].mxu0
        %v1798 = vpop.f32.mrb[0].mxu0
        %v1799 = vadd.f32 0.0, %v1798
        %v1800 = vpop.f32.mrb[0].mxu0
        %1801 = vmatprep.mubr.bf16.mxu0 0
        %1802 = vmatmul.mubr.bf16.gmra.mrb[0].mxu0 %v1660
        %v1803 = vpop.f32.mrb[0].mxu0
        %v1804 = vadd.f32 0.0, %v1803
        %v1805 = vpop.f32.mrb[0].mxu0
        %v1806 = vpop.f32.mrb[0].mxu0
        %v1807 = vadd.f32 0.0, %v1806
        %v1808 = vpop.f32.mrb[0].mxu0
        %1809 = vmatprep.mubr.bf16.mxu0 0
        %1810 = vmatmul.mubr.bf16.gmra.mrb[0].mxu0 %v1661
        %v1811 = vpop.f32.mrb[0].mxu0
        %v1812 = vadd.f32 0.0, %v1811
        %v1813 = vpop.f32.mrb[0].mxu0
        %v1814 = vpop.f32.mrb[0].mxu0
        %v1815 = vadd.f32 0.0, %v1814
        %v1816 = vpop.f32.mrb[0].mxu0
        %1817 = vmatprep.mubr.bf16.mxu0 0
        %1818 = vmatmul.mubr.bf16.gmra.mrb[0].mxu0 %v1662
        %v1819 = vpop.f32.mrb[0].mxu0
        %v1820 = vadd.f32 0.0, %v1819
        %v1821 = vpop.f32.mrb[0].mxu0
        %v1822 = vpop.f32.mrb[0].mxu0
        %v1823 = vadd.f32 0.0, %v1822
        %v1824 = vpop.f32.mrb[0].mxu0
        %1825 = vmatprep.mubr.bf16.mxu0 0
        %1826 = vmatmul.mubr.bf16.gmra.mrb[0].mxu0 %v1663
        %v1827 = vpop.f32.mrb[0].mxu0
        %v1828 = vadd.f32 0.0, %v1827
        %v1829 = vpop.f32.mrb[0].mxu0
        %v1830 = vpop.f32.mrb[0].mxu0
        %v1831 = vadd.f32 0.0, %v1830
        %v1832 = vpop.f32.mrb[0].mxu0
        %1833 = vmatprep.mubr.bf16.mxu0 0
        %1834 = vmatmul.mubr.bf16.gmra.mrb[0].mxu0 %v1664
        %v1835 = vpop.f32.mrb[0].mxu0
        %v1836 = vadd.f32 0.0, %v1835
        %v1837 = vpop.f32.mrb[0].mxu0
        %v1838 = vpop.f32.mrb[0].mxu0
        %v1839 = vadd.f32 0.0, %v1838
        %v1840 = vpop.f32.mrb[0].mxu0
        %1841 = vmatprep.mubr.bf16.mxu0 0
        %1842 = vmatmul.mubr.bf16.gmra.mrb[0].mxu0 %v1665
        %v1843 = vpop.f32.mrb[0].mxu0
        %v1844 = vadd.f32 0.0, %v1843
        %v1845 = vpop.f32.mrb[0].mxu0
        %v1846 = vpop.f32.mrb[0].mxu0
        %v1847 = vadd.f32 0.0, %v1846
        %v1848 = vpop.f32.mrb[0].mxu0
        %1849 = vmatprep.mubr.bf16.mxu0 0
        %1850 = vmatmul.mubr.bf16.gmra.mrb[0].mxu0 %v1666
        %v1851 = vpop.f32.mrb[0].mxu0
        %v1852 = vadd.f32 0.0, %v1851
        %v1853 = vpop.f32.mrb[0].mxu0
        %v1854 = vpop.f32.mrb[0].mxu0
        %v1855 = vadd.f32 0.0, %v1854
        %v1856 = vpop.f32.mrb[0].mxu0
        %1857 = vmatprep.mubr.bf16.mxu0 0
        %1858 = vmatmul.mubr.bf16.gmra.mrb[0].mxu0 %v1667
        %v1859 = vpop.f32.mrb[0].mxu0
        %v1860 = vadd.f32 0.0, %v1859
        %v1861 = vpop.f32.mrb[0].mxu0
        %v1862 = vpop.f32.mrb[0].mxu0
        %v1863 = vpop.f32.mrb[0].mxu0
        %1864 = vdwg.mxu0
        %v1865 = vadd.f32 %v1613, %v1764
        %v1866 = vadd.f32 %v1614, %v1767
        %v1867 = vadd.f32 %v1615, %v1772
        %v1868 = vadd.f32 %v1616, %v1775
        %v1869 = vadd.f32 %v1617, %v1780
        %v1870 = vadd.f32 %v1618, %v1783
        %v1871 = vadd.f32 %v1619, %v1788
        %v1872 = vadd.f32 %v1620, %v1791
        %v1873 = vadd.f32 %v1621, %v1796
        %v1874 = vadd.f32 %v1622, %v1799
        %v1875 = vadd.f32 %v1623, %v1804
        %v1876 = vadd.f32 %v1624, %v1807
        %v1877 = vadd.f32 %v1625, %v1812
        %v1878 = vadd.f32 %v1626, %v1815
        %v1879 = vadd.f32 %v1627, %v1820
        %v1880 = vadd.f32 %v1628, %v1823
        %v1881 = vadd.f32 %v1629, %v1828
        %v1882 = vadd.f32 %v1630, %v1831
        %v1883 = vadd.f32 %v1631, %v1836
        %v1884 = vadd.f32 %v1632, %v1839
        %v1885 = vadd.f32 %v1633, %v1844
        %v1886 = vadd.f32 %v1634, %v1847
        %v1887 = vadd.f32 %v1635, %v1852
        %v1888 = vadd.f32 %v1636, %v1855
        %v1889 = vadd.f32 %v1637, %v1860
        %s1890 = scalar_lea.vmem [#allocation5], 320
        %v1891 = vld [vmem:[%s1890] sm:$0xf]
        %v1892 = vld [vmem:[%s1890 + $0x4] sm:$0xf]
        %v1893 = vld [vmem:[%s1890 + $0x8] sm:$0xf]
        %v1894 = vld [vmem:[%s1890 + $0xc] sm:$0xf]
        %v1895 = vld [vmem:[%s1890 + $0x10] sm:$0xf]
        %v1896 = vld [vmem:[%s1890 + $0x14] sm:$0xf]
        %v1897 = vld [vmem:[%s1890 + $0x18] sm:$0xf]
        %v1898 = vld [vmem:[%s1890 + $0x1c] sm:$0xf]
        %v1899 = vld [vmem:[%s1890 + $0x20] sm:$0xf]
        %v1900 = vld [vmem:[%s1890 + $0x24] sm:$0xf]
        %v1901 = vld [vmem:[%s1890 + $0x28] sm:$0xf]
        %v1902 = vld [vmem:[%s1890 + $0x2c] sm:$0xf]
        %v1903 = vld [vmem:[%s1890 + $0x30] sm:$0xf]
        %v1904 = vld [vmem:[%s1890 + $0x34] sm:$0xf]
        %v1905 = vld [vmem:[%s1890 + $0x38] sm:$0xf]
        %v1906 = vld [vmem:[%s1890 + $0x3c] sm:$0xf]
        %v1908 = vunpack.c.l.b16 %v408
        %v1909 = vpack.c.b16 %v1908, %v1357
        %vm1910 = vsmask.f32 7424
        %v1912 = vshrl.u32 %v1655, 16
        %v1914 = vshll.u32 %v1655, 16
        %v1916 = vrot.slane %v1914, 1
        %v1917 = vor.u32 %v1912, %v1916
        %v1919 = vshll.u32 %v1656, 16
        %v1921 = vrot.slane %v1919, 1
        %v1922 = vsel %vm1910, %v1917, %v1921
        %v1923 = vshrl.u32 %v1656, 16
        %v1925 = vor.u32 %v1923, %v1921
        %v1927 = vshll.u32 %v1657, 16
        %v1929 = vrot.slane %v1927, 1
        %v1930 = vsel %vm1910, %v1925, %v1929
        %v1931 = vshrl.u32 %v1657, 16
        %v1933 = vor.u32 %v1931, %v1929
        %v1935 = vshll.u32 %v1658, 16
        %v1937 = vrot.slane %v1935, 1
        %v1938 = vsel %vm1910, %v1933, %v1937
        %v1939 = vshrl.u32 %v1658, 16
        %v1941 = vor.u32 %v1939, %v1937
        %v1943 = vshll.u32 %v1659, 16
        %v1945 = vrot.slane %v1943, 1
        %v1946 = vsel %vm1910, %v1941, %v1945
        %v1947 = vshrl.u32 %v1659, 16
        %v1949 = vor.u32 %v1947, %v1945
        %v1951 = vshll.u32 %v1660, 16
        %v1953 = vrot.slane %v1951, 1
        %v1954 = vsel %vm1910, %v1949, %v1953
        %v1955 = vshrl.u32 %v1660, 16
        %v1957 = vor.u32 %v1955, %v1953
        %v1959 = vshll.u32 %v1661, 16
        %v1961 = vrot.slane %v1959, 1
        %v1962 = vsel %vm1910, %v1957, %v1961
        %v1963 = vshrl.u32 %v1661, 16
        %v1965 = vor.u32 %v1963, %v1961
        %v1967 = vshll.u32 %v1662, 16
        %v1969 = vrot.slane %v1967, 1
        %v1970 = vsel %vm1910, %v1965, %v1969
        %v1971 = vshrl.u32 %v1662, 16
        %v1973 = vor.u32 %v1971, %v1969
        %v1975 = vshll.u32 %v1663, 16
        %v1977 = vrot.slane %v1975, 1
        %v1978 = vsel %vm1910, %v1973, %v1977
        %v1979 = vshrl.u32 %v1663, 16
        %v1981 = vor.u32 %v1979, %v1977
        %v1983 = vshll.u32 %v1664, 16
        %v1985 = vrot.slane %v1983, 1
        %v1986 = vsel %vm1910, %v1981, %v1985
        %v1987 = vshrl.u32 %v1664, 16
        %v1989 = vor.u32 %v1987, %v1985
        %v1991 = vshll.u32 %v1665, 16
        %v1993 = vrot.slane %v1991, 1
        %v1994 = vsel %vm1910, %v1989, %v1993
        %v1995 = vshrl.u32 %v1665, 16
        %v1997 = vor.u32 %v1995, %v1993
        %v1999 = vshll.u32 %v1666, 16
        %v2001 = vrot.slane %v1999, 1
        %v2002 = vsel %vm1910, %v1997, %v2001
        %v2003 = vshrl.u32 %v1666, 16
        %v2005 = vor.u32 %v2003, %v2001
        %v2007 = vshll.u32 %v1909, 16
        %v2009 = vrot.slane %v2007, 1
        %v2010 = vsel %vm1910, %v2005, %v2009
        %v2011 = vshrl.u32 %v1909, 16
        %v2013 = vor.u32 %v2011, %v2009
        %v2043 = vunpack.c.l.b16 %v1891
        %v2044 = vunpack.c.l.b16 %v1892
        %v2045 = vunpack.c.l.b16 %v1893
        %v2046 = vunpack.c.l.b16 %v1894
        %v2047 = vunpack.c.l.b16 %v1895
        %v2048 = vunpack.c.l.b16 %v1896
        %v2049 = vunpack.c.l.b16 %v1897
        %v2050 = vunpack.c.l.b16 %v1898
        %v2051 = vunpack.c.l.b16 %v1899
        %v2052 = vunpack.c.l.b16 %v1900
        %v2053 = vunpack.c.l.b16 %v1901
        %v2054 = vunpack.c.l.b16 %v1902
        %v2055 = vunpack.c.l.b16 %v1903
        %v2056 = vunpack.c.l.b16 %v1904
        %v2057 = vunpack.c.l.b16 %v1905
        %v2058 = vunpack.c.l.b16 %v1906
        %v2059 = vpack.c.b16 %v2044, %v2043
        %v2060 = vpack.c.b16 %v2046, %v2045
        %v2061 = vpack.c.b16 %v2048, %v2047
        %v2062 = vpack.c.b16 %v2050, %v2049
        %v2063 = vpack.c.b16 %v2052, %v2051
        %v2064 = vpack.c.b16 %v2054, %v2053
        %v2065 = vpack.c.b16 %v2056, %v2055
        %v2066 = vpack.c.b16 %v2058, %v2057
        %2075 = vmatprep.subr.bf16.mxu0 0
        %2076 = vmatpush1.bf16.msra.mxu0 %v2059
        %2077 = vmatprep.subr.bf16.mxu0 0
        %2078 = vmatpush1.bf16.msra.mxu0 %v2060
        %2079 = vmatprep.subr.bf16.mxu0 0
        %2080 = vmatpush1.bf16.msra.mxu0 %v2061
        %2081 = vmatprep.subr.bf16.mxu0 0
        %2082 = vmatpush1.bf16.msra.mxu0 %v2062
        %2083 = vmatprep.subr.bf16.mxu0 0
        %2084 = vmatpush1.bf16.msra.mxu0 %v2063
        %2085 = vmatprep.subr.bf16.mxu0 0
        %2086 = vmatpush1.bf16.msra.mxu0 %v2064
        %2087 = vmatprep.subr.bf16.mxu0 0
        %2088 = vmatpush1.bf16.msra.mxu0 %v2065
        %2089 = vmatprep.subr.bf16.mxu0 0
        %2090 = vmatpush1.bf16.msra.mxu0 %v2066
        %2091 = vmatprep.subr.bf16.mxu0 0
        %2092 = vmatpush1.bf16.msra.mxu0 0
        %2093 = vmatprep.subr.bf16.mxu0 0
        %2094 = vmatpush1.bf16.msra.mxu0 0
        %2095 = vmatprep.subr.bf16.mxu0 0
        %2096 = vmatpush1.bf16.msra.mxu0 0
        %2097 = vmatprep.subr.bf16.mxu0 0
        %2098 = vmatpush1.bf16.msra.mxu0 0
        %2099 = vmatprep.subr.bf16.mxu0 0
        %2100 = vmatpush1.bf16.msra.mxu0 0
        %2101 = vmatprep.subr.bf16.mxu0 0
        %2102 = vmatpush1.bf16.msra.mxu0 0
        %2103 = vmatprep.subr.bf16.mxu0 0
        %2104 = vmatpush1.bf16.msra.mxu0 0
        %2105 = vmatprep.subr.bf16.mxu0 0
        %2106 = vmatpush1.bf16.msra.mxu0 0
        %2107 = vmatprep.mubr.bf16.mxu0 0
        %2108 = vmatmul.mubr.bf16.gmra.mrb[0].mxu0 %v1922
        %v2109 = vpop.f32.mrb[0].mxu0
        %v2110 = vadd.f32 0.0, %v2109
        %v2111 = vpop.f32.mrb[0].mxu0
        %v2112 = vpop.f32.mrb[0].mxu0
        %v2113 = vadd.f32 0.0, %v2112
        %v2114 = vpop.f32.mrb[0].mxu0
        %2115 = vmatprep.mubr.bf16.mxu0 0
        %2116 = vmatmul.mubr.bf16.gmra.mrb[0].mxu0 %v1930
        %v2117 = vpop.f32.mrb[0].mxu0
        %v2118 = vadd.f32 0.0, %v2117
        %v2119 = vpop.f32.mrb[0].mxu0
        %v2120 = vpop.f32.mrb[0].mxu0
        %v2121 = vadd.f32 0.0, %v2120
        %v2122 = vpop.f32.mrb[0].mxu0
        %2123 = vmatprep.mubr.bf16.mxu0 0
        %2124 = vmatmul.mubr.bf16.gmra.mrb[0].mxu0 %v1938
        %v2125 = vpop.f32.mrb[0].mxu0
        %v2126 = vadd.f32 0.0, %v2125
        %v2127 = vpop.f32.mrb[0].mxu0
        %v2128 = vpop.f32.mrb[0].mxu0
        %v2129 = vadd.f32 0.0, %v2128
        %v2130 = vpop.f32.mrb[0].mxu0
        %2131 = vmatprep.mubr.bf16.mxu0 0
        %2132 = vmatmul.mubr.bf16.gmra.mrb[0].mxu0 %v1946
        %v2133 = vpop.f32.mrb[0].mxu0
        %v2134 = vadd.f32 0.0, %v2133
        %v2135 = vpop.f32.mrb[0].mxu0
        %v2136 = vpop.f32.mrb[0].mxu0
        %v2137 = vadd.f32 0.0, %v2136
        %v2138 = vpop.f32.mrb[0].mxu0
        %2139 = vmatprep.mubr.bf16.mxu0 0
        %2140 = vmatmul.mubr.bf16.gmra.mrb[0].mxu0 %v1954
        %v2141 = vpop.f32.mrb[0].mxu0
        %v2142 = vadd.f32 0.0, %v2141
        %v2143 = vpop.f32.mrb[0].mxu0
        %v2144 = vpop.f32.mrb[0].mxu0
        %v2145 = vadd.f32 0.0, %v2144
        %v2146 = vpop.f32.mrb[0].mxu0
        %2147 = vmatprep.mubr.bf16.mxu0 0
        %2148 = vmatmul.mubr.bf16.gmra.mrb[0].mxu0 %v1962
        %v2149 = vpop.f32.mrb[0].mxu0
        %v2150 = vadd.f32 0.0, %v2149
        %v2151 = vpop.f32.mrb[0].mxu0
        %v2152 = vpop.f32.mrb[0].mxu0
        %v2153 = vadd.f32 0.0, %v2152
        %v2154 = vpop.f32.mrb[0].mxu0
        %2155 = vmatprep.mubr.bf16.mxu0 0
        %2156 = vmatmul.mubr.bf16.gmra.mrb[0].mxu0 %v1970
        %v2157 = vpop.f32.mrb[0].mxu0
        %v2158 = vadd.f32 0.0, %v2157
        %v2159 = vpop.f32.mrb[0].mxu0
        %v2160 = vpop.f32.mrb[0].mxu0
        %v2161 = vadd.f32 0.0, %v2160
        %v2162 = vpop.f32.mrb[0].mxu0
        %2163 = vmatprep.mubr.bf16.mxu0 0
        %2164 = vmatmul.mubr.bf16.gmra.mrb[0].mxu0 %v1978
        %v2165 = vpop.f32.mrb[0].mxu0
        %v2166 = vadd.f32 0.0, %v2165
        %v2167 = vpop.f32.mrb[0].mxu0
        %v2168 = vpop.f32.mrb[0].mxu0
        %v2169 = vadd.f32 0.0, %v2168
        %v2170 = vpop.f32.mrb[0].mxu0
        %2171 = vmatprep.mubr.bf16.mxu0 0
        %2172 = vmatmul.mubr.bf16.gmra.mrb[0].mxu0 %v1986
        %v2173 = vpop.f32.mrb[0].mxu0
        %v2174 = vadd.f32 0.0, %v2173
        %v2175 = vpop.f32.mrb[0].mxu0
        %v2176 = vpop.f32.mrb[0].mxu0
        %v2177 = vadd.f32 0.0, %v2176
        %v2178 = vpop.f32.mrb[0].mxu0
        %2179 = vmatprep.mubr.bf16.mxu0 0
        %2180 = vmatmul.mubr.bf16.gmra.mrb[0].mxu0 %v1994
        %v2181 = vpop.f32.mrb[0].mxu0
        %v2182 = vadd.f32 0.0, %v2181
        %v2183 = vpop.f32.mrb[0].mxu0
        %v2184 = vpop.f32.mrb[0].mxu0
        %v2185 = vadd.f32 0.0, %v2184
        %v2186 = vpop.f32.mrb[0].mxu0
        %2187 = vmatprep.mubr.bf16.mxu0 0
        %2188 = vmatmul.mubr.bf16.gmra.mrb[0].mxu0 %v2002
        %v2189 = vpop.f32.mrb[0].mxu0
        %v2190 = vadd.f32 0.0, %v2189
        %v2191 = vpop.f32.mrb[0].mxu0
        %v2192 = vpop.f32.mrb[0].mxu0
        %v2193 = vadd.f32 0.0, %v2192
        %v2194 = vpop.f32.mrb[0].mxu0
        %2195 = vmatprep.mubr.bf16.mxu0 0
        %2196 = vmatmul.mubr.bf16.gmra.mrb[0].mxu0 %v2010
        %v2197 = vpop.f32.mrb[0].mxu0
        %v2198 = vadd.f32 0.0, %v2197
        %v2199 = vpop.f32.mrb[0].mxu0
        %v2200 = vpop.f32.mrb[0].mxu0
        %v2201 = vadd.f32 0.0, %v2200
        %v2202 = vpop.f32.mrb[0].mxu0
        %2203 = vmatprep.mubr.bf16.mxu0 0
        %2204 = vmatmul.mubr.bf16.gmra.mrb[0].mxu0 %v2013
        %v2205 = vpop.f32.mrb[0].mxu0
        %v2206 = vadd.f32 0.0, %v2205
        %v2207 = vpop.f32.mrb[0].mxu0
        %v2208 = vpop.f32.mrb[0].mxu0
        %v2209 = vpop.f32.mrb[0].mxu0
        %2210 = vdwg.mxu0
        %v2211 = vadd.f32 %v1865, %v2110
        %v2212 = vadd.f32 %v1866, %v2113
        %v2213 = vadd.f32 %v1867, %v2118
        %v2214 = vadd.f32 %v1868, %v2121
        %v2215 = vadd.f32 %v1869, %v2126
        %v2216 = vadd.f32 %v1870, %v2129
        %v2217 = vadd.f32 %v1871, %v2134
        %v2218 = vadd.f32 %v1872, %v2137
        %v2219 = vadd.f32 %v1873, %v2142
        %v2220 = vadd.f32 %v1874, %v2145
        %v2221 = vadd.f32 %v1875, %v2150
        %v2222 = vadd.f32 %v1876, %v2153
        %v2223 = vadd.f32 %v1877, %v2158
        %v2224 = vadd.f32 %v1878, %v2161
        %v2225 = vadd.f32 %v1879, %v2166
        %v2226 = vadd.f32 %v1880, %v2169
        %v2227 = vadd.f32 %v1881, %v2174
        %v2228 = vadd.f32 %v1882, %v2177
        %v2229 = vadd.f32 %v1883, %v2182
        %v2230 = vadd.f32 %v1884, %v2185
        %v2231 = vadd.f32 %v1885, %v2190
        %v2232 = vadd.f32 %v1886, %v2193
        %v2233 = vadd.f32 %v1887, %v2198
        %v2234 = vadd.f32 %v1888, %v2201
        %v2235 = vadd.f32 %v1889, %v2206
        %s2236 = scalar_lea.vmem [#allocation5], 384
        %v2237 = vld [vmem:[%s2236] sm:$0xf]
        %v2238 = vld [vmem:[%s2236 + $0x4] sm:$0xf]
        %v2239 = vld [vmem:[%s2236 + $0x8] sm:$0xf]
        %v2240 = vld [vmem:[%s2236 + $0xc] sm:$0xf]
        %v2241 = vld [vmem:[%s2236 + $0x10] sm:$0xf]
        %v2242 = vld [vmem:[%s2236 + $0x14] sm:$0xf]
        %v2243 = vld [vmem:[%s2236 + $0x18] sm:$0xf]
        %v2244 = vld [vmem:[%s2236 + $0x1c] sm:$0xf]
        %v2245 = vld [vmem:[%s2236 + $0x20] sm:$0xf]
        %v2246 = vld [vmem:[%s2236 + $0x24] sm:$0xf]
        %v2247 = vld [vmem:[%s2236 + $0x28] sm:$0xf]
        %v2248 = vld [vmem:[%s2236 + $0x2c] sm:$0xf]
        %v2249 = vld [vmem:[%s2236 + $0x30] sm:$0xf]
        %v2250 = vld [vmem:[%s2236 + $0x34] sm:$0xf]
        %v2251 = vld [vmem:[%s2236 + $0x38] sm:$0xf]
        %v2252 = vld [vmem:[%s2236 + $0x3c] sm:$0xf]
        %v2255 = vunpack.c.l.b16 %v409
        %v2256 = vunpack.c.l.b16 %v410
        %v2257 = vpack.c.b16 %v2256, %v2255
        %v2258 = vrot.slane %v1923, 1
        %v2259 = vrot.slane %v1919, 2
        %v2260 = vor.u32 %v2258, %v2259
        %v2261 = vrot.slane %v1931, 1
        %v2262 = vrot.slane %v1927, 2
        %v2263 = vor.u32 %v2261, %v2262
        %v2264 = vsel %vm732, %v2260, %v2263
        %v2265 = vrot.slane %v1939, 1
        %v2266 = vrot.slane %v1935, 2
        %v2267 = vor.u32 %v2265, %v2266
        %v2268 = vsel %vm732, %v2263, %v2267
        %v2269 = vrot.slane %v1947, 1
        %v2270 = vrot.slane %v1943, 2
        %v2271 = vor.u32 %v2269, %v2270
        %v2272 = vsel %vm732, %v2267, %v2271
        %v2273 = vrot.slane %v1955, 1
        %v2274 = vrot.slane %v1951, 2
        %v2275 = vor.u32 %v2273, %v2274
        %v2276 = vsel %vm732, %v2271, %v2275
        %v2277 = vrot.slane %v1963, 1
        %v2278 = vrot.slane %v1959, 2
        %v2279 = vor.u32 %v2277, %v2278
        %v2280 = vsel %vm732, %v2275, %v2279
        %v2281 = vrot.slane %v1971, 1
        %v2282 = vrot.slane %v1967, 2
        %v2283 = vor.u32 %v2281, %v2282
        %v2284 = vsel %vm732, %v2279, %v2283
        %v2285 = vrot.slane %v1979, 1
        %v2286 = vrot.slane %v1975, 2
        %v2287 = vor.u32 %v2285, %v2286
        %v2288 = vsel %vm732, %v2283, %v2287
        %v2289 = vrot.slane %v1987, 1
        %v2290 = vrot.slane %v1983, 2
        %v2291 = vor.u32 %v2289, %v2290
        %v2292 = vsel %vm732, %v2287, %v2291
        %v2293 = vrot.slane %v1995, 1
        %v2294 = vrot.slane %v1991, 2
        %v2295 = vor.u32 %v2293, %v2294
        %v2296 = vsel %vm732, %v2291, %v2295
        %v2297 = vrot.slane %v2003, 1
        %v2298 = vrot.slane %v1999, 2
        %v2299 = vor.u32 %v2297, %v2298
        %v2300 = vsel %vm732, %v2295, %v2299
        %v2301 = vrot.slane %v2011, 1
        %v2302 = vrot.slane %v2007, 2
        %v2303 = vor.u32 %v2301, %v2302
        %v2304 = vsel %vm732, %v2299, %v2303
        %v2306 = vshrl.u32 %v2257, 16
        %v2308 = vrot.slane %v2306, 1
        %v2309 = vshll.u32 %v2257, 16
        %v2311 = vrot.slane %v2309, 2
        %v2312 = vor.u32 %v2308, %v2311
        %v2313 = vsel %vm732, %v2303, %v2312
        %v2343 = vunpack.c.l.b16 %v2237
        %v2344 = vunpack.c.l.b16 %v2238
        %v2345 = vunpack.c.l.b16 %v2239
        %v2346 = vunpack.c.l.b16 %v2240
        %v2347 = vunpack.c.l.b16 %v2241
        %v2348 = vunpack.c.l.b16 %v2242
        %v2349 = vunpack.c.l.b16 %v2243
        %v2350 = vunpack.c.l.b16 %v2244
        %v2351 = vunpack.c.l.b16 %v2245
        %v2352 = vunpack.c.l.b16 %v2246
        %v2353 = vunpack.c.l.b16 %v2247
        %v2354 = vunpack.c.l.b16 %v2248
        %v2355 = vunpack.c.l.b16 %v2249
        %v2356 = vunpack.c.l.b16 %v2250
        %v2357 = vunpack.c.l.b16 %v2251
        %v2358 = vunpack.c.l.b16 %v2252
        %v2359 = vpack.c.b16 %v2344, %v2343
        %v2360 = vpack.c.b16 %v2346, %v2345
        %v2361 = vpack.c.b16 %v2348, %v2347
        %v2362 = vpack.c.b16 %v2350, %v2349
        %v2363 = vpack.c.b16 %v2352, %v2351
        %v2364 = vpack.c.b16 %v2354, %v2353
        %v2365 = vpack.c.b16 %v2356, %v2355
        %v2366 = vpack.c.b16 %v2358, %v2357
        %2375 = vmatprep.subr.bf16.mxu0 0
        %2376 = vmatpush1.bf16.msra.mxu0 %v2359
        %2377 = vmatprep.subr.bf16.mxu0 0
        %2378 = vmatpush1.bf16.msra.mxu0 %v2360
        %2379 = vmatprep.subr.bf16.mxu0 0
        %2380 = vmatpush1.bf16.msra.mxu0 %v2361
        %2381 = vmatprep.subr.bf16.mxu0 0
        %2382 = vmatpush1.bf16.msra.mxu0 %v2362
        %2383 = vmatprep.subr.bf16.mxu0 0
        %2384 = vmatpush1.bf16.msra.mxu0 %v2363
        %2385 = vmatprep.subr.bf16.mxu0 0
        %2386 = vmatpush1.bf16.msra.mxu0 %v2364
        %2387 = vmatprep.subr.bf16.mxu0 0
        %2388 = vmatpush1.bf16.msra.mxu0 %v2365
        %2389 = vmatprep.subr.bf16.mxu0 0
        %2390 = vmatpush1.bf16.msra.mxu0 %v2366
        %2391 = vmatprep.subr.bf16.mxu0 0
        %2392 = vmatpush1.bf16.msra.mxu0 0
        %2393 = vmatprep.subr.bf16.mxu0 0
        %2394 = vmatpush1.bf16.msra.mxu0 0
        %2395 = vmatprep.subr.bf16.mxu0 0
        %2396 = vmatpush1.bf16.msra.mxu0 0
        %2397 = vmatprep.subr.bf16.mxu0 0
        %2398 = vmatpush1.bf16.msra.mxu0 0
        %2399 = vmatprep.subr.bf16.mxu0 0
        %2400 = vmatpush1.bf16.msra.mxu0 0
        %2401 = vmatprep.subr.bf16.mxu0 0
        %2402 = vmatpush1.bf16.msra.mxu0 0
        %2403 = vmatprep.subr.bf16.mxu0 0
        %2404 = vmatpush1.bf16.msra.mxu0 0
        %2405 = vmatprep.subr.bf16.mxu0 0
        %2406 = vmatpush1.bf16.msra.mxu0 0
        %2407 = vmatprep.mubr.bf16.mxu0 0
        %2408 = vmatmul.mubr.bf16.gmra.mrb[0].mxu0 %v2264
        %v2409 = vpop.f32.mrb[0].mxu0
        %v2410 = vadd.f32 0.0, %v2409
        %v2411 = vpop.f32.mrb[0].mxu0
        %v2412 = vpop.f32.mrb[0].mxu0
        %v2413 = vadd.f32 0.0, %v2412
        %v2414 = vpop.f32.mrb[0].mxu0
        %2415 = vmatprep.mubr.bf16.mxu0 0
        %2416 = vmatmul.mubr.bf16.gmra.mrb[0].mxu0 %v2268
        %v2417 = vpop.f32.mrb[0].mxu0
        %v2418 = vadd.f32 0.0, %v2417
        %v2419 = vpop.f32.mrb[0].mxu0
        %v2420 = vpop.f32.mrb[0].mxu0
        %v2421 = vadd.f32 0.0, %v2420
        %v2422 = vpop.f32.mrb[0].mxu0
        %2423 = vmatprep.mubr.bf16.mxu0 0
        %2424 = vmatmul.mubr.bf16.gmra.mrb[0].mxu0 %v2272
        %v2425 = vpop.f32.mrb[0].mxu0
        %v2426 = vadd.f32 0.0, %v2425
        %v2427 = vpop.f32.mrb[0].mxu0
        %v2428 = vpop.f32.mrb[0].mxu0
        %v2429 = vadd.f32 0.0, %v2428
        %v2430 = vpop.f32.mrb[0].mxu0
        %2431 = vmatprep.mubr.bf16.mxu0 0
        %2432 = vmatmul.mubr.bf16.gmra.mrb[0].mxu0 %v2276
        %v2433 = vpop.f32.mrb[0].mxu0
        %v2434 = vadd.f32 0.0, %v2433
        %v2435 = vpop.f32.mrb[0].mxu0
        %v2436 = vpop.f32.mrb[0].mxu0
        %v2437 = vadd.f32 0.0, %v2436
        %v2438 = vpop.f32.mrb[0].mxu0
        %2439 = vmatprep.mubr.bf16.mxu0 0
        %2440 = vmatmul.mubr.bf16.gmra.mrb[0].mxu0 %v2280
        %v2441 = vpop.f32.mrb[0].mxu0
        %v2442 = vadd.f32 0.0, %v2441
        %v2443 = vpop.f32.mrb[0].mxu0
        %v2444 = vpop.f32.mrb[0].mxu0
        %v2445 = vadd.f32 0.0, %v2444
        %v2446 = vpop.f32.mrb[0].mxu0
        %2447 = vmatprep.mubr.bf16.mxu0 0
        %2448 = vmatmul.mubr.bf16.gmra.mrb[0].mxu0 %v2284
        %v2449 = vpop.f32.mrb[0].mxu0
        %v2450 = vadd.f32 0.0, %v2449
        %v2451 = vpop.f32.mrb[0].mxu0
        %v2452 = vpop.f32.mrb[0].mxu0
        %v2453 = vadd.f32 0.0, %v2452
        %v2454 = vpop.f32.mrb[0].mxu0
        %2455 = vmatprep.mubr.bf16.mxu0 0
        %2456 = vmatmul.mubr.bf16.gmra.mrb[0].mxu0 %v2288
        %v2457 = vpop.f32.mrb[0].mxu0
        %v2458 = vadd.f32 0.0, %v2457
        %v2459 = vpop.f32.mrb[0].mxu0
        %v2460 = vpop.f32.mrb[0].mxu0
        %v2461 = vadd.f32 0.0, %v2460
        %v2462 = vpop.f32.mrb[0].mxu0
        %2463 = vmatprep.mubr.bf16.mxu0 0
        %2464 = vmatmul.mubr.bf16.gmra.mrb[0].mxu0 %v2292
        %v2465 = vpop.f32.mrb[0].mxu0
        %v2466 = vadd.f32 0.0, %v2465
        %v2467 = vpop.f32.mrb[0].mxu0
        %v2468 = vpop.f32.mrb[0].mxu0
        %v2469 = vadd.f32 0.0, %v2468
        %v2470 = vpop.f32.mrb[0].mxu0
        %2471 = vmatprep.mubr.bf16.mxu0 0
        %2472 = vmatmul.mubr.bf16.gmra.mrb[0].mxu0 %v2296
        %v2473 = vpop.f32.mrb[0].mxu0
        %v2474 = vadd.f32 0.0, %v2473
        %v2475 = vpop.f32.mrb[0].mxu0
        %v2476 = vpop.f32.mrb[0].mxu0
        %v2477 = vadd.f32 0.0, %v2476
        %v2478 = vpop.f32.mrb[0].mxu0
        %2479 = vmatprep.mubr.bf16.mxu0 0
        %2480 = vmatmul.mubr.bf16.gmra.mrb[0].mxu0 %v2300
        %v2481 = vpop.f32.mrb[0].mxu0
        %v2482 = vadd.f32 0.0, %v2481
        %v2483 = vpop.f32.mrb[0].mxu0
        %v2484 = vpop.f32.mrb[0].mxu0
        %v2485 = vadd.f32 0.0, %v2484
        %v2486 = vpop.f32.mrb[0].mxu0
        %2487 = vmatprep.mubr.bf16.mxu0 0
        %2488 = vmatmul.mubr.bf16.gmra.mrb[0].mxu0 %v2304
        %v2489 = vpop.f32.mrb[0].mxu0
        %v2490 = vadd.f32 0.0, %v2489
        %v2491 = vpop.f32.mrb[0].mxu0
        %v2492 = vpop.f32.mrb[0].mxu0
        %v2493 = vadd.f32 0.0, %v2492
        %v2494 = vpop.f32.mrb[0].mxu0
        %2495 = vmatprep.mubr.bf16.mxu0 0
        %2496 = vmatmul.mubr.bf16.gmra.mrb[0].mxu0 %v2313
        %v2497 = vpop.f32.mrb[0].mxu0
        %v2498 = vadd.f32 0.0, %v2497
        %v2499 = vpop.f32.mrb[0].mxu0
        %v2500 = vpop.f32.mrb[0].mxu0
        %v2501 = vadd.f32 0.0, %v2500
        %v2502 = vpop.f32.mrb[0].mxu0
        %2503 = vmatprep.mubr.bf16.mxu0 0
        %2504 = vmatmul.mubr.bf16.gmra.mrb[0].mxu0 %v2312
        %v2505 = vpop.f32.mrb[0].mxu0
        %v2506 = vadd.f32 0.0, %v2505
        %v2507 = vpop.f32.mrb[0].mxu0
        %v2508 = vpop.f32.mrb[0].mxu0
        %v2509 = vpop.f32.mrb[0].mxu0
        %2510 = vdwg.mxu0
        %v2511 = vadd.f32 %v2211, %v2410
        %v2512 = vadd.f32 %v2212, %v2413
        %v2513 = vadd.f32 %v2213, %v2418
        %v2514 = vadd.f32 %v2214, %v2421
        %v2515 = vadd.f32 %v2215, %v2426
        %v2516 = vadd.f32 %v2216, %v2429
        %v2517 = vadd.f32 %v2217, %v2434
        %v2518 = vadd.f32 %v2218, %v2437
        %v2519 = vadd.f32 %v2219, %v2442
        %v2520 = vadd.f32 %v2220, %v2445
        %v2521 = vadd.f32 %v2221, %v2450
        %v2522 = vadd.f32 %v2222, %v2453
        %v2523 = vadd.f32 %v2223, %v2458
        %v2524 = vadd.f32 %v2224, %v2461
        %v2525 = vadd.f32 %v2225, %v2466
        %v2526 = vadd.f32 %v2226, %v2469
        %v2527 = vadd.f32 %v2227, %v2474
        %v2528 = vadd.f32 %v2228, %v2477
        %v2529 = vadd.f32 %v2229, %v2482
        %v2530 = vadd.f32 %v2230, %v2485
        %v2531 = vadd.f32 %v2231, %v2490
        %v2532 = vadd.f32 %v2232, %v2493
        %v2533 = vadd.f32 %v2233, %v2498
        %v2534 = vadd.f32 %v2234, %v2501
        %v2535 = vadd.f32 %v2235, %v2506
        %s2536 = scalar_lea.vmem [#allocation5], 448
        %v2537 = vld [vmem:[%s2536] sm:$0xf]
        %v2538 = vld [vmem:[%s2536 + $0x4] sm:$0xf]
        %v2539 = vld [vmem:[%s2536 + $0x8] sm:$0xf]
        %v2540 = vld [vmem:[%s2536 + $0xc] sm:$0xf]
        %v2541 = vld [vmem:[%s2536 + $0x10] sm:$0xf]
        %v2542 = vld [vmem:[%s2536 + $0x14] sm:$0xf]
        %v2543 = vld [vmem:[%s2536 + $0x18] sm:$0xf]
        %v2544 = vld [vmem:[%s2536 + $0x1c] sm:$0xf]
        %v2545 = vld [vmem:[%s2536 + $0x20] sm:$0xf]
        %v2546 = vld [vmem:[%s2536 + $0x24] sm:$0xf]
        %v2547 = vld [vmem:[%s2536 + $0x28] sm:$0xf]
        %v2548 = vld [vmem:[%s2536 + $0x2c] sm:$0xf]
        %v2549 = vld [vmem:[%s2536 + $0x30] sm:$0xf]
        %v2550 = vld [vmem:[%s2536 + $0x34] sm:$0xf]
        %v2551 = vld [vmem:[%s2536 + $0x38] sm:$0xf]
        %v2552 = vld [vmem:[%s2536 + $0x3c] sm:$0xf]
        %v2553 = vrot.slane %v1656, 2
        %v2554 = vrot.slane %v1657, 2
        %v2555 = vsel %vm509, %v2553, %v2554
        %v2556 = vrot.slane %v1658, 2
        %v2557 = vsel %vm509, %v2554, %v2556
        %v2558 = vrot.slane %v1659, 2
        %v2559 = vsel %vm509, %v2556, %v2558
        %v2560 = vrot.slane %v1660, 2
        %v2561 = vsel %vm509, %v2558, %v2560
        %v2562 = vrot.slane %v1661, 2
        %v2563 = vsel %vm509, %v2560, %v2562
        %v2564 = vrot.slane %v1662, 2
        %v2565 = vsel %vm509, %v2562, %v2564
        %v2566 = vrot.slane %v1663, 2
        %v2567 = vsel %vm509, %v2564, %v2566
        %v2568 = vrot.slane %v1664, 2
        %v2569 = vsel %vm509, %v2566, %v2568
        %v2570 = vrot.slane %v1665, 2
        %v2571 = vsel %vm509, %v2568, %v2570
        %v2572 = vrot.slane %v1666, 2
        %v2573 = vsel %vm509, %v2570, %v2572
        %v2574 = vrot.slane %v1909, 2
        %v2575 = vsel %vm509, %v2572, %v2574
        %v2576 = vrot.slane %v2257, 2
        %v2577 = vsel %vm509, %v2574, %v2576
        %v2607 = vunpack.c.l.b16 %v2537
        %v2608 = vunpack.c.l.b16 %v2538
        %v2609 = vunpack.c.l.b16 %v2539
        %v2610 = vunpack.c.l.b16 %v2540
        %v2611 = vunpack.c.l.b16 %v2541
        %v2612 = vunpack.c.l.b16 %v2542
        %v2613 = vunpack.c.l.b16 %v2543
        %v2614 = vunpack.c.l.b16 %v2544
        %v2615 = vunpack.c.l.b16 %v2545
        %v2616 = vunpack.c.l.b16 %v2546
        %v2617 = vunpack.c.l.b16 %v2547
        %v2618 = vunpack.c.l.b16 %v2548
        %v2619 = vunpack.c.l.b16 %v2549
        %v2620 = vunpack.c.l.b16 %v2550
        %v2621 = vunpack.c.l.b16 %v2551
        %v2622 = vunpack.c.l.b16 %v2552
        %v2623 = vpack.c.b16 %v2608, %v2607
        %v2624 = vpack.c.b16 %v2610, %v2609
        %v2625 = vpack.c.b16 %v2612, %v2611
        %v2626 = vpack.c.b16 %v2614, %v2613
        %v2627 = vpack.c.b16 %v2616, %v2615
        %v2628 = vpack.c.b16 %v2618, %v2617
        %v2629 = vpack.c.b16 %v2620, %v2619
        %v2630 = vpack.c.b16 %v2622, %v2621
        %2639 = vmatprep.subr.bf16.mxu0 0
        %2640 = vmatpush1.bf16.msra.mxu0 %v2623
        %2641 = vmatprep.subr.bf16.mxu0 0
        %2642 = vmatpush1.bf16.msra.mxu0 %v2624
        %2643 = vmatprep.subr.bf16.mxu0 0
        %2644 = vmatpush1.bf16.msra.mxu0 %v2625
        %2645 = vmatprep.subr.bf16.mxu0 0
        %2646 = vmatpush1.bf16.msra.mxu0 %v2626
        %2647 = vmatprep.subr.bf16.mxu0 0
        %2648 = vmatpush1.bf16.msra.mxu0 %v2627
        %2649 = vmatprep.subr.bf16.mxu0 0
        %2650 = vmatpush1.bf16.msra.mxu0 %v2628
        %2651 = vmatprep.subr.bf16.mxu0 0
        %2652 = vmatpush1.bf16.msra.mxu0 %v2629
        %2653 = vmatprep.subr.bf16.mxu0 0
        %2654 = vmatpush1.bf16.msra.mxu0 %v2630
        %2655 = vmatprep.subr.bf16.mxu0 0
        %2656 = vmatpush1.bf16.msra.mxu0 0
        %2657 = vmatprep.subr.bf16.mxu0 0
        %2658 = vmatpush1.bf16.msra.mxu0 0
        %2659 = vmatprep.subr.bf16.mxu0 0
        %2660 = vmatpush1.bf16.msra.mxu0 0
        %2661 = vmatprep.subr.bf16.mxu0 0
        %2662 = vmatpush1.bf16.msra.mxu0 0
        %2663 = vmatprep.subr.bf16.mxu0 0
        %2664 = vmatpush1.bf16.msra.mxu0 0
        %2665 = vmatprep.subr.bf16.mxu0 0
        %2666 = vmatpush1.bf16.msra.mxu0 0
        %2667 = vmatprep.subr.bf16.mxu0 0
        %2668 = vmatpush1.bf16.msra.mxu0 0
        %2669 = vmatprep.subr.bf16.mxu0 0
        %2670 = vmatpush1.bf16.msra.mxu0 0
        %2671 = vmatprep.mubr.bf16.mxu0 0
        %2672 = vmatmul.mubr.bf16.gmra.mrb[0].mxu0 %v2555
        %v2673 = vpop.f32.mrb[0].mxu0
        %v2674 = vadd.f32 0.0, %v2673
        %v2675 = vpop.f32.mrb[0].mxu0
        %v2676 = vpop.f32.mrb[0].mxu0
        %v2677 = vadd.f32 0.0, %v2676
        %v2678 = vpop.f32.mrb[0].mxu0
        %2679 = vmatprep.mubr.bf16.mxu0 0
        %2680 = vmatmul.mubr.bf16.gmra.mrb[0].mxu0 %v2557
        %v2681 = vpop.f32.mrb[0].mxu0
        %v2682 = vadd.f32 0.0, %v2681
        %v2683 = vpop.f32.mrb[0].mxu0
        %v2684 = vpop.f32.mrb[0].mxu0
        %v2685 = vadd.f32 0.0, %v2684
        %v2686 = vpop.f32.mrb[0].mxu0
        %2687 = vmatprep.mubr.bf16.mxu0 0
        %2688 = vmatmul.mubr.bf16.gmra.mrb[0].mxu0 %v2559
        %v2689 = vpop.f32.mrb[0].mxu0
        %v2690 = vadd.f32 0.0, %v2689
        %v2691 = vpop.f32.mrb[0].mxu0
        %v2692 = vpop.f32.mrb[0].mxu0
        %v2693 = vadd.f32 0.0, %v2692
        %v2694 = vpop.f32.mrb[0].mxu0
        %2695 = vmatprep.mubr.bf16.mxu0 0
        %2696 = vmatmul.mubr.bf16.gmra.mrb[0].mxu0 %v2561
        %v2697 = vpop.f32.mrb[0].mxu0
        %v2698 = vadd.f32 0.0, %v2697
        %v2699 = vpop.f32.mrb[0].mxu0
        %v2700 = vpop.f32.mrb[0].mxu0
        %v2701 = vadd.f32 0.0, %v2700
        %v2702 = vpop.f32.mrb[0].mxu0
        %2703 = vmatprep.mubr.bf16.mxu0 0
        %2704 = vmatmul.mubr.bf16.gmra.mrb[0].mxu0 %v2563
        %v2705 = vpop.f32.mrb[0].mxu0
        %v2706 = vadd.f32 0.0, %v2705
        %v2707 = vpop.f32.mrb[0].mxu0
        %v2708 = vpop.f32.mrb[0].mxu0
        %v2709 = vadd.f32 0.0, %v2708
        %v2710 = vpop.f32.mrb[0].mxu0
        %2711 = vmatprep.mubr.bf16.mxu0 0
        %2712 = vmatmul.mubr.bf16.gmra.mrb[0].mxu0 %v2565
        %v2713 = vpop.f32.mrb[0].mxu0
        %v2714 = vadd.f32 0.0, %v2713
        %v2715 = vpop.f32.mrb[0].mxu0
        %v2716 = vpop.f32.mrb[0].mxu0
        %v2717 = vadd.f32 0.0, %v2716
        %v2718 = vpop.f32.mrb[0].mxu0
        %2719 = vmatprep.mubr.bf16.mxu0 0
        %2720 = vmatmul.mubr.bf16.gmra.mrb[0].mxu0 %v2567
        %v2721 = vpop.f32.mrb[0].mxu0
        %v2722 = vadd.f32 0.0, %v2721
        %v2723 = vpop.f32.mrb[0].mxu0
        %v2724 = vpop.f32.mrb[0].mxu0
        %v2725 = vadd.f32 0.0, %v2724
        %v2726 = vpop.f32.mrb[0].mxu0
        %2727 = vmatprep.mubr.bf16.mxu0 0
        %2728 = vmatmul.mubr.bf16.gmra.mrb[0].mxu0 %v2569
        %v2729 = vpop.f32.mrb[0].mxu0
        %v2730 = vadd.f32 0.0, %v2729
        %v2731 = vpop.f32.mrb[0].mxu0
        %v2732 = vpop.f32.mrb[0].mxu0
        %v2733 = vadd.f32 0.0, %v2732
        %v2734 = vpop.f32.mrb[0].mxu0
        %2735 = vmatprep.mubr.bf16.mxu0 0
        %2736 = vmatmul.mubr.bf16.gmra.mrb[0].mxu0 %v2571
        %v2737 = vpop.f32.mrb[0].mxu0
        %v2738 = vadd.f32 0.0, %v2737
        %v2739 = vpop.f32.mrb[0].mxu0
        %v2740 = vpop.f32.mrb[0].mxu0
        %v2741 = vadd.f32 0.0, %v2740
        %v2742 = vpop.f32.mrb[0].mxu0
        %2743 = vmatprep.mubr.bf16.mxu0 0
        %2744 = vmatmul.mubr.bf16.gmra.mrb[0].mxu0 %v2573
        %v2745 = vpop.f32.mrb[0].mxu0
        %v2746 = vadd.f32 0.0, %v2745
        %v2747 = vpop.f32.mrb[0].mxu0
        %v2748 = vpop.f32.mrb[0].mxu0
        %v2749 = vadd.f32 0.0, %v2748
        %v2750 = vpop.f32.mrb[0].mxu0
        %2751 = vmatprep.mubr.bf16.mxu0 0
        %2752 = vmatmul.mubr.bf16.gmra.mrb[0].mxu0 %v2575
        %v2753 = vpop.f32.mrb[0].mxu0
        %v2754 = vadd.f32 0.0, %v2753
        %v2755 = vpop.f32.mrb[0].mxu0
        %v2756 = vpop.f32.mrb[0].mxu0
        %v2757 = vadd.f32 0.0, %v2756
        %v2758 = vpop.f32.mrb[0].mxu0
        %2759 = vmatprep.mubr.bf16.mxu0 0
        %2760 = vmatmul.mubr.bf16.gmra.mrb[0].mxu0 %v2577
        %v2761 = vpop.f32.mrb[0].mxu0
        %v2762 = vadd.f32 0.0, %v2761
        %v2763 = vpop.f32.mrb[0].mxu0
        %v2764 = vpop.f32.mrb[0].mxu0
        %v2765 = vadd.f32 0.0, %v2764
        %v2766 = vpop.f32.mrb[0].mxu0
        %2767 = vmatprep.mubr.bf16.mxu0 0
        %2768 = vmatmul.mubr.bf16.gmra.mrb[0].mxu0 %v2576
        %v2769 = vpop.f32.mrb[0].mxu0
        %v2770 = vadd.f32 0.0, %v2769
        %v2771 = vpop.f32.mrb[0].mxu0
        %v2772 = vpop.f32.mrb[0].mxu0
        %v2773 = vpop.f32.mrb[0].mxu0
        %2774 = vdwg.mxu0
        %v2775 = vadd.f32 %v2511, %v2674
        %v2776 = vadd.f32 %v2512, %v2677
        %v2777 = vadd.f32 %v2513, %v2682
        %v2778 = vadd.f32 %v2514, %v2685
        %v2779 = vadd.f32 %v2515, %v2690
        %v2780 = vadd.f32 %v2516, %v2693
        %v2781 = vadd.f32 %v2517, %v2698
        %v2782 = vadd.f32 %v2518, %v2701
        %v2783 = vadd.f32 %v2519, %v2706
        %v2784 = vadd.f32 %v2520, %v2709
        %v2785 = vadd.f32 %v2521, %v2714
        %v2786 = vadd.f32 %v2522, %v2717
        %v2787 = vadd.f32 %v2523, %v2722
        %v2788 = vadd.f32 %v2524, %v2725
        %v2789 = vadd.f32 %v2525, %v2730
        %v2790 = vadd.f32 %v2526, %v2733
        %v2791 = vadd.f32 %v2527, %v2738
        %v2792 = vadd.f32 %v2528, %v2741
        %v2793 = vadd.f32 %v2529, %v2746
        %v2794 = vadd.f32 %v2530, %v2749
        %v2795 = vadd.f32 %v2531, %v2754
        %v2796 = vadd.f32 %v2532, %v2757
        %v2797 = vadd.f32 %v2533, %v2762
        %v2798 = vadd.f32 %v2534, %v2765
        %v2799 = vadd.f32 %v2535, %v2770
        %s2800 = scalar_lea.vmem [#allocation5], 512
        %v2801 = vld [vmem:[%s2800] sm:$0xf]
        %v2802 = vld [vmem:[%s2800 + $0x4] sm:$0xf]
        %v2803 = vld [vmem:[%s2800 + $0x8] sm:$0xf]
        %v2804 = vld [vmem:[%s2800 + $0xc] sm:$0xf]
        %v2805 = vld [vmem:[%s2800 + $0x10] sm:$0xf]
        %v2806 = vld [vmem:[%s2800 + $0x14] sm:$0xf]
        %v2807 = vld [vmem:[%s2800 + $0x18] sm:$0xf]
        %v2808 = vld [vmem:[%s2800 + $0x1c] sm:$0xf]
        %v2809 = vld [vmem:[%s2800 + $0x20] sm:$0xf]
        %v2810 = vld [vmem:[%s2800 + $0x24] sm:$0xf]
        %v2811 = vld [vmem:[%s2800 + $0x28] sm:$0xf]
        %v2812 = vld [vmem:[%s2800 + $0x2c] sm:$0xf]
        %v2813 = vld [vmem:[%s2800 + $0x30] sm:$0xf]
        %v2814 = vld [vmem:[%s2800 + $0x34] sm:$0xf]
        %v2815 = vld [vmem:[%s2800 + $0x38] sm:$0xf]
        %v2816 = vld [vmem:[%s2800 + $0x3c] sm:$0xf]
        %v2817 = vrot.slane %v1923, 2
        %v2818 = vrot.slane %v1919, 3
        %v2819 = vor.u32 %v2817, %v2818
        %v2820 = vrot.slane %v1931, 2
        %v2821 = vrot.slane %v1927, 3
        %v2822 = vor.u32 %v2820, %v2821
        %v2823 = vsel %vm1063, %v2819, %v2822
        %v2824 = vrot.slane %v1939, 2
        %v2825 = vrot.slane %v1935, 3
        %v2826 = vor.u32 %v2824, %v2825
        %v2827 = vsel %vm1063, %v2822, %v2826
        %v2828 = vrot.slane %v1947, 2
        %v2829 = vrot.slane %v1943, 3
        %v2830 = vor.u32 %v2828, %v2829
        %v2831 = vsel %vm1063, %v2826, %v2830
        %v2832 = vrot.slane %v1955, 2
        %v2833 = vrot.slane %v1951, 3
        %v2834 = vor.u32 %v2832, %v2833
        %v2835 = vsel %vm1063, %v2830, %v2834
        %v2836 = vrot.slane %v1963, 2
        %v2837 = vrot.slane %v1959, 3
        %v2838 = vor.u32 %v2836, %v2837
        %v2839 = vsel %vm1063, %v2834, %v2838
        %v2840 = vrot.slane %v1971, 2
        %v2841 = vrot.slane %v1967, 3
        %v2842 = vor.u32 %v2840, %v2841
        %v2843 = vsel %vm1063, %v2838, %v2842
        %v2844 = vrot.slane %v1979, 2
        %v2845 = vrot.slane %v1975, 3
        %v2846 = vor.u32 %v2844, %v2845
        %v2847 = vsel %vm1063, %v2842, %v2846
        %v2848 = vrot.slane %v1987, 2
        %v2849 = vrot.slane %v1983, 3
        %v2850 = vor.u32 %v2848, %v2849
        %v2851 = vsel %vm1063, %v2846, %v2850
        %v2852 = vrot.slane %v1995, 2
        %v2853 = vrot.slane %v1991, 3
        %v2854 = vor.u32 %v2852, %v2853
        %v2855 = vsel %vm1063, %v2850, %v2854
        %v2856 = vrot.slane %v2003, 2
        %v2857 = vrot.slane %v1999, 3
        %v2858 = vor.u32 %v2856, %v2857
        %v2859 = vsel %vm1063, %v2854, %v2858
        %v2860 = vrot.slane %v2011, 2
        %v2861 = vrot.slane %v2007, 3
        %v2862 = vor.u32 %v2860, %v2861
        %v2863 = vsel %vm1063, %v2858, %v2862
        %v2864 = vrot.slane %v2306, 2
        %v2865 = vrot.slane %v2309, 3
        %v2866 = vor.u32 %v2864, %v2865
        %v2867 = vsel %vm1063, %v2862, %v2866
        %v2897 = vunpack.c.l.b16 %v2801
        %v2898 = vunpack.c.l.b16 %v2802
        %v2899 = vunpack.c.l.b16 %v2803
        %v2900 = vunpack.c.l.b16 %v2804
        %v2901 = vunpack.c.l.b16 %v2805
        %v2902 = vunpack.c.l.b16 %v2806
        %v2903 = vunpack.c.l.b16 %v2807
        %v2904 = vunpack.c.l.b16 %v2808
        %v2905 = vunpack.c.l.b16 %v2809
        %v2906 = vunpack.c.l.b16 %v2810
        %v2907 = vunpack.c.l.b16 %v2811
        %v2908 = vunpack.c.l.b16 %v2812
        %v2909 = vunpack.c.l.b16 %v2813
        %v2910 = vunpack.c.l.b16 %v2814
        %v2911 = vunpack.c.l.b16 %v2815
        %v2912 = vunpack.c.l.b16 %v2816
        %v2913 = vpack.c.b16 %v2898, %v2897
        %v2914 = vpack.c.b16 %v2900, %v2899
        %v2915 = vpack.c.b16 %v2902, %v2901
        %v2916 = vpack.c.b16 %v2904, %v2903
        %v2917 = vpack.c.b16 %v2906, %v2905
        %v2918 = vpack.c.b16 %v2908, %v2907
        %v2919 = vpack.c.b16 %v2910, %v2909
        %v2920 = vpack.c.b16 %v2912, %v2911
        %2929 = vmatprep.subr.bf16.mxu0 0
        %2930 = vmatpush1.bf16.msra.mxu0 %v2913
        %2931 = vmatprep.subr.bf16.mxu0 0
        %2932 = vmatpush1.bf16.msra.mxu0 %v2914
        %2933 = vmatprep.subr.bf16.mxu0 0
        %2934 = vmatpush1.bf16.msra.mxu0 %v2915
        %2935 = vmatprep.subr.bf16.mxu0 0
        %2936 = vmatpush1.bf16.msra.mxu0 %v2916
        %2937 = vmatprep.subr.bf16.mxu0 0
        %2938 = vmatpush1.bf16.msra.mxu0 %v2917
        %2939 = vmatprep.subr.bf16.mxu0 0
        %2940 = vmatpush1.bf16.msra.mxu0 %v2918
        %2941 = vmatprep.subr.bf16.mxu0 0
        %2942 = vmatpush1.bf16.msra.mxu0 %v2919
        %2943 = vmatprep.subr.bf16.mxu0 0
        %2944 = vmatpush1.bf16.msra.mxu0 %v2920
        %2945 = vmatprep.subr.bf16.mxu0 0
        %2946 = vmatpush1.bf16.msra.mxu0 0
        %2947 = vmatprep.subr.bf16.mxu0 0
        %2948 = vmatpush1.bf16.msra.mxu0 0
        %2949 = vmatprep.subr.bf16.mxu0 0
        %2950 = vmatpush1.bf16.msra.mxu0 0
        %2951 = vmatprep.subr.bf16.mxu0 0
        %2952 = vmatpush1.bf16.msra.mxu0 0
        %2953 = vmatprep.subr.bf16.mxu0 0
        %2954 = vmatpush1.bf16.msra.mxu0 0
        %2955 = vmatprep.subr.bf16.mxu0 0
        %2956 = vmatpush1.bf16.msra.mxu0 0
        %2957 = vmatprep.subr.bf16.mxu0 0
        %2958 = vmatpush1.bf16.msra.mxu0 0
        %2959 = vmatprep.subr.bf16.mxu0 0
        %2960 = vmatpush1.bf16.msra.mxu0 0
        %2961 = vmatprep.mubr.bf16.mxu0 0
        %2962 = vmatmul.mubr.bf16.gmra.mrb[0].mxu0 %v2823
        %v2963 = vpop.f32.mrb[0].mxu0
        %v2964 = vadd.f32 0.0, %v2963
        %v2965 = vpop.f32.mrb[0].mxu0
        %v2966 = vpop.f32.mrb[0].mxu0
        %v2967 = vadd.f32 0.0, %v2966
        %v2968 = vpop.f32.mrb[0].mxu0
        %2969 = vmatprep.mubr.bf16.mxu0 0
        %2970 = vmatmul.mubr.bf16.gmra.mrb[0].mxu0 %v2827
        %v2971 = vpop.f32.mrb[0].mxu0
        %v2972 = vadd.f32 0.0, %v2971
        %v2973 = vpop.f32.mrb[0].mxu0
        %v2974 = vpop.f32.mrb[0].mxu0
        %v2975 = vadd.f32 0.0, %v2974
        %v2976 = vpop.f32.mrb[0].mxu0
        %2977 = vmatprep.mubr.bf16.mxu0 0
        %2978 = vmatmul.mubr.bf16.gmra.mrb[0].mxu0 %v2831
        %v2979 = vpop.f32.mrb[0].mxu0
        %v2980 = vadd.f32 0.0, %v2979
        %v2981 = vpop.f32.mrb[0].mxu0
        %v2982 = vpop.f32.mrb[0].mxu0
        %v2983 = vadd.f32 0.0, %v2982
        %v2984 = vpop.f32.mrb[0].mxu0
        %2985 = vmatprep.mubr.bf16.mxu0 0
        %2986 = vmatmul.mubr.bf16.gmra.mrb[0].mxu0 %v2835
        %v2987 = vpop.f32.mrb[0].mxu0
        %v2988 = vadd.f32 0.0, %v2987
        %v2989 = vpop.f32.mrb[0].mxu0
        %v2990 = vpop.f32.mrb[0].mxu0
        %v2991 = vadd.f32 0.0, %v2990
        %v2992 = vpop.f32.mrb[0].mxu0
        %2993 = vmatprep.mubr.bf16.mxu0 0
        %2994 = vmatmul.mubr.bf16.gmra.mrb[0].mxu0 %v2839
        %v2995 = vpop.f32.mrb[0].mxu0
        %v2996 = vadd.f32 0.0, %v2995
        %v2997 = vpop.f32.mrb[0].mxu0
        %v2998 = vpop.f32.mrb[0].mxu0
        %v2999 = vadd.f32 0.0, %v2998
        %v3000 = vpop.f32.mrb[0].mxu0
        %3001 = vmatprep.mubr.bf16.mxu0 0
        %3002 = vmatmul.mubr.bf16.gmra.mrb[0].mxu0 %v2843
        %v3003 = vpop.f32.mrb[0].mxu0
        %v3004 = vadd.f32 0.0, %v3003
        %v3005 = vpop.f32.mrb[0].mxu0
        %v3006 = vpop.f32.mrb[0].mxu0
        %v3007 = vadd.f32 0.0, %v3006
        %v3008 = vpop.f32.mrb[0].mxu0
        %3009 = vmatprep.mubr.bf16.mxu0 0
        %3010 = vmatmul.mubr.bf16.gmra.mrb[0].mxu0 %v2847
        %v3011 = vpop.f32.mrb[0].mxu0
        %v3012 = vadd.f32 0.0, %v3011
        %v3013 = vpop.f32.mrb[0].mxu0
        %v3014 = vpop.f32.mrb[0].mxu0
        %v3015 = vadd.f32 0.0, %v3014
        %v3016 = vpop.f32.mrb[0].mxu0
        %3017 = vmatprep.mubr.bf16.mxu0 0
        %3018 = vmatmul.mubr.bf16.gmra.mrb[0].mxu0 %v2851
        %v3019 = vpop.f32.mrb[0].mxu0
        %v3020 = vadd.f32 0.0, %v3019
        %v3021 = vpop.f32.mrb[0].mxu0
        %v3022 = vpop.f32.mrb[0].mxu0
        %v3023 = vadd.f32 0.0, %v3022
        %v3024 = vpop.f32.mrb[0].mxu0
        %3025 = vmatprep.mubr.bf16.mxu0 0
        %3026 = vmatmul.mubr.bf16.gmra.mrb[0].mxu0 %v2855
        %v3027 = vpop.f32.mrb[0].mxu0
        %v3028 = vadd.f32 0.0, %v3027
        %v3029 = vpop.f32.mrb[0].mxu0
        %v3030 = vpop.f32.mrb[0].mxu0
        %v3031 = vadd.f32 0.0, %v3030
        %v3032 = vpop.f32.mrb[0].mxu0
        %3033 = vmatprep.mubr.bf16.mxu0 0
        %3034 = vmatmul.mubr.bf16.gmra.mrb[0].mxu0 %v2859
        %v3035 = vpop.f32.mrb[0].mxu0
        %v3036 = vadd.f32 0.0, %v3035
        %v3037 = vpop.f32.mrb[0].mxu0
        %v3038 = vpop.f32.mrb[0].mxu0
        %v3039 = vadd.f32 0.0, %v3038
        %v3040 = vpop.f32.mrb[0].mxu0
        %3041 = vmatprep.mubr.bf16.mxu0 0
        %3042 = vmatmul.mubr.bf16.gmra.mrb[0].mxu0 %v2863
        %v3043 = vpop.f32.mrb[0].mxu0
        %v3044 = vadd.f32 0.0, %v3043
        %v3045 = vpop.f32.mrb[0].mxu0
        %v3046 = vpop.f32.mrb[0].mxu0
        %v3047 = vadd.f32 0.0, %v3046
        %v3048 = vpop.f32.mrb[0].mxu0
        %3049 = vmatprep.mubr.bf16.mxu0 0
        %3050 = vmatmul.mubr.bf16.gmra.mrb[0].mxu0 %v2867
        %v3051 = vpop.f32.mrb[0].mxu0
        %v3052 = vadd.f32 0.0, %v3051
        %v3053 = vpop.f32.mrb[0].mxu0
        %v3054 = vpop.f32.mrb[0].mxu0
        %v3055 = vadd.f32 0.0, %v3054
        %v3056 = vpop.f32.mrb[0].mxu0
        %3057 = vmatprep.mubr.bf16.mxu0 0
        %3058 = vmatmul.mubr.bf16.gmra.mrb[0].mxu0 %v2866
        %v3059 = vpop.f32.mrb[0].mxu0
        %v3060 = vadd.f32 0.0, %v3059
        %v3061 = vpop.f32.mrb[0].mxu0
        %v3062 = vpop.f32.mrb[0].mxu0
        %v3063 = vpop.f32.mrb[0].mxu0
        %3064 = vdwg.mxu0
        %v3065 = vadd.f32 %v2775, %v2964
        %v3066 = vadd.f32 %v2776, %v2967
        %v3067 = vadd.f32 %v2777, %v2972
        %v3068 = vadd.f32 %v2778, %v2975
        %v3069 = vadd.f32 %v2779, %v2980
        %v3070 = vadd.f32 %v2780, %v2983
        %v3071 = vadd.f32 %v2781, %v2988
        %v3072 = vadd.f32 %v2782, %v2991
        %v3073 = vadd.f32 %v2783, %v2996
        %v3074 = vadd.f32 %v2784, %v2999
        %v3075 = vadd.f32 %v2785, %v3004
        %v3076 = vadd.f32 %v2786, %v3007
        %v3077 = vadd.f32 %v2787, %v3012
        %v3078 = vadd.f32 %v2788, %v3015
        %v3079 = vadd.f32 %v2789, %v3020
        %v3080 = vadd.f32 %v2790, %v3023
        %v3081 = vadd.f32 %v2791, %v3028
        %v3082 = vadd.f32 %v2792, %v3031
        %v3083 = vadd.f32 %v2793, %v3036
        %v3084 = vadd.f32 %v2794, %v3039
        %v3085 = vadd.f32 %v2795, %v3044
        %v3086 = vadd.f32 %v2796, %v3047
        %v3087 = vadd.f32 %v2797, %v3052
        %v3088 = vadd.f32 %v2798, %v3055
        %v3089 = vadd.f32 %v2799, %v3060
        %v3090 = vld [vmem:[%s2] sm:$0x1]
        %v3092 = vlaneseq
        %v3093 = vshrl.u32 %v3092, 7
        %v3094 = vsub.s32 0, %v3093
        %v3095 = vrot.slane %v3090, %v3094
        %v3097 = vadd.f32 %v3065, %v3095
        %v3098 = vadd.f32 %v3066, %v3095
        %v3099 = vadd.f32 %v3067, %v3095
        %v3100 = vadd.f32 %v3068, %v3095
        %v3101 = vadd.f32 %v3069, %v3095
        %v3102 = vadd.f32 %v3070, %v3095
        %v3103 = vadd.f32 %v3071, %v3095
        %v3104 = vadd.f32 %v3072, %v3095
        %v3105 = vadd.f32 %v3073, %v3095
        %v3106 = vadd.f32 %v3074, %v3095
        %v3107 = vadd.f32 %v3075, %v3095
        %v3108 = vadd.f32 %v3076, %v3095
        %v3109 = vadd.f32 %v3077, %v3095
        %v3110 = vadd.f32 %v3078, %v3095
        %v3111 = vadd.f32 %v3079, %v3095
        %v3112 = vadd.f32 %v3080, %v3095
        %v3113 = vadd.f32 %v3081, %v3095
        %v3114 = vadd.f32 %v3082, %v3095
        %v3115 = vadd.f32 %v3083, %v3095
        %v3116 = vadd.f32 %v3084, %v3095
        %v3117 = vadd.f32 %v3085, %v3095
        %v3118 = vadd.f32 %v3086, %v3095
        %v3119 = vadd.f32 %v3087, %v3095
        %v3120 = vadd.f32 %v3088, %v3095
        %v3121 = vadd.f32 %v3089, %v3095
        %v3122 = vmax.f32 %v3097, 0.0
        %v3123 = vmax.f32 %v3098, 0.0
        %v3124 = vmax.f32 %v3099, 0.0
        %v3125 = vmax.f32 %v3100, 0.0
        %v3126 = vmax.f32 %v3101, 0.0
        %v3127 = vmax.f32 %v3102, 0.0
        %v3128 = vmax.f32 %v3103, 0.0
        %v3129 = vmax.f32 %v3104, 0.0
        %v3130 = vmax.f32 %v3105, 0.0
        %v3131 = vmax.f32 %v3106, 0.0
        %v3132 = vmax.f32 %v3107, 0.0
        %v3133 = vmax.f32 %v3108, 0.0
        %v3134 = vmax.f32 %v3109, 0.0
        %v3135 = vmax.f32 %v3110, 0.0
        %v3136 = vmax.f32 %v3111, 0.0
        %v3137 = vmax.f32 %v3112, 0.0
        %v3138 = vmax.f32 %v3113, 0.0
        %v3139 = vmax.f32 %v3114, 0.0
        %v3140 = vmax.f32 %v3115, 0.0
        %v3141 = vmax.f32 %v3116, 0.0
        %v3142 = vmax.f32 %v3117, 0.0
        %v3143 = vmax.f32 %v3118, 0.0
        %v3144 = vmax.f32 %v3119, 0.0
        %v3145 = vmax.f32 %v3120, 0.0
        %v3146 = vmax.f32 %v3121, 0.0
        %v3147 = vld [vmem:[%s7] sm:$0xff]
        %v3148 = vld [vmem:[%s7 + $0x8] sm:$0xff]
        %v3149 = vld [vmem:[%s7 + $0x10] sm:$0xff]
        %v3150 = vld [vmem:[%s7 + $0x18] sm:$0xff]
        %v3151 = vld [vmem:[%s7 + $0x20] sm:$0xff]
        %v3152 = vld [vmem:[%s7 + $0x28] sm:$0xff]
        %v3153 = vld [vmem:[%s7 + $0x30] sm:$0xff]
        %v3154 = vld [vmem:[%s7 + $0x38] sm:$0xff]
        %v3155 = vld [vmem:[%s7 + $0x40] sm:$0xff]
        %v3156 = vld [vmem:[%s7 + $0x48] sm:$0xff]
        %v3157 = vld [vmem:[%s7 + $0x50] sm:$0xff]
        %v3158 = vld [vmem:[%s7 + $0x58] sm:$0xff]
        %v3159 = vld [vmem:[%s7 + $0x60] sm:$0xff]
        %v3160 = vld [vmem:[%s7 + $0x68] sm:$0xff]
        %v3161 = vld [vmem:[%s7 + $0x70] sm:$0xff]
        %v3162 = vld [vmem:[%s7 + $0x78] sm:$0xff]
        %v3163 = vld [vmem:[%s7 + $0x80] sm:$0xff]
        %v3164 = vld [vmem:[%s7 + $0x88] sm:$0xff]
        %v3165 = vld [vmem:[%s7 + $0x90] sm:$0xff]
        %v3166 = vld [vmem:[%s7 + $0x98] sm:$0xff]
        %v3167 = vld [vmem:[%s7 + $0xa0] sm:$0xff]
        %v3168 = vld [vmem:[%s7 + $0xa8] sm:$0xff]
        %v3169 = vld [vmem:[%s7 + $0xb0] sm:$0xff]
        %v3170 = vld [vmem:[%s7 + $0xb8] sm:$0xff]
        %v3171 = vld [vmem:[%s7 + $0xc0] sm:$0xff]
        %3173 = vset.pattern.permute.xlu0 0
        %3174 = vperm.xlu0 %3173, %v3147
        %v3175 = vpop.permute.xlu0 %3174
        %3178 = vset.pattern.permute.xlu0 0
        %3179 = vperm.xlu0 %3178, %v3148
        %v3180 = vpop.permute.xlu0 %3179
        %3183 = vset.pattern.permute.xlu0 0
        %3184 = vperm.xlu0 %3183, %v3149
        %v3185 = vpop.permute.xlu0 %3184
        %3188 = vset.pattern.permute.xlu0 0
        %3189 = vperm.xlu0 %3188, %v3150
        %v3190 = vpop.permute.xlu0 %3189
        %3193 = vset.pattern.permute.xlu0 0
        %3194 = vperm.xlu0 %3193, %v3151
        %v3195 = vpop.permute.xlu0 %3194
        %3198 = vset.pattern.permute.xlu0 0
        %3199 = vperm.xlu0 %3198, %v3152
        %v3200 = vpop.permute.xlu0 %3199
        %3203 = vset.pattern.permute.xlu0 0
        %3204 = vperm.xlu0 %3203, %v3153
        %v3205 = vpop.permute.xlu0 %3204
        %3208 = vset.pattern.permute.xlu0 0
        %3209 = vperm.xlu0 %3208, %v3154
        %v3210 = vpop.permute.xlu0 %3209
        %3213 = vset.pattern.permute.xlu0 0
        %3214 = vperm.xlu0 %3213, %v3155
        %v3215 = vpop.permute.xlu0 %3214
        %3218 = vset.pattern.permute.xlu0 0
        %3219 = vperm.xlu0 %3218, %v3156
        %v3220 = vpop.permute.xlu0 %3219
        %3223 = vset.pattern.permute.xlu0 0
        %3224 = vperm.xlu0 %3223, %v3157
        %v3225 = vpop.permute.xlu0 %3224
        %3228 = vset.pattern.permute.xlu0 0
        %3229 = vperm.xlu0 %3228, %v3158
        %v3230 = vpop.permute.xlu0 %3229
        %3233 = vset.pattern.permute.xlu0 0
        %3234 = vperm.xlu0 %3233, %v3159
        %v3235 = vpop.permute.xlu0 %3234
        %3238 = vset.pattern.permute.xlu0 0
        %3239 = vperm.xlu0 %3238, %v3160
        %v3240 = vpop.permute.xlu0 %3239
        %3243 = vset.pattern.permute.xlu0 0
        %3244 = vperm.xlu0 %3243, %v3161
        %v3245 = vpop.permute.xlu0 %3244
        %3248 = vset.pattern.permute.xlu0 0
        %3249 = vperm.xlu0 %3248, %v3162
        %v3250 = vpop.permute.xlu0 %3249
        %3253 = vset.pattern.permute.xlu0 0
        %3254 = vperm.xlu0 %3253, %v3163
        %v3255 = vpop.permute.xlu0 %3254
        %3258 = vset.pattern.permute.xlu0 0
        %3259 = vperm.xlu0 %3258, %v3164
        %v3260 = vpop.permute.xlu0 %3259
        %3263 = vset.pattern.permute.xlu0 0
        %3264 = vperm.xlu0 %3263, %v3165
        %v3265 = vpop.permute.xlu0 %3264
        %3268 = vset.pattern.permute.xlu0 0
        %3269 = vperm.xlu0 %3268, %v3166
        %v3270 = vpop.permute.xlu0 %3269
        %3273 = vset.pattern.permute.xlu0 0
        %3274 = vperm.xlu0 %3273, %v3167
        %v3275 = vpop.permute.xlu0 %3274
        %3278 = vset.pattern.permute.xlu0 0
        %3279 = vperm.xlu0 %3278, %v3168
        %v3280 = vpop.permute.xlu0 %3279
        %3283 = vset.pattern.permute.xlu0 0
        %3284 = vperm.xlu0 %3283, %v3169
        %v3285 = vpop.permute.xlu0 %3284
        %3288 = vset.pattern.permute.xlu0 0
        %3289 = vperm.xlu0 %3288, %v3170
        %v3290 = vpop.permute.xlu0 %3289
        %3293 = vset.pattern.permute.xlu0 0
        %3294 = vperm.xlu0 %3293, %v3171
        %v3295 = vpop.permute.xlu0 %3294
        %v3297 = vmul.f32 %v3122, %v3175
        %v3298 = vmul.f32 %v3123, %v3180
        %v3299 = vmul.f32 %v3124, %v3185
        %v3300 = vmul.f32 %v3125, %v3190
        %v3301 = vmul.f32 %v3126, %v3195
        %v3302 = vmul.f32 %v3127, %v3200
        %v3303 = vmul.f32 %v3128, %v3205
        %v3304 = vmul.f32 %v3129, %v3210
        %v3305 = vmul.f32 %v3130, %v3215
        %v3306 = vmul.f32 %v3131, %v3220
        %v3307 = vmul.f32 %v3132, %v3225
        %v3308 = vmul.f32 %v3133, %v3230
        %v3309 = vmul.f32 %v3134, %v3235
        %v3310 = vmul.f32 %v3135, %v3240
        %v3311 = vmul.f32 %v3136, %v3245
        %v3312 = vmul.f32 %v3137, %v3250
        %v3313 = vmul.f32 %v3138, %v3255
        %v3314 = vmul.f32 %v3139, %v3260
        %v3315 = vmul.f32 %v3140, %v3265
        %v3316 = vmul.f32 %v3141, %v3270
        %v3317 = vmul.f32 %v3142, %v3275
        %v3318 = vmul.f32 %v3143, %v3280
        %v3319 = vmul.f32 %v3144, %v3285
        %v3320 = vmul.f32 %v3145, %v3290
        %v3321 = vmul.f32 %v3146, %v3295
        %vm3322 = vcmask 1043459
        %vm3323 = vsmask.f32 7950
        %vm3324 = vmand %vm3322, %vm3323
        %v3325 = vld [vmem:[#allocation3] sm:$0x8]
        %v3326 = vsel %vm3324, 0, %v3325
        %3327 = vst [vmem:[#allocation3] sm:$0x8] %v3326
        %vm3328 = vcmask 1040384
        %vm3329 = vsmask.f32 256
        %vm3330 = vmand %vm3328, %vm3329
        %v3331 = vld [vmem:[#allocation3 + $0x68] sm:$0x1]
        %v3332 = vsel %vm3330, 0, %v3331
        %3333 = vst [vmem:[#allocation3 + $0x68] sm:$0x1] %v3332
        %v3334 = vpack.c.bf16 %v3298, %v3297
        %v3335 = vpack.c.bf16 %v3300, %v3299
        %v3336 = vpack.c.bf16 %v3302, %v3301
        %v3337 = vpack.c.bf16 %v3304, %v3303
        %v3338 = vpack.c.bf16 %v3306, %v3305
        %v3339 = vpack.c.bf16 %v3308, %v3307
        %v3340 = vpack.c.bf16 %v3310, %v3309
        %v3341 = vpack.c.bf16 %v3312, %v3311
        %v3342 = vpack.c.bf16 %v3314, %v3313
        %v3343 = vpack.c.bf16 %v3316, %v3315
        %v3344 = vpack.c.bf16 %v3318, %v3317
        %v3345 = vpack.c.bf16 %v3320, %v3319
        %v3346 = vpack.c.bf16 %v3321, %v3321
        %v3360 = vunpack.c.l.b16 %v3334
        %v3361 = vunpack.c.h.b16 %v3334
        %v3362 = vunpack.c.l.b16 %v3335
        %v3363 = vunpack.c.h.b16 %v3335
        %v3364 = vunpack.c.l.b16 %v3336
        %v3365 = vunpack.c.h.b16 %v3336
        %v3366 = vunpack.c.l.b16 %v3337
        %v3367 = vunpack.c.h.b16 %v3337
        %v3368 = vunpack.c.l.b16 %v3338
        %v3369 = vunpack.c.h.b16 %v3338
        %v3370 = vunpack.c.l.b16 %v3339
        %v3371 = vunpack.c.h.b16 %v3339
        %v3372 = vunpack.c.l.b16 %v3340
        %v3373 = vunpack.c.h.b16 %v3340
        %v3374 = vunpack.c.l.b16 %v3341
        %v3375 = vunpack.c.h.b16 %v3341
        %v3376 = vunpack.c.l.b16 %v3342
        %v3377 = vunpack.c.h.b16 %v3342
        %v3378 = vunpack.c.l.b16 %v3343
        %v3379 = vunpack.c.h.b16 %v3343
        %v3380 = vunpack.c.l.b16 %v3344
        %v3381 = vunpack.c.h.b16 %v3344
        %v3382 = vunpack.c.l.b16 %v3345
        %v3383 = vunpack.c.h.b16 %v3345
        %v3384 = vunpack.c.l.b16 %v3346
        %v3385 = vpack.c.b16 %v3360, %v3360
        %v3386 = vpack.c.b16 %v3361, %v3361
        %v3387 = vpack.c.b16 %v3362, %v3362
        %v3388 = vpack.c.b16 %v3363, %v3363
        %v3389 = vpack.c.b16 %v3364, %v3364
        %v3390 = vpack.c.b16 %v3365, %v3365
        %v3391 = vpack.c.b16 %v3366, %v3366
        %v3392 = vpack.c.b16 %v3367, %v3367
        %v3393 = vpack.c.b16 %v3368, %v3368
        %v3394 = vpack.c.b16 %v3369, %v3369
        %v3395 = vpack.c.b16 %v3370, %v3370
        %v3396 = vpack.c.b16 %v3371, %v3371
        %v3397 = vpack.c.b16 %v3372, %v3372
        %v3398 = vpack.c.b16 %v3373, %v3373
        %v3399 = vpack.c.b16 %v3374, %v3374
        %v3400 = vpack.c.b16 %v3375, %v3375
        %v3401 = vpack.c.b16 %v3376, %v3376
        %v3402 = vpack.c.b16 %v3377, %v3377
        %v3403 = vpack.c.b16 %v3378, %v3378
        %v3404 = vpack.c.b16 %v3379, %v3379
        %v3405 = vpack.c.b16 %v3380, %v3380
        %v3406 = vpack.c.b16 %v3381, %v3381
        %v3407 = vpack.c.b16 %v3382, %v3382
        %v3408 = vpack.c.b16 %v3383, %v3383
        %v3409 = vpack.c.b16 %v3384, %v3384
        %3435 = vst [vmem:[#allocation3 + $0x4] sm:$0xf] %v3385
        %3436 = vst [vmem:[#allocation3 + $0x8] sm:$0xf] %v3386
        %3437 = vst [vmem:[#allocation3 + $0xc] sm:$0xf] %v3387
        %3438 = vst [vmem:[#allocation3 + $0x10] sm:$0xf] %v3388
        %3439 = vst [vmem:[#allocation3 + $0x14] sm:$0xf] %v3389
        %3440 = vst [vmem:[#allocation3 + $0x18] sm:$0xf] %v3390
        %3441 = vst [vmem:[#allocation3 + $0x1c] sm:$0xf] %v3391
        %3442 = vst [vmem:[#allocation3 + $0x20] sm:$0xf] %v3392
        %3443 = vst [vmem:[#allocation3 + $0x24] sm:$0xf] %v3393
        %3444 = vst [vmem:[#allocation3 + $0x28] sm:$0xf] %v3394
        %3445 = vst [vmem:[#allocation3 + $0x2c] sm:$0xf] %v3395
        %3446 = vst [vmem:[#allocation3 + $0x30] sm:$0xf] %v3396
        %3447 = vst [vmem:[#allocation3 + $0x34] sm:$0xf] %v3397
        %3448 = vst [vmem:[#allocation3 + $0x38] sm:$0xf] %v3398
        %3449 = vst [vmem:[#allocation3 + $0x3c] sm:$0xf] %v3399
        %3450 = vst [vmem:[#allocation3 + $0x40] sm:$0xf] %v3400
        %3451 = vst [vmem:[#allocation3 + $0x44] sm:$0xf] %v3401
        %3452 = vst [vmem:[#allocation3 + $0x48] sm:$0xf] %v3402
        %3453 = vst [vmem:[#allocation3 + $0x4c] sm:$0xf] %v3403
        %3454 = vst [vmem:[#allocation3 + $0x50] sm:$0xf] %v3404
        %3455 = vst [vmem:[#allocation3 + $0x54] sm:$0xf] %v3405
        %3456 = vst [vmem:[#allocation3 + $0x58] sm:$0xf] %v3406
        %3457 = vst [vmem:[#allocation3 + $0x5c] sm:$0xf] %v3407
        %3458 = vst [vmem:[#allocation3 + $0x60] sm:$0xf] %v3408
        %3459 = vst [vmem:[#allocation3 + $0x64] sm:$0xf] %v3409
        // Predicated region
        $region73: #{tpu_custom_call.1} parent=47 // pred_check
          %p3460 = pneg %p317
        $region74: #{tpu_custom_call.1} parent=47 // pred_check_branch
          %3462 = sbr.rel (%p3460) target = $region76
        $region75: #{tpu_custom_call.1} parent=47 // pred_region
          %3463 = vst [vmem:[#allocation3 + $0x4] sm:$0xf] 0
          %3464 = vst [vmem:[#allocation3 + $0x8] sm:$0xf] 0
          %3465 = vst [vmem:[#allocation3 + $0xc] sm:$0x3] 0
        $region76: #{tpu_custom_call.1} parent=47 // pred_fallthru
          _
        %p3466 = scmp.eq.s32.totalorder %s29, 1
        // Predicated region
        $region77: #{tpu_custom_call.1} parent=47 // pred_check
          %p3467 = pneg %p3466
        $region78: #{tpu_custom_call.1} parent=47 // pred_check_branch
          %3469 = sbr.rel (%p3467) target = $region80
        $region79: #{tpu_custom_call.1} parent=47 // pred_region
          %3470 = vst [vmem:[#allocation3 + $0x5c] sm:$0xc] 0
          %3471 = vst [vmem:[#allocation3 + $0x60] sm:$0xf] 0
          %3472 = vst [vmem:[#allocation3 + $0x64] sm:$0xf] 0
        $region80: #{tpu_custom_call.1} parent=47 // pred_fallthru
          _
        %v3473 = vld [vmem:[#allocation3] sm:$0x8]
        %v3474 = vld [vmem:[#allocation3 + $0x4] sm:$0xf]
        %v3475 = vld [vmem:[#allocation3 + $0x8] sm:$0xf]
        %v3476 = vld [vmem:[#allocation3 + $0xc] sm:$0xf]
        %v3477 = vld [vmem:[#allocation3 + $0x10] sm:$0xf]
        %v3478 = vld [vmem:[#allocation3 + $0x14] sm:$0xf]
        %v3479 = vld [vmem:[#allocation3 + $0x18] sm:$0xf]
        %v3480 = vld [vmem:[#allocation3 + $0x1c] sm:$0xf]
        %v3481 = vld [vmem:[#allocation3 + $0x20] sm:$0xf]
        %v3482 = vld [vmem:[#allocation3 + $0x24] sm:$0xf]
        %v3483 = vld [vmem:[#allocation3 + $0x28] sm:$0xf]
        %v3484 = vld [vmem:[#allocation3 + $0x2c] sm:$0xf]
        %v3485 = vld [vmem:[#allocation3 + $0x30] sm:$0xf]
        %v3486 = vld [vmem:[#allocation3 + $0x34] sm:$0xf]
        %v3487 = vld [vmem:[#allocation3 + $0x38] sm:$0xf]
        %v3488 = vld [vmem:[#allocation3 + $0x3c] sm:$0xf]
        %v3489 = vld [vmem:[#allocation3 + $0x40] sm:$0xf]
        %v3490 = vld [vmem:[#allocation3 + $0x44] sm:$0xf]
        %v3491 = vld [vmem:[#allocation3 + $0x48] sm:$0xf]
        %v3492 = vld [vmem:[#allocation3 + $0x4c] sm:$0xf]
        %v3493 = vld [vmem:[#allocation3 + $0x50] sm:$0xf]
        %v3494 = vld [vmem:[#allocation8] sm:$0xf]
        %v3495 = vld [vmem:[#allocation8 + $0x4] sm:$0xf]
        %v3496 = vld [vmem:[#allocation8 + $0x8] sm:$0xf]
        %v3497 = vld [vmem:[#allocation8 + $0xc] sm:$0xf]
        %v3498 = vld [vmem:[#allocation8 + $0x10] sm:$0xf]
        %v3499 = vld [vmem:[#allocation8 + $0x14] sm:$0xf]
        %v3500 = vld [vmem:[#allocation8 + $0x18] sm:$0xf]
        %v3501 = vld [vmem:[#allocation8 + $0x1c] sm:$0xf]
        %v3502 = vld [vmem:[#allocation8 + $0x20] sm:$0xf]
        %v3503 = vld [vmem:[#allocation8 + $0x24] sm:$0xf]
        %v3504 = vld [vmem:[#allocation8 + $0x28] sm:$0xf]
        %v3505 = vld [vmem:[#allocation8 + $0x2c] sm:$0xf]
        %v3506 = vld [vmem:[#allocation8 + $0x30] sm:$0xf]
        %v3507 = vld [vmem:[#allocation8 + $0x34] sm:$0xf]
        %v3508 = vld [vmem:[#allocation8 + $0x38] sm:$0xf]
        %v3509 = vld [vmem:[#allocation8 + $0x3c] sm:$0xf]
        %s3510 = scalar_lea.vmem [#allocation8], 64
        %v3511 = vld [vmem:[%s3510] sm:$0xf]
        %v3512 = vld [vmem:[%s3510 + $0x4] sm:$0xf]
        %v3513 = vld [vmem:[%s3510 + $0x8] sm:$0xf]
        %v3514 = vld [vmem:[%s3510 + $0xc] sm:$0xf]
        %v3515 = vld [vmem:[%s3510 + $0x10] sm:$0xf]
        %v3516 = vld [vmem:[%s3510 + $0x14] sm:$0xf]
        %v3517 = vld [vmem:[%s3510 + $0x18] sm:$0xf]
        %v3518 = vld [vmem:[%s3510 + $0x1c] sm:$0xf]
        %v3519 = vld [vmem:[%s3510 + $0x20] sm:$0xf]
        %v3520 = vld [vmem:[%s3510 + $0x24] sm:$0xf]
        %v3521 = vld [vmem:[%s3510 + $0x28] sm:$0xf]
        %v3522 = vld [vmem:[%s3510 + $0x2c] sm:$0xf]
        %v3523 = vld [vmem:[%s3510 + $0x30] sm:$0xf]
        %v3524 = vld [vmem:[%s3510 + $0x34] sm:$0xf]
        %v3525 = vld [vmem:[%s3510 + $0x38] sm:$0xf]
        %v3526 = vld [vmem:[%s3510 + $0x3c] sm:$0xf]
        %v3547 = vunpack.c.l.b16 %v3474
        %v3548 = vunpack.c.l.b16 %v3475
        %v3549 = vunpack.c.l.b16 %v3476
        %v3550 = vunpack.c.l.b16 %v3477
        %v3551 = vunpack.c.l.b16 %v3478
        %v3552 = vunpack.c.l.b16 %v3479
        %v3553 = vunpack.c.l.b16 %v3480
        %v3554 = vunpack.c.l.b16 %v3481
        %v3555 = vunpack.c.l.b16 %v3482
        %v3556 = vunpack.c.l.b16 %v3483
        %v3557 = vunpack.c.l.b16 %v3484
        %v3558 = vunpack.c.l.b16 %v3485
        %v3559 = vunpack.c.l.b16 %v3486
        %v3560 = vunpack.c.l.b16 %v3487
        %v3561 = vunpack.c.l.b16 %v3488
        %v3562 = vunpack.c.l.b16 %v3489
        %v3563 = vunpack.c.l.b16 %v3490
        %v3564 = vunpack.c.l.b16 %v3491
        %v3565 = vunpack.c.l.b16 %v3492
        %v3566 = vunpack.c.l.b16 %v3493
        %v3567 = vpack.c.b16 %v3548, %v3547
        %v3568 = vpack.c.b16 %v3550, %v3549
        %v3569 = vpack.c.b16 %v3552, %v3551
        %v3570 = vpack.c.b16 %v3554, %v3553
        %v3571 = vpack.c.b16 %v3556, %v3555
        %v3572 = vpack.c.b16 %v3558, %v3557
        %v3573 = vpack.c.b16 %v3560, %v3559
        %v3574 = vpack.c.b16 %v3562, %v3561
        %v3575 = vpack.c.b16 %v3564, %v3563
        %v3576 = vpack.c.b16 %v3566, %v3565
        %v3603 = vunpack.c.l.b16 %v3511
        %v3604 = vunpack.c.l.b16 %v3512
        %v3605 = vunpack.c.l.b16 %v3513
        %v3606 = vunpack.c.l.b16 %v3514
        %v3607 = vunpack.c.l.b16 %v3515
        %v3608 = vunpack.c.l.b16 %v3516
        %v3609 = vunpack.c.l.b16 %v3517
        %v3610 = vunpack.c.l.b16 %v3518
        %v3611 = vunpack.c.l.b16 %v3519
        %v3612 = vunpack.c.l.b16 %v3520
        %v3613 = vunpack.c.l.b16 %v3521
        %v3614 = vunpack.c.l.b16 %v3522
        %v3615 = vunpack.c.l.b16 %v3523
        %v3616 = vunpack.c.l.b16 %v3524
        %v3617 = vunpack.c.l.b16 %v3525
        %v3618 = vunpack.c.l.b16 %v3526
        %v3619 = vpack.c.b16 %v3604, %v3603
        %v3620 = vpack.c.b16 %v3606, %v3605
        %v3621 = vpack.c.b16 %v3608, %v3607
        %v3622 = vpack.c.b16 %v3610, %v3609
        %v3623 = vpack.c.b16 %v3612, %v3611
        %v3624 = vpack.c.b16 %v3614, %v3613
        %v3625 = vpack.c.b16 %v3616, %v3615
        %v3626 = vpack.c.b16 %v3618, %v3617
        %3635 = vmatprep.subr.bf16.mxu0 0
        %3636 = vmatpush1.bf16.msra.mxu0 %v3619
        %3637 = vmatprep.subr.bf16.mxu0 0
        %3638 = vmatpush1.bf16.msra.mxu0 %v3620
        %3639 = vmatprep.subr.bf16.mxu0 0
        %3640 = vmatpush1.bf16.msra.mxu0 %v3621
        %3641 = vmatprep.subr.bf16.mxu0 0
        %3642 = vmatpush1.bf16.msra.mxu0 %v3622
        %3643 = vmatprep.subr.bf16.mxu0 0
        %3644 = vmatpush1.bf16.msra.mxu0 %v3623
        %3645 = vmatprep.subr.bf16.mxu0 0
        %3646 = vmatpush1.bf16.msra.mxu0 %v3624
        %3647 = vmatprep.subr.bf16.mxu0 0
        %3648 = vmatpush1.bf16.msra.mxu0 %v3625
        %3649 = vmatprep.subr.bf16.mxu0 0
        %3650 = vmatpush1.bf16.msra.mxu0 %v3626
        %3651 = vmatprep.subr.bf16.mxu0 0
        %3652 = vmatpush1.bf16.msra.mxu0 0
        %3653 = vmatprep.subr.bf16.mxu0 0
        %3654 = vmatpush1.bf16.msra.mxu0 0
        %3655 = vmatprep.subr.bf16.mxu0 0
        %3656 = vmatpush1.bf16.msra.mxu0 0
        %3657 = vmatprep.subr.bf16.mxu0 0
        %3658 = vmatpush1.bf16.msra.mxu0 0
        %3659 = vmatprep.subr.bf16.mxu0 0
        %3660 = vmatpush1.bf16.msra.mxu0 0
        %3661 = vmatprep.subr.bf16.mxu0 0
        %3662 = vmatpush1.bf16.msra.mxu0 0
        %3663 = vmatprep.subr.bf16.mxu0 0
        %3664 = vmatpush1.bf16.msra.mxu0 0
        %3665 = vmatprep.subr.bf16.mxu0 0
        %3666 = vmatpush1.bf16.msra.mxu0 0
        %3667 = vmatprep.mubr.bf16.mxu0 0
        %3668 = vmatmul.mubr.bf16.gmra.mrb[0].mxu0 %v3567
        %v3669 = vpop.f32.mrb[0].mxu0
        %v3670 = vadd.f32 0.0, %v3669
        %v3671 = vpop.f32.mrb[0].mxu0
        %v3672 = vpop.f32.mrb[0].mxu0
        %v3673 = vadd.f32 0.0, %v3672
        %v3674 = vpop.f32.mrb[0].mxu0
        %3675 = vmatprep.mubr.bf16.mxu0 0
        %3676 = vmatmul.mubr.bf16.gmra.mrb[0].mxu0 %v3568
        %v3677 = vpop.f32.mrb[0].mxu0
        %v3678 = vadd.f32 0.0, %v3677
        %v3679 = vpop.f32.mrb[0].mxu0
        %v3680 = vpop.f32.mrb[0].mxu0
        %v3681 = vadd.f32 0.0, %v3680
        %v3682 = vpop.f32.mrb[0].mxu0
        %3683 = vmatprep.mubr.bf16.mxu0 0
        %3684 = vmatmul.mubr.bf16.gmra.mrb[0].mxu0 %v3569
        %v3685 = vpop.f32.mrb[0].mxu0
        %v3686 = vadd.f32 0.0, %v3685
        %v3687 = vpop.f32.mrb[0].mxu0
        %v3688 = vpop.f32.mrb[0].mxu0
        %v3689 = vadd.f32 0.0, %v3688
        %v3690 = vpop.f32.mrb[0].mxu0
        %3691 = vmatprep.mubr.bf16.mxu0 0
        %3692 = vmatmul.mubr.bf16.gmra.mrb[0].mxu0 %v3570
        %v3693 = vpop.f32.mrb[0].mxu0
        %v3694 = vadd.f32 0.0, %v3693
        %v3695 = vpop.f32.mrb[0].mxu0
        %v3696 = vpop.f32.mrb[0].mxu0
        %v3697 = vadd.f32 0.0, %v3696
        %v3698 = vpop.f32.mrb[0].mxu0
        %3699 = vmatprep.mubr.bf16.mxu0 0
        %3700 = vmatmul.mubr.bf16.gmra.mrb[0].mxu0 %v3571
        %v3701 = vpop.f32.mrb[0].mxu0
        %v3702 = vadd.f32 0.0, %v3701
        %v3703 = vpop.f32.mrb[0].mxu0
        %v3704 = vpop.f32.mrb[0].mxu0
        %v3705 = vadd.f32 0.0, %v3704
        %v3706 = vpop.f32.mrb[0].mxu0
        %3707 = vmatprep.mubr.bf16.mxu0 0
        %3708 = vmatmul.mubr.bf16.gmra.mrb[0].mxu0 %v3572
        %v3709 = vpop.f32.mrb[0].mxu0
        %v3710 = vadd.f32 0.0, %v3709
        %v3711 = vpop.f32.mrb[0].mxu0
        %v3712 = vpop.f32.mrb[0].mxu0
        %v3713 = vadd.f32 0.0, %v3712
        %v3714 = vpop.f32.mrb[0].mxu0
        %3715 = vmatprep.mubr.bf16.mxu0 0
        %3716 = vmatmul.mubr.bf16.gmra.mrb[0].mxu0 %v3573
        %v3717 = vpop.f32.mrb[0].mxu0
        %v3718 = vadd.f32 0.0, %v3717
        %v3719 = vpop.f32.mrb[0].mxu0
        %v3720 = vpop.f32.mrb[0].mxu0
        %v3721 = vadd.f32 0.0, %v3720
        %v3722 = vpop.f32.mrb[0].mxu0
        %3723 = vmatprep.mubr.bf16.mxu0 0
        %3724 = vmatmul.mubr.bf16.gmra.mrb[0].mxu0 %v3574
        %v3725 = vpop.f32.mrb[0].mxu0
        %v3726 = vadd.f32 0.0, %v3725
        %v3727 = vpop.f32.mrb[0].mxu0
        %v3728 = vpop.f32.mrb[0].mxu0
        %v3729 = vadd.f32 0.0, %v3728
        %v3730 = vpop.f32.mrb[0].mxu0
        %3731 = vmatprep.mubr.bf16.mxu0 0
        %3732 = vmatmul.mubr.bf16.gmra.mrb[0].mxu0 %v3575
        %v3733 = vpop.f32.mrb[0].mxu0
        %v3734 = vadd.f32 0.0, %v3733
        %v3735 = vpop.f32.mrb[0].mxu0
        %v3736 = vpop.f32.mrb[0].mxu0
        %v3737 = vadd.f32 0.0, %v3736
        %v3738 = vpop.f32.mrb[0].mxu0
        %3739 = vmatprep.mubr.bf16.mxu0 0
        %3740 = vmatmul.mubr.bf16.gmra.mrb[0].mxu0 %v3576
        %v3741 = vpop.f32.mrb[0].mxu0
        %v3742 = vadd.f32 0.0, %v3741
        %v3743 = vpop.f32.mrb[0].mxu0
        %v3744 = vpop.f32.mrb[0].mxu0
        %v3745 = vadd.f32 0.0, %v3744
        %v3746 = vpop.f32.mrb[0].mxu0
        %3747 = vdwg.mxu0
        %v3749 = vunpack.c.l.b16 %v3473
        %v3750 = vpack.c.b16 %v3547, %v3749
        %v3751 = vpack.c.b16 %v3549, %v3548
        %v3752 = vpack.c.b16 %v3551, %v3550
        %v3753 = vpack.c.b16 %v3553, %v3552
        %v3754 = vpack.c.b16 %v3555, %v3554
        %v3755 = vpack.c.b16 %v3557, %v3556
        %v3756 = vpack.c.b16 %v3559, %v3558
        %v3757 = vpack.c.b16 %v3561, %v3560
        %v3758 = vpack.c.b16 %v3563, %v3562
        %v3759 = vpack.c.b16 %v3565, %v3564
        %v3760 = vpack.c.b16 %v3566, %v3566
        %v3762 = vshrl.u32 %v3750, 16
        %v3764 = vrot.slane %v3762, 3
        %v3765 = vshll.u32 %v3750, 16
        %v3767 = vrot.slane %v3765, 4
        %v3768 = vor.u32 %v3764, %v3767
        %v3770 = vshrl.u32 %v3751, 16
        %v3772 = vrot.slane %v3770, 3
        %v3773 = vshll.u32 %v3751, 16
        %v3775 = vrot.slane %v3773, 4
        %v3776 = vor.u32 %v3772, %v3775
        %v3777 = vsel %vm1359, %v3768, %v3776
        %v3779 = vshrl.u32 %v3752, 16
        %v3781 = vrot.slane %v3779, 3
        %v3782 = vshll.u32 %v3752, 16
        %v3784 = vrot.slane %v3782, 4
        %v3785 = vor.u32 %v3781, %v3784
        %v3786 = vsel %vm1359, %v3776, %v3785
        %v3788 = vshrl.u32 %v3753, 16
        %v3790 = vrot.slane %v3788, 3
        %v3791 = vshll.u32 %v3753, 16
        %v3793 = vrot.slane %v3791, 4
        %v3794 = vor.u32 %v3790, %v3793
        %v3795 = vsel %vm1359, %v3785, %v3794
        %v3797 = vshrl.u32 %v3754, 16
        %v3799 = vrot.slane %v3797, 3
        %v3800 = vshll.u32 %v3754, 16
        %v3802 = vrot.slane %v3800, 4
        %v3803 = vor.u32 %v3799, %v3802
        %v3804 = vsel %vm1359, %v3794, %v3803
        %v3806 = vshrl.u32 %v3755, 16
        %v3808 = vrot.slane %v3806, 3
        %v3809 = vshll.u32 %v3755, 16
        %v3811 = vrot.slane %v3809, 4
        %v3812 = vor.u32 %v3808, %v3811
        %v3813 = vsel %vm1359, %v3803, %v3812
        %v3815 = vshrl.u32 %v3756, 16
        %v3817 = vrot.slane %v3815, 3
        %v3818 = vshll.u32 %v3756, 16
        %v3820 = vrot.slane %v3818, 4
        %v3821 = vor.u32 %v3817, %v3820
        %v3822 = vsel %vm1359, %v3812, %v3821
        %v3824 = vshrl.u32 %v3757, 16
        %v3826 = vrot.slane %v3824, 3
        %v3827 = vshll.u32 %v3757, 16
        %v3829 = vrot.slane %v3827, 4
        %v3830 = vor.u32 %v3826, %v3829
        %v3831 = vsel %vm1359, %v3821, %v3830
        %v3833 = vshrl.u32 %v3758, 16
        %v3835 = vrot.slane %v3833, 3
        %v3836 = vshll.u32 %v3758, 16
        %v3838 = vrot.slane %v3836, 4
        %v3839 = vor.u32 %v3835, %v3838
        %v3840 = vsel %vm1359, %v3830, %v3839
        %v3842 = vshrl.u32 %v3759, 16
        %v3844 = vrot.slane %v3842, 3
        %v3845 = vshll.u32 %v3759, 16
        %v3847 = vrot.slane %v3845, 4
        %v3848 = vor.u32 %v3844, %v3847
        %v3849 = vsel %vm1359, %v3839, %v3848
        %v3851 = vshrl.u32 %v3760, 16
        %v3853 = vrot.slane %v3851, 3
        %v3854 = vshll.u32 %v3760, 16
        %v3856 = vrot.slane %v3854, 4
        %v3857 = vor.u32 %v3853, %v3856
        %v3858 = vsel %vm1359, %v3848, %v3857
        %v3885 = vunpack.c.l.b16 %v3494
        %v3886 = vunpack.c.l.b16 %v3495
        %v3887 = vunpack.c.l.b16 %v3496
        %v3888 = vunpack.c.l.b16 %v3497
        %v3889 = vunpack.c.l.b16 %v3498
        %v3890 = vunpack.c.l.b16 %v3499
        %v3891 = vunpack.c.l.b16 %v3500
        %v3892 = vunpack.c.l.b16 %v3501
        %v3893 = vunpack.c.l.b16 %v3502
        %v3894 = vunpack.c.l.b16 %v3503
        %v3895 = vunpack.c.l.b16 %v3504
        %v3896 = vunpack.c.l.b16 %v3505
        %v3897 = vunpack.c.l.b16 %v3506
        %v3898 = vunpack.c.l.b16 %v3507
        %v3899 = vunpack.c.l.b16 %v3508
        %v3900 = vunpack.c.l.b16 %v3509
        %v3901 = vpack.c.b16 %v3886, %v3885
        %v3902 = vpack.c.b16 %v3888, %v3887
        %v3903 = vpack.c.b16 %v3890, %v3889
        %v3904 = vpack.c.b16 %v3892, %v3891
        %v3905 = vpack.c.b16 %v3894, %v3893
        %v3906 = vpack.c.b16 %v3896, %v3895
        %v3907 = vpack.c.b16 %v3898, %v3897
        %v3908 = vpack.c.b16 %v3900, %v3899
        %3917 = vmatprep.subr.bf16.mxu0 0
        %3918 = vmatpush1.bf16.msra.mxu0 %v3901
        %3919 = vmatprep.subr.bf16.mxu0 0
        %3920 = vmatpush1.bf16.msra.mxu0 %v3902
        %3921 = vmatprep.subr.bf16.mxu0 0
        %3922 = vmatpush1.bf16.msra.mxu0 %v3903
        %3923 = vmatprep.subr.bf16.mxu0 0
        %3924 = vmatpush1.bf16.msra.mxu0 %v3904
        %3925 = vmatprep.subr.bf16.mxu0 0
        %3926 = vmatpush1.bf16.msra.mxu0 %v3905
        %3927 = vmatprep.subr.bf16.mxu0 0
        %3928 = vmatpush1.bf16.msra.mxu0 %v3906
        %3929 = vmatprep.subr.bf16.mxu0 0
        %3930 = vmatpush1.bf16.msra.mxu0 %v3907
        %3931 = vmatprep.subr.bf16.mxu0 0
        %3932 = vmatpush1.bf16.msra.mxu0 %v3908
        %3933 = vmatprep.subr.bf16.mxu0 0
        %3934 = vmatpush1.bf16.msra.mxu0 0
        %3935 = vmatprep.subr.bf16.mxu0 0
        %3936 = vmatpush1.bf16.msra.mxu0 0
        %3937 = vmatprep.subr.bf16.mxu0 0
        %3938 = vmatpush1.bf16.msra.mxu0 0
        %3939 = vmatprep.subr.bf16.mxu0 0
        %3940 = vmatpush1.bf16.msra.mxu0 0
        %3941 = vmatprep.subr.bf16.mxu0 0
        %3942 = vmatpush1.bf16.msra.mxu0 0
        %3943 = vmatprep.subr.bf16.mxu0 0
        %3944 = vmatpush1.bf16.msra.mxu0 0
        %3945 = vmatprep.subr.bf16.mxu0 0
        %3946 = vmatpush1.bf16.msra.mxu0 0
        %3947 = vmatprep.subr.bf16.mxu0 0
        %3948 = vmatpush1.bf16.msra.mxu0 0
        %3949 = vmatprep.mubr.bf16.mxu0 0
        %3950 = vmatmul.mubr.bf16.gmra.mrb[0].mxu0 %v3777
        %v3951 = vpop.f32.mrb[0].mxu0
        %v3952 = vadd.f32 %v3670, %v3951
        %v3953 = vpop.f32.mrb[0].mxu0
        %v3954 = vpop.f32.mrb[0].mxu0
        %v3955 = vadd.f32 %v3673, %v3954
        %v3956 = vpop.f32.mrb[0].mxu0
        %3957 = vmatprep.mubr.bf16.mxu0 0
        %3958 = vmatmul.mubr.bf16.gmra.mrb[0].mxu0 %v3786
        %v3959 = vpop.f32.mrb[0].mxu0
        %v3960 = vadd.f32 %v3678, %v3959
        %v3961 = vpop.f32.mrb[0].mxu0
        %v3962 = vpop.f32.mrb[0].mxu0
        %v3963 = vadd.f32 %v3681, %v3962
        %v3964 = vpop.f32.mrb[0].mxu0
        %3965 = vmatprep.mubr.bf16.mxu0 0
        %3966 = vmatmul.mubr.bf16.gmra.mrb[0].mxu0 %v3795
        %v3967 = vpop.f32.mrb[0].mxu0
        %v3968 = vadd.f32 %v3686, %v3967
        %v3969 = vpop.f32.mrb[0].mxu0
        %v3970 = vpop.f32.mrb[0].mxu0
        %v3971 = vadd.f32 %v3689, %v3970
        %v3972 = vpop.f32.mrb[0].mxu0
        %3973 = vmatprep.mubr.bf16.mxu0 0
        %3974 = vmatmul.mubr.bf16.gmra.mrb[0].mxu0 %v3804
        %v3975 = vpop.f32.mrb[0].mxu0
        %v3976 = vadd.f32 %v3694, %v3975
        %v3977 = vpop.f32.mrb[0].mxu0
        %v3978 = vpop.f32.mrb[0].mxu0
        %v3979 = vadd.f32 %v3697, %v3978
        %v3980 = vpop.f32.mrb[0].mxu0
        %3981 = vmatprep.mubr.bf16.mxu0 0
        %3982 = vmatmul.mubr.bf16.gmra.mrb[0].mxu0 %v3813
        %v3983 = vpop.f32.mrb[0].mxu0
        %v3984 = vadd.f32 %v3702, %v3983
        %v3985 = vpop.f32.mrb[0].mxu0
        %v3986 = vpop.f32.mrb[0].mxu0
        %v3987 = vadd.f32 %v3705, %v3986
        %v3988 = vpop.f32.mrb[0].mxu0
        %3989 = vmatprep.mubr.bf16.mxu0 0
        %3990 = vmatmul.mubr.bf16.gmra.mrb[0].mxu0 %v3822
        %v3991 = vpop.f32.mrb[0].mxu0
        %v3992 = vadd.f32 %v3710, %v3991
        %v3993 = vpop.f32.mrb[0].mxu0
        %v3994 = vpop.f32.mrb[0].mxu0
        %v3995 = vadd.f32 %v3713, %v3994
        %v3996 = vpop.f32.mrb[0].mxu0
        %3997 = vmatprep.mubr.bf16.mxu0 0
        %3998 = vmatmul.mubr.bf16.gmra.mrb[0].mxu0 %v3831
        %v3999 = vpop.f32.mrb[0].mxu0
        %v4000 = vadd.f32 %v3718, %v3999
        %v4001 = vpop.f32.mrb[0].mxu0
        %v4002 = vpop.f32.mrb[0].mxu0
        %v4003 = vadd.f32 %v3721, %v4002
        %v4004 = vpop.f32.mrb[0].mxu0
        %4005 = vmatprep.mubr.bf16.mxu0 0
        %4006 = vmatmul.mubr.bf16.gmra.mrb[0].mxu0 %v3840
        %v4007 = vpop.f32.mrb[0].mxu0
        %v4008 = vadd.f32 %v3726, %v4007
        %v4009 = vpop.f32.mrb[0].mxu0
        %v4010 = vpop.f32.mrb[0].mxu0
        %v4011 = vadd.f32 %v3729, %v4010
        %v4012 = vpop.f32.mrb[0].mxu0
        %4013 = vmatprep.mubr.bf16.mxu0 0
        %4014 = vmatmul.mubr.bf16.gmra.mrb[0].mxu0 %v3849
        %v4015 = vpop.f32.mrb[0].mxu0
        %v4016 = vadd.f32 %v3734, %v4015
        %v4017 = vpop.f32.mrb[0].mxu0
        %v4018 = vpop.f32.mrb[0].mxu0
        %v4019 = vadd.f32 %v3737, %v4018
        %v4020 = vpop.f32.mrb[0].mxu0
        %4021 = vmatprep.mubr.bf16.mxu0 0
        %4022 = vmatmul.mubr.bf16.gmra.mrb[0].mxu0 %v3858
        %v4023 = vpop.f32.mrb[0].mxu0
        %v4024 = vadd.f32 %v3742, %v4023
        %v4025 = vpop.f32.mrb[0].mxu0
        %v4026 = vpop.f32.mrb[0].mxu0
        %v4027 = vadd.f32 %v3745, %v4026
        %v4028 = vpop.f32.mrb[0].mxu0
        %4029 = vdwg.mxu0
        %v4030 = vld [vmem:[#allocation3 + $0x4] sm:$0xf]
        %v4031 = vld [vmem:[#allocation3 + $0x8] sm:$0xf]
        %v4032 = vld [vmem:[#allocation3 + $0xc] sm:$0xf]
        %v4033 = vld [vmem:[#allocation3 + $0x10] sm:$0xf]
        %v4034 = vld [vmem:[#allocation3 + $0x14] sm:$0xf]
        %v4035 = vld [vmem:[#allocation3 + $0x18] sm:$0xf]
        %v4036 = vld [vmem:[#allocation3 + $0x1c] sm:$0xf]
        %v4037 = vld [vmem:[#allocation3 + $0x20] sm:$0xf]
        %v4038 = vld [vmem:[#allocation3 + $0x24] sm:$0xf]
        %v4039 = vld [vmem:[#allocation3 + $0x28] sm:$0xf]
        %v4040 = vld [vmem:[#allocation3 + $0x2c] sm:$0xf]
        %v4041 = vld [vmem:[#allocation3 + $0x30] sm:$0xf]
        %v4042 = vld [vmem:[#allocation3 + $0x34] sm:$0xf]
        %v4043 = vld [vmem:[#allocation3 + $0x38] sm:$0xf]
        %v4044 = vld [vmem:[#allocation3 + $0x3c] sm:$0xf]
        %v4045 = vld [vmem:[#allocation3 + $0x40] sm:$0xf]
        %v4046 = vld [vmem:[#allocation3 + $0x44] sm:$0xf]
        %v4047 = vld [vmem:[#allocation3 + $0x48] sm:$0xf]
        %v4048 = vld [vmem:[#allocation3 + $0x4c] sm:$0xf]
        %v4049 = vld [vmem:[#allocation3 + $0x50] sm:$0xf]
        %v4050 = vld [vmem:[#allocation3 + $0x54] sm:$0x1]
        %s4051 = scalar_lea.vmem [#allocation8], 128
        %v4052 = vld [vmem:[%s4051] sm:$0xf]
        %v4053 = vld [vmem:[%s4051 + $0x4] sm:$0xf]
        %v4054 = vld [vmem:[%s4051 + $0x8] sm:$0xf]
        %v4055 = vld [vmem:[%s4051 + $0xc] sm:$0xf]
        %v4056 = vld [vmem:[%s4051 + $0x10] sm:$0xf]
        %v4057 = vld [vmem:[%s4051 + $0x14] sm:$0xf]
        %v4058 = vld [vmem:[%s4051 + $0x18] sm:$0xf]
        %v4059 = vld [vmem:[%s4051 + $0x1c] sm:$0xf]
        %v4060 = vld [vmem:[%s4051 + $0x20] sm:$0xf]
        %v4061 = vld [vmem:[%s4051 + $0x24] sm:$0xf]
        %v4062 = vld [vmem:[%s4051 + $0x28] sm:$0xf]
        %v4063 = vld [vmem:[%s4051 + $0x2c] sm:$0xf]
        %v4064 = vld [vmem:[%s4051 + $0x30] sm:$0xf]
        %v4065 = vld [vmem:[%s4051 + $0x34] sm:$0xf]
        %v4066 = vld [vmem:[%s4051 + $0x38] sm:$0xf]
        %v4067 = vld [vmem:[%s4051 + $0x3c] sm:$0xf]
        %v4089 = vunpack.c.l.b16 %v4030
        %v4090 = vunpack.c.l.b16 %v4031
        %v4091 = vunpack.c.l.b16 %v4032
        %v4092 = vunpack.c.l.b16 %v4033
        %v4093 = vunpack.c.l.b16 %v4034
        %v4094 = vunpack.c.l.b16 %v4035
        %v4095 = vunpack.c.l.b16 %v4036
        %v4096 = vunpack.c.l.b16 %v4037
        %v4097 = vunpack.c.l.b16 %v4038
        %v4098 = vunpack.c.l.b16 %v4039
        %v4099 = vunpack.c.l.b16 %v4040
        %v4100 = vunpack.c.l.b16 %v4041
        %v4101 = vunpack.c.l.b16 %v4042
        %v4102 = vunpack.c.l.b16 %v4043
        %v4103 = vunpack.c.l.b16 %v4044
        %v4104 = vunpack.c.l.b16 %v4045
        %v4105 = vunpack.c.l.b16 %v4046
        %v4106 = vunpack.c.l.b16 %v4047
        %v4107 = vunpack.c.l.b16 %v4048
        %v4108 = vunpack.c.l.b16 %v4049
        %v4109 = vunpack.c.l.b16 %v4050
        %v4110 = vpack.c.b16 %v4090, %v4089
        %v4111 = vpack.c.b16 %v4092, %v4091
        %v4112 = vpack.c.b16 %v4094, %v4093
        %v4113 = vpack.c.b16 %v4096, %v4095
        %v4114 = vpack.c.b16 %v4098, %v4097
        %v4115 = vpack.c.b16 %v4100, %v4099
        %v4116 = vpack.c.b16 %v4102, %v4101
        %v4117 = vpack.c.b16 %v4104, %v4103
        %v4118 = vpack.c.b16 %v4106, %v4105
        %v4119 = vpack.c.b16 %v4108, %v4107
        %v4120 = vpack.c.b16 %v4109, %v4109
        %v4122 = vshrl.u32 %v4110, 16
        %v4124 = vshll.u32 %v4110, 16
        %v4126 = vrot.slane %v4124, 1
        %v4127 = vor.u32 %v4122, %v4126
        %v4129 = vshll.u32 %v4111, 16
        %v4131 = vrot.slane %v4129, 1
        %v4132 = vsel %vm1910, %v4127, %v4131
        %v4133 = vshrl.u32 %v4111, 16
        %v4135 = vor.u32 %v4133, %v4131
        %v4137 = vshll.u32 %v4112, 16
        %v4139 = vrot.slane %v4137, 1
        %v4140 = vsel %vm1910, %v4135, %v4139
        %v4141 = vshrl.u32 %v4112, 16
        %v4143 = vor.u32 %v4141, %v4139
        %v4145 = vshll.u32 %v4113, 16
        %v4147 = vrot.slane %v4145, 1
        %v4148 = vsel %vm1910, %v4143, %v4147
        %v4149 = vshrl.u32 %v4113, 16
        %v4151 = vor.u32 %v4149, %v4147
        %v4153 = vshll.u32 %v4114, 16
        %v4155 = vrot.slane %v4153, 1
        %v4156 = vsel %vm1910, %v4151, %v4155
        %v4157 = vshrl.u32 %v4114, 16
        %v4159 = vor.u32 %v4157, %v4155
        %v4161 = vshll.u32 %v4115, 16
        %v4163 = vrot.slane %v4161, 1
        %v4164 = vsel %vm1910, %v4159, %v4163
        %v4165 = vshrl.u32 %v4115, 16
        %v4167 = vor.u32 %v4165, %v4163
        %v4169 = vshll.u32 %v4116, 16
        %v4171 = vrot.slane %v4169, 1
        %v4172 = vsel %vm1910, %v4167, %v4171
        %v4173 = vshrl.u32 %v4116, 16
        %v4175 = vor.u32 %v4173, %v4171
        %v4177 = vshll.u32 %v4117, 16
        %v4179 = vrot.slane %v4177, 1
        %v4180 = vsel %vm1910, %v4175, %v4179
        %v4181 = vshrl.u32 %v4117, 16
        %v4183 = vor.u32 %v4181, %v4179
        %v4185 = vshll.u32 %v4118, 16
        %v4187 = vrot.slane %v4185, 1
        %v4188 = vsel %vm1910, %v4183, %v4187
        %v4189 = vshrl.u32 %v4118, 16
        %v4191 = vor.u32 %v4189, %v4187
        %v4193 = vshll.u32 %v4119, 16
        %v4195 = vrot.slane %v4193, 1
        %v4196 = vsel %vm1910, %v4191, %v4195
        %v4197 = vshrl.u32 %v4119, 16
        %v4199 = vor.u32 %v4197, %v4195
        %v4201 = vshll.u32 %v4120, 16
        %v4203 = vrot.slane %v4201, 1
        %v4204 = vsel %vm1910, %v4199, %v4203
        %v4231 = vunpack.c.l.b16 %v4052
        %v4232 = vunpack.c.l.b16 %v4053
        %v4233 = vunpack.c.l.b16 %v4054
        %v4234 = vunpack.c.l.b16 %v4055
        %v4235 = vunpack.c.l.b16 %v4056
        %v4236 = vunpack.c.l.b16 %v4057
        %v4237 = vunpack.c.l.b16 %v4058
        %v4238 = vunpack.c.l.b16 %v4059
        %v4239 = vunpack.c.l.b16 %v4060
        %v4240 = vunpack.c.l.b16 %v4061
        %v4241 = vunpack.c.l.b16 %v4062
        %v4242 = vunpack.c.l.b16 %v4063
        %v4243 = vunpack.c.l.b16 %v4064
        %v4244 = vunpack.c.l.b16 %v4065
        %v4245 = vunpack.c.l.b16 %v4066
        %v4246 = vunpack.c.l.b16 %v4067
        %v4247 = vpack.c.b16 %v4232, %v4231
        %v4248 = vpack.c.b16 %v4234, %v4233
        %v4249 = vpack.c.b16 %v4236, %v4235
        %v4250 = vpack.c.b16 %v4238, %v4237
        %v4251 = vpack.c.b16 %v4240, %v4239
        %v4252 = vpack.c.b16 %v4242, %v4241
        %v4253 = vpack.c.b16 %v4244, %v4243
        %v4254 = vpack.c.b16 %v4246, %v4245
        %4263 = vmatprep.subr.bf16.mxu0 0
        %4264 = vmatpush1.bf16.msra.mxu0 %v4247
        %4265 = vmatprep.subr.bf16.mxu0 0
        %4266 = vmatpush1.bf16.msra.mxu0 %v4248
        %4267 = vmatprep.subr.bf16.mxu0 0
        %4268 = vmatpush1.bf16.msra.mxu0 %v4249
        %4269 = vmatprep.subr.bf16.mxu0 0
        %4270 = vmatpush1.bf16.msra.mxu0 %v4250
        %4271 = vmatprep.subr.bf16.mxu0 0
        %4272 = vmatpush1.bf16.msra.mxu0 %v4251
        %4273 = vmatprep.subr.bf16.mxu0 0
        %4274 = vmatpush1.bf16.msra.mxu0 %v4252
        %4275 = vmatprep.subr.bf16.mxu0 0
        %4276 = vmatpush1.bf16.msra.mxu0 %v4253
        %4277 = vmatprep.subr.bf16.mxu0 0
        %4278 = vmatpush1.bf16.msra.mxu0 %v4254
        %4279 = vmatprep.subr.bf16.mxu0 0
        %4280 = vmatpush1.bf16.msra.mxu0 0
        %4281 = vmatprep.subr.bf16.mxu0 0
        %4282 = vmatpush1.bf16.msra.mxu0 0
        %4283 = vmatprep.subr.bf16.mxu0 0
        %4284 = vmatpush1.bf16.msra.mxu0 0
        %4285 = vmatprep.subr.bf16.mxu0 0
        %4286 = vmatpush1.bf16.msra.mxu0 0
        %4287 = vmatprep.subr.bf16.mxu0 0
        %4288 = vmatpush1.bf16.msra.mxu0 0
        %4289 = vmatprep.subr.bf16.mxu0 0
        %4290 = vmatpush1.bf16.msra.mxu0 0
        %4291 = vmatprep.subr.bf16.mxu0 0
        %4292 = vmatpush1.bf16.msra.mxu0 0
        %4293 = vmatprep.subr.bf16.mxu0 0
        %4294 = vmatpush1.bf16.msra.mxu0 0
        %4295 = vmatprep.mubr.bf16.mxu0 0
        %4296 = vmatmul.mubr.bf16.gmra.mrb[0].mxu0 %v4132
        %v4297 = vpop.f32.mrb[0].mxu0
        %v4298 = vadd.f32 0.0, %v4297
        %v4299 = vpop.f32.mrb[0].mxu0
        %v4300 = vpop.f32.mrb[0].mxu0
        %v4301 = vadd.f32 0.0, %v4300
        %v4302 = vpop.f32.mrb[0].mxu0
        %4303 = vmatprep.mubr.bf16.mxu0 0
        %4304 = vmatmul.mubr.bf16.gmra.mrb[0].mxu0 %v4140
        %v4305 = vpop.f32.mrb[0].mxu0
        %v4306 = vadd.f32 0.0, %v4305
        %v4307 = vpop.f32.mrb[0].mxu0
        %v4308 = vpop.f32.mrb[0].mxu0
        %v4309 = vadd.f32 0.0, %v4308
        %v4310 = vpop.f32.mrb[0].mxu0
        %4311 = vmatprep.mubr.bf16.mxu0 0
        %4312 = vmatmul.mubr.bf16.gmra.mrb[0].mxu0 %v4148
        %v4313 = vpop.f32.mrb[0].mxu0
        %v4314 = vadd.f32 0.0, %v4313
        %v4315 = vpop.f32.mrb[0].mxu0
        %v4316 = vpop.f32.mrb[0].mxu0
        %v4317 = vadd.f32 0.0, %v4316
        %v4318 = vpop.f32.mrb[0].mxu0
        %4319 = vmatprep.mubr.bf16.mxu0 0
        %4320 = vmatmul.mubr.bf16.gmra.mrb[0].mxu0 %v4156
        %v4321 = vpop.f32.mrb[0].mxu0
        %v4322 = vadd.f32 0.0, %v4321
        %v4323 = vpop.f32.mrb[0].mxu0
        %v4324 = vpop.f32.mrb[0].mxu0
        %v4325 = vadd.f32 0.0, %v4324
        %v4326 = vpop.f32.mrb[0].mxu0
        %4327 = vmatprep.mubr.bf16.mxu0 0
        %4328 = vmatmul.mubr.bf16.gmra.mrb[0].mxu0 %v4164
        %v4329 = vpop.f32.mrb[0].mxu0
        %v4330 = vadd.f32 0.0, %v4329
        %v4331 = vpop.f32.mrb[0].mxu0
        %v4332 = vpop.f32.mrb[0].mxu0
        %v4333 = vadd.f32 0.0, %v4332
        %v4334 = vpop.f32.mrb[0].mxu0
        %4335 = vmatprep.mubr.bf16.mxu0 0
        %4336 = vmatmul.mubr.bf16.gmra.mrb[0].mxu0 %v4172
        %v4337 = vpop.f32.mrb[0].mxu0
        %v4338 = vadd.f32 0.0, %v4337
        %v4339 = vpop.f32.mrb[0].mxu0
        %v4340 = vpop.f32.mrb[0].mxu0
        %v4341 = vadd.f32 0.0, %v4340
        %v4342 = vpop.f32.mrb[0].mxu0
        %4343 = vmatprep.mubr.bf16.mxu0 0
        %4344 = vmatmul.mubr.bf16.gmra.mrb[0].mxu0 %v4180
        %v4345 = vpop.f32.mrb[0].mxu0
        %v4346 = vadd.f32 0.0, %v4345
        %v4347 = vpop.f32.mrb[0].mxu0
        %v4348 = vpop.f32.mrb[0].mxu0
        %v4349 = vadd.f32 0.0, %v4348
        %v4350 = vpop.f32.mrb[0].mxu0
        %4351 = vmatprep.mubr.bf16.mxu0 0
        %4352 = vmatmul.mubr.bf16.gmra.mrb[0].mxu0 %v4188
        %v4353 = vpop.f32.mrb[0].mxu0
        %v4354 = vadd.f32 0.0, %v4353
        %v4355 = vpop.f32.mrb[0].mxu0
        %v4356 = vpop.f32.mrb[0].mxu0
        %v4357 = vadd.f32 0.0, %v4356
        %v4358 = vpop.f32.mrb[0].mxu0
        %4359 = vmatprep.mubr.bf16.mxu0 0
        %4360 = vmatmul.mubr.bf16.gmra.mrb[0].mxu0 %v4196
        %v4361 = vpop.f32.mrb[0].mxu0
        %v4362 = vadd.f32 0.0, %v4361
        %v4363 = vpop.f32.mrb[0].mxu0
        %v4364 = vpop.f32.mrb[0].mxu0
        %v4365 = vadd.f32 0.0, %v4364
        %v4366 = vpop.f32.mrb[0].mxu0
        %4367 = vmatprep.mubr.bf16.mxu0 0
        %4368 = vmatmul.mubr.bf16.gmra.mrb[0].mxu0 %v4204
        %v4369 = vpop.f32.mrb[0].mxu0
        %v4370 = vadd.f32 0.0, %v4369
        %v4371 = vpop.f32.mrb[0].mxu0
        %v4372 = vpop.f32.mrb[0].mxu0
        %v4373 = vadd.f32 0.0, %v4372
        %v4374 = vpop.f32.mrb[0].mxu0
        %4375 = vdwg.mxu0
        %v4376 = vadd.f32 %v3952, %v4298
        %v4377 = vadd.f32 %v3955, %v4301
        %v4378 = vadd.f32 %v3960, %v4306
        %v4379 = vadd.f32 %v3963, %v4309
        %v4380 = vadd.f32 %v3968, %v4314
        %v4381 = vadd.f32 %v3971, %v4317
        %v4382 = vadd.f32 %v3976, %v4322
        %v4383 = vadd.f32 %v3979, %v4325
        %v4384 = vadd.f32 %v3984, %v4330
        %v4385 = vadd.f32 %v3987, %v4333
        %v4386 = vadd.f32 %v3992, %v4338
        %v4387 = vadd.f32 %v3995, %v4341
        %v4388 = vadd.f32 %v4000, %v4346
        %v4389 = vadd.f32 %v4003, %v4349
        %v4390 = vadd.f32 %v4008, %v4354
        %v4391 = vadd.f32 %v4011, %v4357
        %v4392 = vadd.f32 %v4016, %v4362
        %v4393 = vadd.f32 %v4019, %v4365
        %v4394 = vadd.f32 %v4024, %v4370
        %v4395 = vadd.f32 %v4027, %v4373
        %v4396 = vld [vmem:[#allocation3 + $0xc] sm:$0xe]
        %v4397 = vld [vmem:[#allocation3 + $0x10] sm:$0xf]
        %v4398 = vld [vmem:[#allocation3 + $0x14] sm:$0xf]
        %v4399 = vld [vmem:[#allocation3 + $0x18] sm:$0xf]
        %v4400 = vld [vmem:[#allocation3 + $0x1c] sm:$0xf]
        %v4401 = vld [vmem:[#allocation3 + $0x20] sm:$0xf]
        %v4402 = vld [vmem:[#allocation3 + $0x24] sm:$0xf]
        %v4403 = vld [vmem:[#allocation3 + $0x28] sm:$0xf]
        %v4404 = vld [vmem:[#allocation3 + $0x2c] sm:$0xf]
        %v4405 = vld [vmem:[#allocation3 + $0x30] sm:$0xf]
        %v4406 = vld [vmem:[#allocation3 + $0x34] sm:$0xf]
        %v4407 = vld [vmem:[#allocation3 + $0x38] sm:$0xf]
        %v4408 = vld [vmem:[#allocation3 + $0x3c] sm:$0xf]
        %v4409 = vld [vmem:[#allocation3 + $0x40] sm:$0xf]
        %v4410 = vld [vmem:[#allocation3 + $0x44] sm:$0xf]
        %v4411 = vld [vmem:[#allocation3 + $0x48] sm:$0xf]
        %v4412 = vld [vmem:[#allocation3 + $0x4c] sm:$0xf]
        %v4413 = vld [vmem:[#allocation3 + $0x50] sm:$0xf]
        %v4414 = vld [vmem:[#allocation3 + $0x54] sm:$0xf]
        %v4415 = vld [vmem:[#allocation3 + $0x58] sm:$0xf]
        %v4416 = vld [vmem:[#allocation3 + $0x5c] sm:$0x3]
        %s4417 = scalar_lea.vmem [#allocation8], 192
        %v4418 = vld [vmem:[%s4417] sm:$0xf]
        %v4419 = vld [vmem:[%s4417 + $0x4] sm:$0xf]
        %v4420 = vld [vmem:[%s4417 + $0x8] sm:$0xf]
        %v4421 = vld [vmem:[%s4417 + $0xc] sm:$0xf]
        %v4422 = vld [vmem:[%s4417 + $0x10] sm:$0xf]
        %v4423 = vld [vmem:[%s4417 + $0x14] sm:$0xf]
        %v4424 = vld [vmem:[%s4417 + $0x18] sm:$0xf]
        %v4425 = vld [vmem:[%s4417 + $0x1c] sm:$0xf]
        %v4426 = vld [vmem:[%s4417 + $0x20] sm:$0xf]
        %v4427 = vld [vmem:[%s4417 + $0x24] sm:$0xf]
        %v4428 = vld [vmem:[%s4417 + $0x28] sm:$0xf]
        %v4429 = vld [vmem:[%s4417 + $0x2c] sm:$0xf]
        %v4430 = vld [vmem:[%s4417 + $0x30] sm:$0xf]
        %v4431 = vld [vmem:[%s4417 + $0x34] sm:$0xf]
        %v4432 = vld [vmem:[%s4417 + $0x38] sm:$0xf]
        %v4433 = vld [vmem:[%s4417 + $0x3c] sm:$0xf]
        %v4455 = vunpack.c.l.b16 %v4396
        %v4456 = vunpack.c.l.b16 %v4397
        %v4457 = vunpack.c.l.b16 %v4398
        %v4458 = vunpack.c.l.b16 %v4399
        %v4459 = vunpack.c.l.b16 %v4400
        %v4460 = vunpack.c.l.b16 %v4401
        %v4461 = vunpack.c.l.b16 %v4402
        %v4462 = vunpack.c.l.b16 %v4403
        %v4463 = vunpack.c.l.b16 %v4404
        %v4464 = vunpack.c.l.b16 %v4405
        %v4465 = vunpack.c.l.b16 %v4406
        %v4466 = vunpack.c.l.b16 %v4407
        %v4467 = vunpack.c.l.b16 %v4408
        %v4468 = vunpack.c.l.b16 %v4409
        %v4469 = vunpack.c.l.b16 %v4410
        %v4470 = vunpack.c.l.b16 %v4411
        %v4471 = vunpack.c.l.b16 %v4412
        %v4472 = vunpack.c.l.b16 %v4413
        %v4473 = vunpack.c.l.b16 %v4414
        %v4474 = vunpack.c.l.b16 %v4415
        %v4475 = vunpack.c.l.b16 %v4416
        %v4476 = vpack.c.b16 %v4456, %v4455
        %v4477 = vpack.c.b16 %v4458, %v4457
        %v4478 = vpack.c.b16 %v4460, %v4459
        %v4479 = vpack.c.b16 %v4462, %v4461
        %v4480 = vpack.c.b16 %v4464, %v4463
        %v4481 = vpack.c.b16 %v4466, %v4465
        %v4482 = vpack.c.b16 %v4468, %v4467
        %v4483 = vpack.c.b16 %v4470, %v4469
        %v4484 = vpack.c.b16 %v4472, %v4471
        %v4485 = vpack.c.b16 %v4474, %v4473
        %v4486 = vpack.c.b16 %v4475, %v4475
        %v4488 = vshrl.u32 %v4476, 16
        %v4490 = vrot.slane %v4488, 1
        %v4491 = vshll.u32 %v4476, 16
        %v4493 = vrot.slane %v4491, 2
        %v4494 = vor.u32 %v4490, %v4493
        %v4496 = vshrl.u32 %v4477, 16
        %v4498 = vrot.slane %v4496, 1
        %v4499 = vshll.u32 %v4477, 16
        %v4501 = vrot.slane %v4499, 2
        %v4502 = vor.u32 %v4498, %v4501
        %v4503 = vsel %vm732, %v4494, %v4502
        %v4505 = vshrl.u32 %v4478, 16
        %v4507 = vrot.slane %v4505, 1
        %v4508 = vshll.u32 %v4478, 16
        %v4510 = vrot.slane %v4508, 2
        %v4511 = vor.u32 %v4507, %v4510
        %v4512 = vsel %vm732, %v4502, %v4511
        %v4514 = vshrl.u32 %v4479, 16
        %v4516 = vrot.slane %v4514, 1
        %v4517 = vshll.u32 %v4479, 16
        %v4519 = vrot.slane %v4517, 2
        %v4520 = vor.u32 %v4516, %v4519
        %v4521 = vsel %vm732, %v4511, %v4520
        %v4523 = vshrl.u32 %v4480, 16
        %v4525 = vrot.slane %v4523, 1
        %v4526 = vshll.u32 %v4480, 16
        %v4528 = vrot.slane %v4526, 2
        %v4529 = vor.u32 %v4525, %v4528
        %v4530 = vsel %vm732, %v4520, %v4529
        %v4532 = vshrl.u32 %v4481, 16
        %v4534 = vrot.slane %v4532, 1
        %v4535 = vshll.u32 %v4481, 16
        %v4537 = vrot.slane %v4535, 2
        %v4538 = vor.u32 %v4534, %v4537
        %v4539 = vsel %vm732, %v4529, %v4538
        %v4541 = vshrl.u32 %v4482, 16
        %v4543 = vrot.slane %v4541, 1
        %v4544 = vshll.u32 %v4482, 16
        %v4546 = vrot.slane %v4544, 2
        %v4547 = vor.u32 %v4543, %v4546
        %v4548 = vsel %vm732, %v4538, %v4547
        %v4550 = vshrl.u32 %v4483, 16
        %v4552 = vrot.slane %v4550, 1
        %v4553 = vshll.u32 %v4483, 16
        %v4555 = vrot.slane %v4553, 2
        %v4556 = vor.u32 %v4552, %v4555
        %v4557 = vsel %vm732, %v4547, %v4556
        %v4559 = vshrl.u32 %v4484, 16
        %v4561 = vrot.slane %v4559, 1
        %v4562 = vshll.u32 %v4484, 16
        %v4564 = vrot.slane %v4562, 2
        %v4565 = vor.u32 %v4561, %v4564
        %v4566 = vsel %vm732, %v4556, %v4565
        %v4568 = vshrl.u32 %v4485, 16
        %v4570 = vrot.slane %v4568, 1
        %v4571 = vshll.u32 %v4485, 16
        %v4573 = vrot.slane %v4571, 2
        %v4574 = vor.u32 %v4570, %v4573
        %v4575 = vsel %vm732, %v4565, %v4574
        %v4577 = vshrl.u32 %v4486, 16
        %v4579 = vrot.slane %v4577, 1
        %v4580 = vshll.u32 %v4486, 16
        %v4582 = vrot.slane %v4580, 2
        %v4583 = vor.u32 %v4579, %v4582
        %v4584 = vsel %vm732, %v4574, %v4583
        %v4611 = vunpack.c.l.b16 %v4418
        %v4612 = vunpack.c.l.b16 %v4419
        %v4613 = vunpack.c.l.b16 %v4420
        %v4614 = vunpack.c.l.b16 %v4421
        %v4615 = vunpack.c.l.b16 %v4422
        %v4616 = vunpack.c.l.b16 %v4423
        %v4617 = vunpack.c.l.b16 %v4424
        %v4618 = vunpack.c.l.b16 %v4425
        %v4619 = vunpack.c.l.b16 %v4426
        %v4620 = vunpack.c.l.b16 %v4427
        %v4621 = vunpack.c.l.b16 %v4428
        %v4622 = vunpack.c.l.b16 %v4429
        %v4623 = vunpack.c.l.b16 %v4430
        %v4624 = vunpack.c.l.b16 %v4431
        %v4625 = vunpack.c.l.b16 %v4432
        %v4626 = vunpack.c.l.b16 %v4433
        %v4627 = vpack.c.b16 %v4612, %v4611
        %v4628 = vpack.c.b16 %v4614, %v4613
        %v4629 = vpack.c.b16 %v4616, %v4615
        %v4630 = vpack.c.b16 %v4618, %v4617
        %v4631 = vpack.c.b16 %v4620, %v4619
        %v4632 = vpack.c.b16 %v4622, %v4621
        %v4633 = vpack.c.b16 %v4624, %v4623
        %v4634 = vpack.c.b16 %v4626, %v4625
        %4643 = vmatprep.subr.bf16.mxu0 0
        %4644 = vmatpush1.bf16.msra.mxu0 %v4627
        %4645 = vmatprep.subr.bf16.mxu0 0
        %4646 = vmatpush1.bf16.msra.mxu0 %v4628
        %4647 = vmatprep.subr.bf16.mxu0 0
        %4648 = vmatpush1.bf16.msra.mxu0 %v4629
        %4649 = vmatprep.subr.bf16.mxu0 0
        %4650 = vmatpush1.bf16.msra.mxu0 %v4630
        %4651 = vmatprep.subr.bf16.mxu0 0
        %4652 = vmatpush1.bf16.msra.mxu0 %v4631
        %4653 = vmatprep.subr.bf16.mxu0 0
        %4654 = vmatpush1.bf16.msra.mxu0 %v4632
        %4655 = vmatprep.subr.bf16.mxu0 0
        %4656 = vmatpush1.bf16.msra.mxu0 %v4633
        %4657 = vmatprep.subr.bf16.mxu0 0
        %4658 = vmatpush1.bf16.msra.mxu0 %v4634
        %4659 = vmatprep.subr.bf16.mxu0 0
        %4660 = vmatpush1.bf16.msra.mxu0 0
        %4661 = vmatprep.subr.bf16.mxu0 0
        %4662 = vmatpush1.bf16.msra.mxu0 0
        %4663 = vmatprep.subr.bf16.mxu0 0
        %4664 = vmatpush1.bf16.msra.mxu0 0
        %4665 = vmatprep.subr.bf16.mxu0 0
        %4666 = vmatpush1.bf16.msra.mxu0 0
        %4667 = vmatprep.subr.bf16.mxu0 0
        %4668 = vmatpush1.bf16.msra.mxu0 0
        %4669 = vmatprep.subr.bf16.mxu0 0
        %4670 = vmatpush1.bf16.msra.mxu0 0
        %4671 = vmatprep.subr.bf16.mxu0 0
        %4672 = vmatpush1.bf16.msra.mxu0 0
        %4673 = vmatprep.subr.bf16.mxu0 0
        %4674 = vmatpush1.bf16.msra.mxu0 0
        %4675 = vmatprep.mubr.bf16.mxu0 0
        %4676 = vmatmul.mubr.bf16.gmra.mrb[0].mxu0 %v4503
        %v4677 = vpop.f32.mrb[0].mxu0
        %v4678 = vadd.f32 0.0, %v4677
        %v4679 = vpop.f32.mrb[0].mxu0
        %v4680 = vpop.f32.mrb[0].mxu0
        %v4681 = vadd.f32 0.0, %v4680
        %v4682 = vpop.f32.mrb[0].mxu0
        %4683 = vmatprep.mubr.bf16.mxu0 0
        %4684 = vmatmul.mubr.bf16.gmra.mrb[0].mxu0 %v4512
        %v4685 = vpop.f32.mrb[0].mxu0
        %v4686 = vadd.f32 0.0, %v4685
        %v4687 = vpop.f32.mrb[0].mxu0
        %v4688 = vpop.f32.mrb[0].mxu0
        %v4689 = vadd.f32 0.0, %v4688
        %v4690 = vpop.f32.mrb[0].mxu0
        %4691 = vmatprep.mubr.bf16.mxu0 0
        %4692 = vmatmul.mubr.bf16.gmra.mrb[0].mxu0 %v4521
        %v4693 = vpop.f32.mrb[0].mxu0
        %v4694 = vadd.f32 0.0, %v4693
        %v4695 = vpop.f32.mrb[0].mxu0
        %v4696 = vpop.f32.mrb[0].mxu0
        %v4697 = vadd.f32 0.0, %v4696
        %v4698 = vpop.f32.mrb[0].mxu0
        %4699 = vmatprep.mubr.bf16.mxu0 0
        %4700 = vmatmul.mubr.bf16.gmra.mrb[0].mxu0 %v4530
        %v4701 = vpop.f32.mrb[0].mxu0
        %v4702 = vadd.f32 0.0, %v4701
        %v4703 = vpop.f32.mrb[0].mxu0
        %v4704 = vpop.f32.mrb[0].mxu0
        %v4705 = vadd.f32 0.0, %v4704
        %v4706 = vpop.f32.mrb[0].mxu0
        %4707 = vmatprep.mubr.bf16.mxu0 0
        %4708 = vmatmul.mubr.bf16.gmra.mrb[0].mxu0 %v4539
        %v4709 = vpop.f32.mrb[0].mxu0
        %v4710 = vadd.f32 0.0, %v4709
        %v4711 = vpop.f32.mrb[0].mxu0
        %v4712 = vpop.f32.mrb[0].mxu0
        %v4713 = vadd.f32 0.0, %v4712
        %v4714 = vpop.f32.mrb[0].mxu0
        %4715 = vmatprep.mubr.bf16.mxu0 0
        %4716 = vmatmul.mubr.bf16.gmra.mrb[0].mxu0 %v4548
        %v4717 = vpop.f32.mrb[0].mxu0
        %v4718 = vadd.f32 0.0, %v4717
        %v4719 = vpop.f32.mrb[0].mxu0
        %v4720 = vpop.f32.mrb[0].mxu0
        %v4721 = vadd.f32 0.0, %v4720
        %v4722 = vpop.f32.mrb[0].mxu0
        %4723 = vmatprep.mubr.bf16.mxu0 0
        %4724 = vmatmul.mubr.bf16.gmra.mrb[0].mxu0 %v4557
        %v4725 = vpop.f32.mrb[0].mxu0
        %v4726 = vadd.f32 0.0, %v4725
        %v4727 = vpop.f32.mrb[0].mxu0
        %v4728 = vpop.f32.mrb[0].mxu0
        %v4729 = vadd.f32 0.0, %v4728
        %v4730 = vpop.f32.mrb[0].mxu0
        %4731 = vmatprep.mubr.bf16.mxu0 0
        %4732 = vmatmul.mubr.bf16.gmra.mrb[0].mxu0 %v4566
        %v4733 = vpop.f32.mrb[0].mxu0
        %v4734 = vadd.f32 0.0, %v4733
        %v4735 = vpop.f32.mrb[0].mxu0
        %v4736 = vpop.f32.mrb[0].mxu0
        %v4737 = vadd.f32 0.0, %v4736
        %v4738 = vpop.f32.mrb[0].mxu0
        %4739 = vmatprep.mubr.bf16.mxu0 0
        %4740 = vmatmul.mubr.bf16.gmra.mrb[0].mxu0 %v4575
        %v4741 = vpop.f32.mrb[0].mxu0
        %v4742 = vadd.f32 0.0, %v4741
        %v4743 = vpop.f32.mrb[0].mxu0
        %v4744 = vpop.f32.mrb[0].mxu0
        %v4745 = vadd.f32 0.0, %v4744
        %v4746 = vpop.f32.mrb[0].mxu0
        %4747 = vmatprep.mubr.bf16.mxu0 0
        %4748 = vmatmul.mubr.bf16.gmra.mrb[0].mxu0 %v4584
        %v4749 = vpop.f32.mrb[0].mxu0
        %v4750 = vadd.f32 0.0, %v4749
        %v4751 = vpop.f32.mrb[0].mxu0
        %v4752 = vpop.f32.mrb[0].mxu0
        %v4753 = vadd.f32 0.0, %v4752
        %v4754 = vpop.f32.mrb[0].mxu0
        %4755 = vdwg.mxu0
        %v4756 = vadd.f32 %v4376, %v4678
        %v4757 = vadd.f32 %v4377, %v4681
        %v4758 = vadd.f32 %v4378, %v4686
        %v4759 = vadd.f32 %v4379, %v4689
        %v4760 = vadd.f32 %v4380, %v4694
        %v4761 = vadd.f32 %v4381, %v4697
        %v4762 = vadd.f32 %v4382, %v4702
        %v4763 = vadd.f32 %v4383, %v4705
        %v4764 = vadd.f32 %v4384, %v4710
        %v4765 = vadd.f32 %v4385, %v4713
        %v4766 = vadd.f32 %v4386, %v4718
        %v4767 = vadd.f32 %v4387, %v4721
        %v4768 = vadd.f32 %v4388, %v4726
        %v4769 = vadd.f32 %v4389, %v4729
        %v4770 = vadd.f32 %v4390, %v4734
        %v4771 = vadd.f32 %v4391, %v4737
        %v4772 = vadd.f32 %v4392, %v4742
        %v4773 = vadd.f32 %v4393, %v4745
        %v4774 = vadd.f32 %v4394, %v4750
        %v4775 = vadd.f32 %v4395, %v4753
        %v4776 = vld [vmem:[#allocation3 + $0xc] sm:$0xc]
        %s4777 = scalar_lea.vmem [#allocation8], 256
        %v4778 = vld [vmem:[%s4777] sm:$0xf]
        %v4779 = vld [vmem:[%s4777 + $0x4] sm:$0xf]
        %v4780 = vld [vmem:[%s4777 + $0x8] sm:$0xf]
        %v4781 = vld [vmem:[%s4777 + $0xc] sm:$0xf]
        %v4782 = vld [vmem:[%s4777 + $0x10] sm:$0xf]
        %v4783 = vld [vmem:[%s4777 + $0x14] sm:$0xf]
        %v4784 = vld [vmem:[%s4777 + $0x18] sm:$0xf]
        %v4785 = vld [vmem:[%s4777 + $0x1c] sm:$0xf]
        %v4786 = vld [vmem:[%s4777 + $0x20] sm:$0xf]
        %v4787 = vld [vmem:[%s4777 + $0x24] sm:$0xf]
        %v4788 = vld [vmem:[%s4777 + $0x28] sm:$0xf]
        %v4789 = vld [vmem:[%s4777 + $0x2c] sm:$0xf]
        %v4790 = vld [vmem:[%s4777 + $0x30] sm:$0xf]
        %v4791 = vld [vmem:[%s4777 + $0x34] sm:$0xf]
        %v4792 = vld [vmem:[%s4777 + $0x38] sm:$0xf]
        %v4793 = vld [vmem:[%s4777 + $0x3c] sm:$0xf]
        %v4795 = vunpack.c.l.b16 %v4776
        %v4796 = vpack.c.b16 %v4456, %v4795
        %v4797 = vrot.slane %v4796, 2
        %v4798 = vrot.slane %v4477, 2
        %v4799 = vsel %vm509, %v4797, %v4798
        %v4800 = vrot.slane %v4478, 2
        %v4801 = vsel %vm509, %v4798, %v4800
        %v4802 = vrot.slane %v4479, 2
        %v4803 = vsel %vm509, %v4800, %v4802
        %v4804 = vrot.slane %v4480, 2
        %v4805 = vsel %vm509, %v4802, %v4804
        %v4806 = vrot.slane %v4481, 2
        %v4807 = vsel %vm509, %v4804, %v4806
        %v4808 = vrot.slane %v4482, 2
        %v4809 = vsel %vm509, %v4806, %v4808
        %v4810 = vrot.slane %v4483, 2
        %v4811 = vsel %vm509, %v4808, %v4810
        %v4812 = vrot.slane %v4484, 2
        %v4813 = vsel %vm509, %v4810, %v4812
        %v4814 = vrot.slane %v4485, 2
        %v4815 = vsel %vm509, %v4812, %v4814
        %v4816 = vrot.slane %v4486, 2
        %v4817 = vsel %vm509, %v4814, %v4816
        %v4844 = vunpack.c.l.b16 %v4778
        %v4845 = vunpack.c.l.b16 %v4779
        %v4846 = vunpack.c.l.b16 %v4780
        %v4847 = vunpack.c.l.b16 %v4781
        %v4848 = vunpack.c.l.b16 %v4782
        %v4849 = vunpack.c.l.b16 %v4783
        %v4850 = vunpack.c.l.b16 %v4784
        %v4851 = vunpack.c.l.b16 %v4785
        %v4852 = vunpack.c.l.b16 %v4786
        %v4853 = vunpack.c.l.b16 %v4787
        %v4854 = vunpack.c.l.b16 %v4788
        %v4855 = vunpack.c.l.b16 %v4789
        %v4856 = vunpack.c.l.b16 %v4790
        %v4857 = vunpack.c.l.b16 %v4791
        %v4858 = vunpack.c.l.b16 %v4792
        %v4859 = vunpack.c.l.b16 %v4793
        %v4860 = vpack.c.b16 %v4845, %v4844
        %v4861 = vpack.c.b16 %v4847, %v4846
        %v4862 = vpack.c.b16 %v4849, %v4848
        %v4863 = vpack.c.b16 %v4851, %v4850
        %v4864 = vpack.c.b16 %v4853, %v4852
        %v4865 = vpack.c.b16 %v4855, %v4854
        %v4866 = vpack.c.b16 %v4857, %v4856
        %v4867 = vpack.c.b16 %v4859, %v4858
        %4876 = vmatprep.subr.bf16.mxu0 0
        %4877 = vmatpush1.bf16.msra.mxu0 %v4860
        %4878 = vmatprep.subr.bf16.mxu0 0
        %4879 = vmatpush1.bf16.msra.mxu0 %v4861
        %4880 = vmatprep.subr.bf16.mxu0 0
        %4881 = vmatpush1.bf16.msra.mxu0 %v4862
        %4882 = vmatprep.subr.bf16.mxu0 0
        %4883 = vmatpush1.bf16.msra.mxu0 %v4863
        %4884 = vmatprep.subr.bf16.mxu0 0
        %4885 = vmatpush1.bf16.msra.mxu0 %v4864
        %4886 = vmatprep.subr.bf16.mxu0 0
        %4887 = vmatpush1.bf16.msra.mxu0 %v4865
        %4888 = vmatprep.subr.bf16.mxu0 0
        %4889 = vmatpush1.bf16.msra.mxu0 %v4866
        %4890 = vmatprep.subr.bf16.mxu0 0
        %4891 = vmatpush1.bf16.msra.mxu0 %v4867
        %4892 = vmatprep.subr.bf16.mxu0 0
        %4893 = vmatpush1.bf16.msra.mxu0 0
        %4894 = vmatprep.subr.bf16.mxu0 0
        %4895 = vmatpush1.bf16.msra.mxu0 0
        %4896 = vmatprep.subr.bf16.mxu0 0
        %4897 = vmatpush1.bf16.msra.mxu0 0
        %4898 = vmatprep.subr.bf16.mxu0 0
        %4899 = vmatpush1.bf16.msra.mxu0 0
        %4900 = vmatprep.subr.bf16.mxu0 0
        %4901 = vmatpush1.bf16.msra.mxu0 0
        %4902 = vmatprep.subr.bf16.mxu0 0
        %4903 = vmatpush1.bf16.msra.mxu0 0
        %4904 = vmatprep.subr.bf16.mxu0 0
        %4905 = vmatpush1.bf16.msra.mxu0 0
        %4906 = vmatprep.subr.bf16.mxu0 0
        %4907 = vmatpush1.bf16.msra.mxu0 0
        %4908 = vmatprep.mubr.bf16.mxu0 0
        %4909 = vmatmul.mubr.bf16.gmra.mrb[0].mxu0 %v4799
        %v4910 = vpop.f32.mrb[0].mxu0
        %v4911 = vadd.f32 0.0, %v4910
        %v4912 = vpop.f32.mrb[0].mxu0
        %v4913 = vpop.f32.mrb[0].mxu0
        %v4914 = vadd.f32 0.0, %v4913
        %v4915 = vpop.f32.mrb[0].mxu0
        %4916 = vmatprep.mubr.bf16.mxu0 0
        %4917 = vmatmul.mubr.bf16.gmra.mrb[0].mxu0 %v4801
        %v4918 = vpop.f32.mrb[0].mxu0
        %v4919 = vadd.f32 0.0, %v4918
        %v4920 = vpop.f32.mrb[0].mxu0
        %v4921 = vpop.f32.mrb[0].mxu0
        %v4922 = vadd.f32 0.0, %v4921
        %v4923 = vpop.f32.mrb[0].mxu0
        %4924 = vmatprep.mubr.bf16.mxu0 0
        %4925 = vmatmul.mubr.bf16.gmra.mrb[0].mxu0 %v4803
        %v4926 = vpop.f32.mrb[0].mxu0
        %v4927 = vadd.f32 0.0, %v4926
        %v4928 = vpop.f32.mrb[0].mxu0
        %v4929 = vpop.f32.mrb[0].mxu0
        %v4930 = vadd.f32 0.0, %v4929
        %v4931 = vpop.f32.mrb[0].mxu0
        %4932 = vmatprep.mubr.bf16.mxu0 0
        %4933 = vmatmul.mubr.bf16.gmra.mrb[0].mxu0 %v4805
        %v4934 = vpop.f32.mrb[0].mxu0
        %v4935 = vadd.f32 0.0, %v4934
        %v4936 = vpop.f32.mrb[0].mxu0
        %v4937 = vpop.f32.mrb[0].mxu0
        %v4938 = vadd.f32 0.0, %v4937
        %v4939 = vpop.f32.mrb[0].mxu0
        %4940 = vmatprep.mubr.bf16.mxu0 0
        %4941 = vmatmul.mubr.bf16.gmra.mrb[0].mxu0 %v4807
        %v4942 = vpop.f32.mrb[0].mxu0
        %v4943 = vadd.f32 0.0, %v4942
        %v4944 = vpop.f32.mrb[0].mxu0
        %v4945 = vpop.f32.mrb[0].mxu0
        %v4946 = vadd.f32 0.0, %v4945
        %v4947 = vpop.f32.mrb[0].mxu0
        %4948 = vmatprep.mubr.bf16.mxu0 0
        %4949 = vmatmul.mubr.bf16.gmra.mrb[0].mxu0 %v4809
        %v4950 = vpop.f32.mrb[0].mxu0
        %v4951 = vadd.f32 0.0, %v4950
        %v4952 = vpop.f32.mrb[0].mxu0
        %v4953 = vpop.f32.mrb[0].mxu0
        %v4954 = vadd.f32 0.0, %v4953
        %v4955 = vpop.f32.mrb[0].mxu0
        %4956 = vmatprep.mubr.bf16.mxu0 0
        %4957 = vmatmul.mubr.bf16.gmra.mrb[0].mxu0 %v4811
        %v4958 = vpop.f32.mrb[0].mxu0
        %v4959 = vadd.f32 0.0, %v4958
        %v4960 = vpop.f32.mrb[0].mxu0
        %v4961 = vpop.f32.mrb[0].mxu0
        %v4962 = vadd.f32 0.0, %v4961
        %v4963 = vpop.f32.mrb[0].mxu0
        %4964 = vmatprep.mubr.bf16.mxu0 0
        %4965 = vmatmul.mubr.bf16.gmra.mrb[0].mxu0 %v4813
        %v4966 = vpop.f32.mrb[0].mxu0
        %v4967 = vadd.f32 0.0, %v4966
        %v4968 = vpop.f32.mrb[0].mxu0
        %v4969 = vpop.f32.mrb[0].mxu0
        %v4970 = vadd.f32 0.0, %v4969
        %v4971 = vpop.f32.mrb[0].mxu0
        %4972 = vmatprep.mubr.bf16.mxu0 0
        %4973 = vmatmul.mubr.bf16.gmra.mrb[0].mxu0 %v4815
        %v4974 = vpop.f32.mrb[0].mxu0
        %v4975 = vadd.f32 0.0, %v4974
        %v4976 = vpop.f32.mrb[0].mxu0
        %v4977 = vpop.f32.mrb[0].mxu0
        %v4978 = vadd.f32 0.0, %v4977
        %v4979 = vpop.f32.mrb[0].mxu0
        %4980 = vmatprep.mubr.bf16.mxu0 0
        %4981 = vmatmul.mubr.bf16.gmra.mrb[0].mxu0 %v4817
        %v4982 = vpop.f32.mrb[0].mxu0
        %v4983 = vadd.f32 0.0, %v4982
        %v4984 = vpop.f32.mrb[0].mxu0
        %v4985 = vpop.f32.mrb[0].mxu0
        %v4986 = vadd.f32 0.0, %v4985
        %v4987 = vpop.f32.mrb[0].mxu0
        %4988 = vdwg.mxu0
        %v4989 = vadd.f32 %v4756, %v4911
        %v4990 = vadd.f32 %v4757, %v4914
        %v4991 = vadd.f32 %v4758, %v4919
        %v4992 = vadd.f32 %v4759, %v4922
        %v4993 = vadd.f32 %v4760, %v4927
        %v4994 = vadd.f32 %v4761, %v4930
        %v4995 = vadd.f32 %v4762, %v4935
        %v4996 = vadd.f32 %v4763, %v4938
        %v4997 = vadd.f32 %v4764, %v4943
        %v4998 = vadd.f32 %v4765, %v4946
        %v4999 = vadd.f32 %v4766, %v4951
        %v5000 = vadd.f32 %v4767, %v4954
        %v5001 = vadd.f32 %v4768, %v4959
        %v5002 = vadd.f32 %v4769, %v4962
        %v5003 = vadd.f32 %v4770, %v4967
        %v5004 = vadd.f32 %v4771, %v4970
        %v5005 = vadd.f32 %v4772, %v4975
        %v5006 = vadd.f32 %v4773, %v4978
        %v5007 = vadd.f32 %v4774, %v4983
        %v5008 = vadd.f32 %v4775, %v4986
        %v5009 = vld [vmem:[#allocation3 + $0x5c] sm:$0x7]
        %s5010 = scalar_lea.vmem [#allocation8], 320
        %v5011 = vld [vmem:[%s5010] sm:$0xf]
        %v5012 = vld [vmem:[%s5010 + $0x4] sm:$0xf]
        %v5013 = vld [vmem:[%s5010 + $0x8] sm:$0xf]
        %v5014 = vld [vmem:[%s5010 + $0xc] sm:$0xf]
        %v5015 = vld [vmem:[%s5010 + $0x10] sm:$0xf]
        %v5016 = vld [vmem:[%s5010 + $0x14] sm:$0xf]
        %v5017 = vld [vmem:[%s5010 + $0x18] sm:$0xf]
        %v5018 = vld [vmem:[%s5010 + $0x1c] sm:$0xf]
        %v5019 = vld [vmem:[%s5010 + $0x20] sm:$0xf]
        %v5020 = vld [vmem:[%s5010 + $0x24] sm:$0xf]
        %v5021 = vld [vmem:[%s5010 + $0x28] sm:$0xf]
        %v5022 = vld [vmem:[%s5010 + $0x2c] sm:$0xf]
        %v5023 = vld [vmem:[%s5010 + $0x30] sm:$0xf]
        %v5024 = vld [vmem:[%s5010 + $0x34] sm:$0xf]
        %v5025 = vld [vmem:[%s5010 + $0x38] sm:$0xf]
        %v5026 = vld [vmem:[%s5010 + $0x3c] sm:$0xf]
        %v5028 = vunpack.c.l.b16 %v5009
        %v5029 = vpack.c.b16 %v5028, %v5028
        %v5031 = vshrl.u32 %v4796, 16
        %v5033 = vrot.slane %v5031, 2
        %v5034 = vshll.u32 %v4796, 16
        %v5036 = vrot.slane %v5034, 3
        %v5037 = vor.u32 %v5033, %v5036
        %v5038 = vrot.slane %v4496, 2
        %v5039 = vrot.slane %v4499, 3
        %v5040 = vor.u32 %v5038, %v5039
        %v5041 = vsel %vm1063, %v5037, %v5040
        %v5042 = vrot.slane %v4505, 2
        %v5043 = vrot.slane %v4508, 3
        %v5044 = vor.u32 %v5042, %v5043
        %v5045 = vsel %vm1063, %v5040, %v5044
        %v5046 = vrot.slane %v4514, 2
        %v5047 = vrot.slane %v4517, 3
        %v5048 = vor.u32 %v5046, %v5047
        %v5049 = vsel %vm1063, %v5044, %v5048
        %v5050 = vrot.slane %v4523, 2
        %v5051 = vrot.slane %v4526, 3
        %v5052 = vor.u32 %v5050, %v5051
        %v5053 = vsel %vm1063, %v5048, %v5052
        %v5054 = vrot.slane %v4532, 2
        %v5055 = vrot.slane %v4535, 3
        %v5056 = vor.u32 %v5054, %v5055
        %v5057 = vsel %vm1063, %v5052, %v5056
        %v5058 = vrot.slane %v4541, 2
        %v5059 = vrot.slane %v4544, 3
        %v5060 = vor.u32 %v5058, %v5059
        %v5061 = vsel %vm1063, %v5056, %v5060
        %v5062 = vrot.slane %v4550, 2
        %v5063 = vrot.slane %v4553, 3
        %v5064 = vor.u32 %v5062, %v5063
        %v5065 = vsel %vm1063, %v5060, %v5064
        %v5066 = vrot.slane %v4559, 2
        %v5067 = vrot.slane %v4562, 3
        %v5068 = vor.u32 %v5066, %v5067
        %v5069 = vsel %vm1063, %v5064, %v5068
        %v5070 = vrot.slane %v4568, 2
        %v5071 = vrot.slane %v4571, 3
        %v5072 = vor.u32 %v5070, %v5071
        %v5073 = vsel %vm1063, %v5068, %v5072
        %v5075 = vshrl.u32 %v5029, 16
        %v5077 = vrot.slane %v5075, 2
        %v5078 = vshll.u32 %v5029, 16
        %v5080 = vrot.slane %v5078, 3
        %v5081 = vor.u32 %v5077, %v5080
        %v5082 = vsel %vm1063, %v5072, %v5081
        %v5109 = vunpack.c.l.b16 %v5011
        %v5110 = vunpack.c.l.b16 %v5012
        %v5111 = vunpack.c.l.b16 %v5013
        %v5112 = vunpack.c.l.b16 %v5014
        %v5113 = vunpack.c.l.b16 %v5015
        %v5114 = vunpack.c.l.b16 %v5016
        %v5115 = vunpack.c.l.b16 %v5017
        %v5116 = vunpack.c.l.b16 %v5018
        %v5117 = vunpack.c.l.b16 %v5019
        %v5118 = vunpack.c.l.b16 %v5020
        %v5119 = vunpack.c.l.b16 %v5021
        %v5120 = vunpack.c.l.b16 %v5022
        %v5121 = vunpack.c.l.b16 %v5023
        %v5122 = vunpack.c.l.b16 %v5024
        %v5123 = vunpack.c.l.b16 %v5025
        %v5124 = vunpack.c.l.b16 %v5026
        %v5125 = vpack.c.b16 %v5110, %v5109
        %v5126 = vpack.c.b16 %v5112, %v5111
        %v5127 = vpack.c.b16 %v5114, %v5113
        %v5128 = vpack.c.b16 %v5116, %v5115
        %v5129 = vpack.c.b16 %v5118, %v5117
        %v5130 = vpack.c.b16 %v5120, %v5119
        %v5131 = vpack.c.b16 %v5122, %v5121
        %v5132 = vpack.c.b16 %v5124, %v5123
        %5141 = vmatprep.subr.bf16.mxu0 0
        %5142 = vmatpush1.bf16.msra.mxu0 %v5125
        %5143 = vmatprep.subr.bf16.mxu0 0
        %5144 = vmatpush1.bf16.msra.mxu0 %v5126
        %5145 = vmatprep.subr.bf16.mxu0 0
        %5146 = vmatpush1.bf16.msra.mxu0 %v5127
        %5147 = vmatprep.subr.bf16.mxu0 0
        %5148 = vmatpush1.bf16.msra.mxu0 %v5128
        %5149 = vmatprep.subr.bf16.mxu0 0
        %5150 = vmatpush1.bf16.msra.mxu0 %v5129
        %5151 = vmatprep.subr.bf16.mxu0 0
        %5152 = vmatpush1.bf16.msra.mxu0 %v5130
        %5153 = vmatprep.subr.bf16.mxu0 0
        %5154 = vmatpush1.bf16.msra.mxu0 %v5131
        %5155 = vmatprep.subr.bf16.mxu0 0
        %5156 = vmatpush1.bf16.msra.mxu0 %v5132
        %5157 = vmatprep.subr.bf16.mxu0 0
        %5158 = vmatpush1.bf16.msra.mxu0 0
        %5159 = vmatprep.subr.bf16.mxu0 0
        %5160 = vmatpush1.bf16.msra.mxu0 0
        %5161 = vmatprep.subr.bf16.mxu0 0
        %5162 = vmatpush1.bf16.msra.mxu0 0
        %5163 = vmatprep.subr.bf16.mxu0 0
        %5164 = vmatpush1.bf16.msra.mxu0 0
        %5165 = vmatprep.subr.bf16.mxu0 0
        %5166 = vmatpush1.bf16.msra.mxu0 0
        %5167 = vmatprep.subr.bf16.mxu0 0
        %5168 = vmatpush1.bf16.msra.mxu0 0
        %5169 = vmatprep.subr.bf16.mxu0 0
        %5170 = vmatpush1.bf16.msra.mxu0 0
        %5171 = vmatprep.subr.bf16.mxu0 0
        %5172 = vmatpush1.bf16.msra.mxu0 0
        %5173 = vmatprep.mubr.bf16.mxu0 0
        %5174 = vmatmul.mubr.bf16.gmra.mrb[0].mxu0 %v5041
        %v5175 = vpop.f32.mrb[0].mxu0
        %v5176 = vadd.f32 0.0, %v5175
        %v5177 = vpop.f32.mrb[0].mxu0
        %v5178 = vpop.f32.mrb[0].mxu0
        %v5179 = vadd.f32 0.0, %v5178
        %v5180 = vpop.f32.mrb[0].mxu0
        %5181 = vmatprep.mubr.bf16.mxu0 0
        %5182 = vmatmul.mubr.bf16.gmra.mrb[0].mxu0 %v5045
        %v5183 = vpop.f32.mrb[0].mxu0
        %v5184 = vadd.f32 0.0, %v5183
        %v5185 = vpop.f32.mrb[0].mxu0
        %v5186 = vpop.f32.mrb[0].mxu0
        %v5187 = vadd.f32 0.0, %v5186
        %v5188 = vpop.f32.mrb[0].mxu0
        %5189 = vmatprep.mubr.bf16.mxu0 0
        %5190 = vmatmul.mubr.bf16.gmra.mrb[0].mxu0 %v5049
        %v5191 = vpop.f32.mrb[0].mxu0
        %v5192 = vadd.f32 0.0, %v5191
        %v5193 = vpop.f32.mrb[0].mxu0
        %v5194 = vpop.f32.mrb[0].mxu0
        %v5195 = vadd.f32 0.0, %v5194
        %v5196 = vpop.f32.mrb[0].mxu0
        %5197 = vmatprep.mubr.bf16.mxu0 0
        %5198 = vmatmul.mubr.bf16.gmra.mrb[0].mxu0 %v5053
        %v5199 = vpop.f32.mrb[0].mxu0
        %v5200 = vadd.f32 0.0, %v5199
        %v5201 = vpop.f32.mrb[0].mxu0
        %v5202 = vpop.f32.mrb[0].mxu0
        %v5203 = vadd.f32 0.0, %v5202
        %v5204 = vpop.f32.mrb[0].mxu0
        %5205 = vmatprep.mubr.bf16.mxu0 0
        %5206 = vmatmul.mubr.bf16.gmra.mrb[0].mxu0 %v5057
        %v5207 = vpop.f32.mrb[0].mxu0
        %v5208 = vadd.f32 0.0, %v5207
        %v5209 = vpop.f32.mrb[0].mxu0
        %v5210 = vpop.f32.mrb[0].mxu0
        %v5211 = vadd.f32 0.0, %v5210
        %v5212 = vpop.f32.mrb[0].mxu0
        %5213 = vmatprep.mubr.bf16.mxu0 0
        %5214 = vmatmul.mubr.bf16.gmra.mrb[0].mxu0 %v5061
        %v5215 = vpop.f32.mrb[0].mxu0
        %v5216 = vadd.f32 0.0, %v5215
        %v5217 = vpop.f32.mrb[0].mxu0
        %v5218 = vpop.f32.mrb[0].mxu0
        %v5219 = vadd.f32 0.0, %v5218
        %v5220 = vpop.f32.mrb[0].mxu0
        %5221 = vmatprep.mubr.bf16.mxu0 0
        %5222 = vmatmul.mubr.bf16.gmra.mrb[0].mxu0 %v5065
        %v5223 = vpop.f32.mrb[0].mxu0
        %v5224 = vadd.f32 0.0, %v5223
        %v5225 = vpop.f32.mrb[0].mxu0
        %v5226 = vpop.f32.mrb[0].mxu0
        %v5227 = vadd.f32 0.0, %v5226
        %v5228 = vpop.f32.mrb[0].mxu0
        %5229 = vmatprep.mubr.bf16.mxu0 0
        %5230 = vmatmul.mubr.bf16.gmra.mrb[0].mxu0 %v5069
        %v5231 = vpop.f32.mrb[0].mxu0
        %v5232 = vadd.f32 0.0, %v5231
        %v5233 = vpop.f32.mrb[0].mxu0
        %v5234 = vpop.f32.mrb[0].mxu0
        %v5235 = vadd.f32 0.0, %v5234
        %v5236 = vpop.f32.mrb[0].mxu0
        %5237 = vmatprep.mubr.bf16.mxu0 0
        %5238 = vmatmul.mubr.bf16.gmra.mrb[0].mxu0 %v5073
        %v5239 = vpop.f32.mrb[0].mxu0
        %v5240 = vadd.f32 0.0, %v5239
        %v5241 = vpop.f32.mrb[0].mxu0
        %v5242 = vpop.f32.mrb[0].mxu0
        %v5243 = vadd.f32 0.0, %v5242
        %v5244 = vpop.f32.mrb[0].mxu0
        %5245 = vmatprep.mubr.bf16.mxu0 0
        %5246 = vmatmul.mubr.bf16.gmra.mrb[0].mxu0 %v5082
        %v5247 = vpop.f32.mrb[0].mxu0
        %v5248 = vadd.f32 0.0, %v5247
        %v5249 = vpop.f32.mrb[0].mxu0
        %v5250 = vpop.f32.mrb[0].mxu0
        %v5251 = vadd.f32 0.0, %v5250
        %v5252 = vpop.f32.mrb[0].mxu0
        %5253 = vdwg.mxu0
        %v5254 = vadd.f32 %v4989, %v5176
        %v5255 = vadd.f32 %v4990, %v5179
        %v5256 = vadd.f32 %v4991, %v5184
        %v5257 = vadd.f32 %v4992, %v5187
        %v5258 = vadd.f32 %v4993, %v5192
        %v5259 = vadd.f32 %v4994, %v5195
        %v5260 = vadd.f32 %v4995, %v5200
        %v5261 = vadd.f32 %v4996, %v5203
        %v5262 = vadd.f32 %v4997, %v5208
        %v5263 = vadd.f32 %v4998, %v5211
        %v5264 = vadd.f32 %v4999, %v5216
        %v5265 = vadd.f32 %v5000, %v5219
        %v5266 = vadd.f32 %v5001, %v5224
        %v5267 = vadd.f32 %v5002, %v5227
        %v5268 = vadd.f32 %v5003, %v5232
        %v5269 = vadd.f32 %v5004, %v5235
        %v5270 = vadd.f32 %v5005, %v5240
        %v5271 = vadd.f32 %v5006, %v5243
        %v5272 = vadd.f32 %v5007, %v5248
        %v5273 = vadd.f32 %v5008, %v5251
        %v5274 = vld [vmem:[#allocation3 + $0x14] sm:$0x8]
        %v5275 = vld [vmem:[#allocation3 + $0x18] sm:$0xf]
        %v5276 = vld [vmem:[#allocation3 + $0x1c] sm:$0xf]
        %v5277 = vld [vmem:[#allocation3 + $0x20] sm:$0xf]
        %v5278 = vld [vmem:[#allocation3 + $0x24] sm:$0xf]
        %v5279 = vld [vmem:[#allocation3 + $0x28] sm:$0xf]
        %v5280 = vld [vmem:[#allocation3 + $0x2c] sm:$0xf]
        %v5281 = vld [vmem:[#allocation3 + $0x30] sm:$0xf]
        %v5282 = vld [vmem:[#allocation3 + $0x34] sm:$0xf]
        %v5283 = vld [vmem:[#allocation3 + $0x38] sm:$0xf]
        %v5284 = vld [vmem:[#allocation3 + $0x3c] sm:$0xf]
        %v5285 = vld [vmem:[#allocation3 + $0x40] sm:$0xf]
        %v5286 = vld [vmem:[#allocation3 + $0x44] sm:$0xf]
        %v5287 = vld [vmem:[#allocation3 + $0x48] sm:$0xf]
        %v5288 = vld [vmem:[#allocation3 + $0x4c] sm:$0xf]
        %v5289 = vld [vmem:[#allocation3 + $0x50] sm:$0xf]
        %v5290 = vld [vmem:[#allocation3 + $0x54] sm:$0xf]
        %v5291 = vld [vmem:[#allocation3 + $0x58] sm:$0xf]
        %v5292 = vld [vmem:[#allocation3 + $0x5c] sm:$0xf]
        %v5293 = vld [vmem:[#allocation3 + $0x60] sm:$0xf]
        %v5294 = vld [vmem:[#allocation3 + $0x64] sm:$0xf]
        %s5295 = scalar_lea.vmem [#allocation8], 384
        %v5296 = vld [vmem:[%s5295] sm:$0xf]
        %v5297 = vld [vmem:[%s5295 + $0x4] sm:$0xf]
        %v5298 = vld [vmem:[%s5295 + $0x8] sm:$0xf]
        %v5299 = vld [vmem:[%s5295 + $0xc] sm:$0xf]
        %v5300 = vld [vmem:[%s5295 + $0x10] sm:$0xf]
        %v5301 = vld [vmem:[%s5295 + $0x14] sm:$0xf]
        %v5302 = vld [vmem:[%s5295 + $0x18] sm:$0xf]
        %v5303 = vld [vmem:[%s5295 + $0x1c] sm:$0xf]
        %v5304 = vld [vmem:[%s5295 + $0x20] sm:$0xf]
        %v5305 = vld [vmem:[%s5295 + $0x24] sm:$0xf]
        %v5306 = vld [vmem:[%s5295 + $0x28] sm:$0xf]
        %v5307 = vld [vmem:[%s5295 + $0x2c] sm:$0xf]
        %v5308 = vld [vmem:[%s5295 + $0x30] sm:$0xf]
        %v5309 = vld [vmem:[%s5295 + $0x34] sm:$0xf]
        %v5310 = vld [vmem:[%s5295 + $0x38] sm:$0xf]
        %v5311 = vld [vmem:[%s5295 + $0x3c] sm:$0xf]
        %v5333 = vunpack.c.l.b16 %v5274
        %v5334 = vunpack.c.l.b16 %v5275
        %v5335 = vunpack.c.l.b16 %v5276
        %v5336 = vunpack.c.l.b16 %v5277
        %v5337 = vunpack.c.l.b16 %v5278
        %v5338 = vunpack.c.l.b16 %v5279
        %v5339 = vunpack.c.l.b16 %v5280
        %v5340 = vunpack.c.l.b16 %v5281
        %v5341 = vunpack.c.l.b16 %v5282
        %v5342 = vunpack.c.l.b16 %v5283
        %v5343 = vunpack.c.l.b16 %v5284
        %v5344 = vunpack.c.l.b16 %v5285
        %v5345 = vunpack.c.l.b16 %v5286
        %v5346 = vunpack.c.l.b16 %v5287
        %v5347 = vunpack.c.l.b16 %v5288
        %v5348 = vunpack.c.l.b16 %v5289
        %v5349 = vunpack.c.l.b16 %v5290
        %v5350 = vunpack.c.l.b16 %v5291
        %v5351 = vunpack.c.l.b16 %v5292
        %v5352 = vunpack.c.l.b16 %v5293
        %v5353 = vunpack.c.l.b16 %v5294
        %v5354 = vpack.c.b16 %v5334, %v5333
        %v5355 = vpack.c.b16 %v5336, %v5335
        %v5356 = vpack.c.b16 %v5338, %v5337
        %v5357 = vpack.c.b16 %v5340, %v5339
        %v5358 = vpack.c.b16 %v5342, %v5341
        %v5359 = vpack.c.b16 %v5344, %v5343
        %v5360 = vpack.c.b16 %v5346, %v5345
        %v5361 = vpack.c.b16 %v5348, %v5347
        %v5362 = vpack.c.b16 %v5350, %v5349
        %v5363 = vpack.c.b16 %v5352, %v5351
        %v5364 = vpack.c.b16 %v5353, %v5353
        %v5366 = vshrl.u32 %v5354, 16
        %v5368 = vrot.slane %v5366, 3
        %v5369 = vshll.u32 %v5354, 16
        %v5371 = vrot.slane %v5369, 4
        %v5372 = vor.u32 %v5368, %v5371
        %v5374 = vshrl.u32 %v5355, 16
        %v5376 = vrot.slane %v5374, 3
        %v5377 = vshll.u32 %v5355, 16
        %v5379 = vrot.slane %v5377, 4
        %v5380 = vor.u32 %v5376, %v5379
        %v5381 = vsel %vm1359, %v5372, %v5380
        %v5383 = vshrl.u32 %v5356, 16
        %v5385 = vrot.slane %v5383, 3
        %v5386 = vshll.u32 %v5356, 16
        %v5388 = vrot.slane %v5386, 4
        %v5389 = vor.u32 %v5385, %v5388
        %v5390 = vsel %vm1359, %v5380, %v5389
        %v5392 = vshrl.u32 %v5357, 16
        %v5394 = vrot.slane %v5392, 3
        %v5395 = vshll.u32 %v5357, 16
        %v5397 = vrot.slane %v5395, 4
        %v5398 = vor.u32 %v5394, %v5397
        %v5399 = vsel %vm1359, %v5389, %v5398
        %v5401 = vshrl.u32 %v5358, 16
        %v5403 = vrot.slane %v5401, 3
        %v5404 = vshll.u32 %v5358, 16
        %v5406 = vrot.slane %v5404, 4
        %v5407 = vor.u32 %v5403, %v5406
        %v5408 = vsel %vm1359, %v5398, %v5407
        %v5410 = vshrl.u32 %v5359, 16
        %v5412 = vrot.slane %v5410, 3
        %v5413 = vshll.u32 %v5359, 16
        %v5415 = vrot.slane %v5413, 4
        %v5416 = vor.u32 %v5412, %v5415
        %v5417 = vsel %vm1359, %v5407, %v5416
        %v5419 = vshrl.u32 %v5360, 16
        %v5421 = vrot.slane %v5419, 3
        %v5422 = vshll.u32 %v5360, 16
        %v5424 = vrot.slane %v5422, 4
        %v5425 = vor.u32 %v5421, %v5424
        %v5426 = vsel %vm1359, %v5416, %v5425
        %v5428 = vshrl.u32 %v5361, 16
        %v5430 = vrot.slane %v5428, 3
        %v5431 = vshll.u32 %v5361, 16
        %v5433 = vrot.slane %v5431, 4
        %v5434 = vor.u32 %v5430, %v5433
        %v5435 = vsel %vm1359, %v5425, %v5434
        %v5437 = vshrl.u32 %v5362, 16
        %v5439 = vrot.slane %v5437, 3
        %v5440 = vshll.u32 %v5362, 16
        %v5442 = vrot.slane %v5440, 4
        %v5443 = vor.u32 %v5439, %v5442
        %v5444 = vsel %vm1359, %v5434, %v5443
        %v5446 = vshrl.u32 %v5363, 16
        %v5448 = vrot.slane %v5446, 3
        %v5449 = vshll.u32 %v5363, 16
        %v5451 = vrot.slane %v5449, 4
        %v5452 = vor.u32 %v5448, %v5451
        %v5453 = vsel %vm1359, %v5443, %v5452
        %v5455 = vshrl.u32 %v5364, 16
        %v5457 = vrot.slane %v5455, 3
        %v5458 = vshll.u32 %v5364, 16
        %v5460 = vrot.slane %v5458, 4
        %v5461 = vor.u32 %v5457, %v5460
        %v5462 = vsel %vm1359, %v5452, %v5461
        %v5489 = vunpack.c.l.b16 %v5296
        %v5490 = vunpack.c.l.b16 %v5297
        %v5491 = vunpack.c.l.b16 %v5298
        %v5492 = vunpack.c.l.b16 %v5299
        %v5493 = vunpack.c.l.b16 %v5300
        %v5494 = vunpack.c.l.b16 %v5301
        %v5495 = vunpack.c.l.b16 %v5302
        %v5496 = vunpack.c.l.b16 %v5303
        %v5497 = vunpack.c.l.b16 %v5304
        %v5498 = vunpack.c.l.b16 %v5305
        %v5499 = vunpack.c.l.b16 %v5306
        %v5500 = vunpack.c.l.b16 %v5307
        %v5501 = vunpack.c.l.b16 %v5308
        %v5502 = vunpack.c.l.b16 %v5309
        %v5503 = vunpack.c.l.b16 %v5310
        %v5504 = vunpack.c.l.b16 %v5311
        %v5505 = vpack.c.b16 %v5490, %v5489
        %v5506 = vpack.c.b16 %v5492, %v5491
        %v5507 = vpack.c.b16 %v5494, %v5493
        %v5508 = vpack.c.b16 %v5496, %v5495
        %v5509 = vpack.c.b16 %v5498, %v5497
        %v5510 = vpack.c.b16 %v5500, %v5499
        %v5511 = vpack.c.b16 %v5502, %v5501
        %v5512 = vpack.c.b16 %v5504, %v5503
        %5521 = vmatprep.subr.bf16.mxu0 0
        %5522 = vmatpush1.bf16.msra.mxu0 %v5505
        %5523 = vmatprep.subr.bf16.mxu0 0
        %5524 = vmatpush1.bf16.msra.mxu0 %v5506
        %5525 = vmatprep.subr.bf16.mxu0 0
        %5526 = vmatpush1.bf16.msra.mxu0 %v5507
        %5527 = vmatprep.subr.bf16.mxu0 0
        %5528 = vmatpush1.bf16.msra.mxu0 %v5508
        %5529 = vmatprep.subr.bf16.mxu0 0
        %5530 = vmatpush1.bf16.msra.mxu0 %v5509
        %5531 = vmatprep.subr.bf16.mxu0 0
        %5532 = vmatpush1.bf16.msra.mxu0 %v5510
        %5533 = vmatprep.subr.bf16.mxu0 0
        %5534 = vmatpush1.bf16.msra.mxu0 %v5511
        %5535 = vmatprep.subr.bf16.mxu0 0
        %5536 = vmatpush1.bf16.msra.mxu0 %v5512
        %5537 = vmatprep.subr.bf16.mxu0 0
        %5538 = vmatpush1.bf16.msra.mxu0 0
        %5539 = vmatprep.subr.bf16.mxu0 0
        %5540 = vmatpush1.bf16.msra.mxu0 0
        %5541 = vmatprep.subr.bf16.mxu0 0
        %5542 = vmatpush1.bf16.msra.mxu0 0
        %5543 = vmatprep.subr.bf16.mxu0 0
        %5544 = vmatpush1.bf16.msra.mxu0 0
        %5545 = vmatprep.subr.bf16.mxu0 0
        %5546 = vmatpush1.bf16.msra.mxu0 0
        %5547 = vmatprep.subr.bf16.mxu0 0
        %5548 = vmatpush1.bf16.msra.mxu0 0
        %5549 = vmatprep.subr.bf16.mxu0 0
        %5550 = vmatpush1.bf16.msra.mxu0 0
        %5551 = vmatprep.subr.bf16.mxu0 0
        %5552 = vmatpush1.bf16.msra.mxu0 0
        %5553 = vmatprep.mubr.bf16.mxu0 0
        %5554 = vmatmul.mubr.bf16.gmra.mrb[0].mxu0 %v5381
        %v5555 = vpop.f32.mrb[0].mxu0
        %v5556 = vadd.f32 0.0, %v5555
        %v5557 = vpop.f32.mrb[0].mxu0
        %v5558 = vpop.f32.mrb[0].mxu0
        %v5559 = vadd.f32 0.0, %v5558
        %v5560 = vpop.f32.mrb[0].mxu0
        %5561 = vmatprep.mubr.bf16.mxu0 0
        %5562 = vmatmul.mubr.bf16.gmra.mrb[0].mxu0 %v5390
        %v5563 = vpop.f32.mrb[0].mxu0
        %v5564 = vadd.f32 0.0, %v5563
        %v5565 = vpop.f32.mrb[0].mxu0
        %v5566 = vpop.f32.mrb[0].mxu0
        %v5567 = vadd.f32 0.0, %v5566
        %v5568 = vpop.f32.mrb[0].mxu0
        %5569 = vmatprep.mubr.bf16.mxu0 0
        %5570 = vmatmul.mubr.bf16.gmra.mrb[0].mxu0 %v5399
        %v5571 = vpop.f32.mrb[0].mxu0
        %v5572 = vadd.f32 0.0, %v5571
        %v5573 = vpop.f32.mrb[0].mxu0
        %v5574 = vpop.f32.mrb[0].mxu0
        %v5575 = vadd.f32 0.0, %v5574
        %v5576 = vpop.f32.mrb[0].mxu0
        %5577 = vmatprep.mubr.bf16.mxu0 0
        %5578 = vmatmul.mubr.bf16.gmra.mrb[0].mxu0 %v5408
        %v5579 = vpop.f32.mrb[0].mxu0
        %v5580 = vadd.f32 0.0, %v5579
        %v5581 = vpop.f32.mrb[0].mxu0
        %v5582 = vpop.f32.mrb[0].mxu0
        %v5583 = vadd.f32 0.0, %v5582
        %v5584 = vpop.f32.mrb[0].mxu0
        %5585 = vmatprep.mubr.bf16.mxu0 0
        %5586 = vmatmul.mubr.bf16.gmra.mrb[0].mxu0 %v5417
        %v5587 = vpop.f32.mrb[0].mxu0
        %v5588 = vadd.f32 0.0, %v5587
        %v5589 = vpop.f32.mrb[0].mxu0
        %v5590 = vpop.f32.mrb[0].mxu0
        %v5591 = vadd.f32 0.0, %v5590
        %v5592 = vpop.f32.mrb[0].mxu0
        %5593 = vmatprep.mubr.bf16.mxu0 0
        %5594 = vmatmul.mubr.bf16.gmra.mrb[0].mxu0 %v5426
        %v5595 = vpop.f32.mrb[0].mxu0
        %v5596 = vadd.f32 0.0, %v5595
        %v5597 = vpop.f32.mrb[0].mxu0
        %v5598 = vpop.f32.mrb[0].mxu0
        %v5599 = vadd.f32 0.0, %v5598
        %v5600 = vpop.f32.mrb[0].mxu0
        %5601 = vmatprep.mubr.bf16.mxu0 0
        %5602 = vmatmul.mubr.bf16.gmra.mrb[0].mxu0 %v5435
        %v5603 = vpop.f32.mrb[0].mxu0
        %v5604 = vadd.f32 0.0, %v5603
        %v5605 = vpop.f32.mrb[0].mxu0
        %v5606 = vpop.f32.mrb[0].mxu0
        %v5607 = vadd.f32 0.0, %v5606
        %v5608 = vpop.f32.mrb[0].mxu0
        %5609 = vmatprep.mubr.bf16.mxu0 0
        %5610 = vmatmul.mubr.bf16.gmra.mrb[0].mxu0 %v5444
        %v5611 = vpop.f32.mrb[0].mxu0
        %v5612 = vadd.f32 0.0, %v5611
        %v5613 = vpop.f32.mrb[0].mxu0
        %v5614 = vpop.f32.mrb[0].mxu0
        %v5615 = vadd.f32 0.0, %v5614
        %v5616 = vpop.f32.mrb[0].mxu0
        %5617 = vmatprep.mubr.bf16.mxu0 0
        %5618 = vmatmul.mubr.bf16.gmra.mrb[0].mxu0 %v5453
        %v5619 = vpop.f32.mrb[0].mxu0
        %v5620 = vadd.f32 0.0, %v5619
        %v5621 = vpop.f32.mrb[0].mxu0
        %v5622 = vpop.f32.mrb[0].mxu0
        %v5623 = vadd.f32 0.0, %v5622
        %v5624 = vpop.f32.mrb[0].mxu0
        %5625 = vmatprep.mubr.bf16.mxu0 0
        %5626 = vmatmul.mubr.bf16.gmra.mrb[0].mxu0 %v5462
        %v5627 = vpop.f32.mrb[0].mxu0
        %v5628 = vadd.f32 0.0, %v5627
        %v5629 = vpop.f32.mrb[0].mxu0
        %v5630 = vpop.f32.mrb[0].mxu0
        %v5631 = vadd.f32 0.0, %v5630
        %v5632 = vpop.f32.mrb[0].mxu0
        %5633 = vdwg.mxu0
        %v5634 = vadd.f32 %v5254, %v5556
        %v5635 = vadd.f32 %v5255, %v5559
        %v5636 = vadd.f32 %v5256, %v5564
        %v5637 = vadd.f32 %v5257, %v5567
        %v5638 = vadd.f32 %v5258, %v5572
        %v5639 = vadd.f32 %v5259, %v5575
        %v5640 = vadd.f32 %v5260, %v5580
        %v5641 = vadd.f32 %v5261, %v5583
        %v5642 = vadd.f32 %v5262, %v5588
        %v5643 = vadd.f32 %v5263, %v5591
        %v5644 = vadd.f32 %v5264, %v5596
        %v5645 = vadd.f32 %v5265, %v5599
        %v5646 = vadd.f32 %v5266, %v5604
        %v5647 = vadd.f32 %v5267, %v5607
        %v5648 = vadd.f32 %v5268, %v5612
        %v5649 = vadd.f32 %v5269, %v5615
        %v5650 = vadd.f32 %v5270, %v5620
        %v5651 = vadd.f32 %v5271, %v5623
        %v5652 = vadd.f32 %v5272, %v5628
        %v5653 = vadd.f32 %v5273, %v5631
        %s5654 = scalar_lea.vmem [#allocation8], 448
        %v5655 = vld [vmem:[%s5654] sm:$0xf]
        %v5656 = vld [vmem:[%s5654 + $0x4] sm:$0xf]
        %v5657 = vld [vmem:[%s5654 + $0x8] sm:$0xf]
        %v5658 = vld [vmem:[%s5654 + $0xc] sm:$0xf]
        %v5659 = vld [vmem:[%s5654 + $0x10] sm:$0xf]
        %v5660 = vld [vmem:[%s5654 + $0x14] sm:$0xf]
        %v5661 = vld [vmem:[%s5654 + $0x18] sm:$0xf]
        %v5662 = vld [vmem:[%s5654 + $0x1c] sm:$0xf]
        %v5663 = vld [vmem:[%s5654 + $0x20] sm:$0xf]
        %v5664 = vld [vmem:[%s5654 + $0x24] sm:$0xf]
        %v5665 = vld [vmem:[%s5654 + $0x28] sm:$0xf]
        %v5666 = vld [vmem:[%s5654 + $0x2c] sm:$0xf]
        %v5667 = vld [vmem:[%s5654 + $0x30] sm:$0xf]
        %v5668 = vld [vmem:[%s5654 + $0x34] sm:$0xf]
        %v5669 = vld [vmem:[%s5654 + $0x38] sm:$0xf]
        %v5670 = vld [vmem:[%s5654 + $0x3c] sm:$0xf]
        %v5671 = vpack.c.b16 %v5335, %v5334
        %v5672 = vpack.c.b16 %v5337, %v5336
        %v5673 = vpack.c.b16 %v5339, %v5338
        %v5674 = vpack.c.b16 %v5341, %v5340
        %v5675 = vpack.c.b16 %v5343, %v5342
        %v5676 = vpack.c.b16 %v5345, %v5344
        %v5677 = vpack.c.b16 %v5347, %v5346
        %v5678 = vpack.c.b16 %v5349, %v5348
        %v5679 = vpack.c.b16 %v5351, %v5350
        %v5680 = vpack.c.b16 %v5353, %v5352
        %v5707 = vunpack.c.l.b16 %v5655
        %v5708 = vunpack.c.l.b16 %v5656
        %v5709 = vunpack.c.l.b16 %v5657
        %v5710 = vunpack.c.l.b16 %v5658
        %v5711 = vunpack.c.l.b16 %v5659
        %v5712 = vunpack.c.l.b16 %v5660
        %v5713 = vunpack.c.l.b16 %v5661
        %v5714 = vunpack.c.l.b16 %v5662
        %v5715 = vunpack.c.l.b16 %v5663
        %v5716 = vunpack.c.l.b16 %v5664
        %v5717 = vunpack.c.l.b16 %v5665
        %v5718 = vunpack.c.l.b16 %v5666
        %v5719 = vunpack.c.l.b16 %v5667
        %v5720 = vunpack.c.l.b16 %v5668
        %v5721 = vunpack.c.l.b16 %v5669
        %v5722 = vunpack.c.l.b16 %v5670
        %v5723 = vpack.c.b16 %v5708, %v5707
        %v5724 = vpack.c.b16 %v5710, %v5709
        %v5725 = vpack.c.b16 %v5712, %v5711
        %v5726 = vpack.c.b16 %v5714, %v5713
        %v5727 = vpack.c.b16 %v5716, %v5715
        %v5728 = vpack.c.b16 %v5718, %v5717
        %v5729 = vpack.c.b16 %v5720, %v5719
        %v5730 = vpack.c.b16 %v5722, %v5721
        %5739 = vmatprep.subr.bf16.mxu0 0
        %5740 = vmatpush1.bf16.msra.mxu0 %v5723
        %5741 = vmatprep.subr.bf16.mxu0 0
        %5742 = vmatpush1.bf16.msra.mxu0 %v5724
        %5743 = vmatprep.subr.bf16.mxu0 0
        %5744 = vmatpush1.bf16.msra.mxu0 %v5725
        %5745 = vmatprep.subr.bf16.mxu0 0
        %5746 = vmatpush1.bf16.msra.mxu0 %v5726
        %5747 = vmatprep.subr.bf16.mxu0 0
        %5748 = vmatpush1.bf16.msra.mxu0 %v5727
        %5749 = vmatprep.subr.bf16.mxu0 0
        %5750 = vmatpush1.bf16.msra.mxu0 %v5728
        %5751 = vmatprep.subr.bf16.mxu0 0
        %5752 = vmatpush1.bf16.msra.mxu0 %v5729
        %5753 = vmatprep.subr.bf16.mxu0 0
        %5754 = vmatpush1.bf16.msra.mxu0 %v5730
        %5755 = vmatprep.subr.bf16.mxu0 0
        %5756 = vmatpush1.bf16.msra.mxu0 0
        %5757 = vmatprep.subr.bf16.mxu0 0
        %5758 = vmatpush1.bf16.msra.mxu0 0
        %5759 = vmatprep.subr.bf16.mxu0 0
        %5760 = vmatpush1.bf16.msra.mxu0 0
        %5761 = vmatprep.subr.bf16.mxu0 0
        %5762 = vmatpush1.bf16.msra.mxu0 0
        %5763 = vmatprep.subr.bf16.mxu0 0
        %5764 = vmatpush1.bf16.msra.mxu0 0
        %5765 = vmatprep.subr.bf16.mxu0 0
        %5766 = vmatpush1.bf16.msra.mxu0 0
        %5767 = vmatprep.subr.bf16.mxu0 0
        %5768 = vmatpush1.bf16.msra.mxu0 0
        %5769 = vmatprep.subr.bf16.mxu0 0
        %5770 = vmatpush1.bf16.msra.mxu0 0
        %5771 = vmatprep.mubr.bf16.mxu0 0
        %5772 = vmatmul.mubr.bf16.gmra.mrb[0].mxu0 %v5671
        %v5773 = vpop.f32.mrb[0].mxu0
        %v5774 = vadd.f32 0.0, %v5773
        %v5775 = vpop.f32.mrb[0].mxu0
        %v5776 = vpop.f32.mrb[0].mxu0
        %v5777 = vadd.f32 0.0, %v5776
        %v5778 = vpop.f32.mrb[0].mxu0
        %5779 = vmatprep.mubr.bf16.mxu0 0
        %5780 = vmatmul.mubr.bf16.gmra.mrb[0].mxu0 %v5672
        %v5781 = vpop.f32.mrb[0].mxu0
        %v5782 = vadd.f32 0.0, %v5781
        %v5783 = vpop.f32.mrb[0].mxu0
        %v5784 = vpop.f32.mrb[0].mxu0
        %v5785 = vadd.f32 0.0, %v5784
        %v5786 = vpop.f32.mrb[0].mxu0
        %5787 = vmatprep.mubr.bf16.mxu0 0
        %5788 = vmatmul.mubr.bf16.gmra.mrb[0].mxu0 %v5673
        %v5789 = vpop.f32.mrb[0].mxu0
        %v5790 = vadd.f32 0.0, %v5789
        %v5791 = vpop.f32.mrb[0].mxu0
        %v5792 = vpop.f32.mrb[0].mxu0
        %v5793 = vadd.f32 0.0, %v5792
        %v5794 = vpop.f32.mrb[0].mxu0
        %5795 = vmatprep.mubr.bf16.mxu0 0
        %5796 = vmatmul.mubr.bf16.gmra.mrb[0].mxu0 %v5674
        %v5797 = vpop.f32.mrb[0].mxu0
        %v5798 = vadd.f32 0.0, %v5797
        %v5799 = vpop.f32.mrb[0].mxu0
        %v5800 = vpop.f32.mrb[0].mxu0
        %v5801 = vadd.f32 0.0, %v5800
        %v5802 = vpop.f32.mrb[0].mxu0
        %5803 = vmatprep.mubr.bf16.mxu0 0
        %5804 = vmatmul.mubr.bf16.gmra.mrb[0].mxu0 %v5675
        %v5805 = vpop.f32.mrb[0].mxu0
        %v5806 = vadd.f32 0.0, %v5805
        %v5807 = vpop.f32.mrb[0].mxu0
        %v5808 = vpop.f32.mrb[0].mxu0
        %v5809 = vadd.f32 0.0, %v5808
        %v5810 = vpop.f32.mrb[0].mxu0
        %5811 = vmatprep.mubr.bf16.mxu0 0
        %5812 = vmatmul.mubr.bf16.gmra.mrb[0].mxu0 %v5676
        %v5813 = vpop.f32.mrb[0].mxu0
        %v5814 = vadd.f32 0.0, %v5813
        %v5815 = vpop.f32.mrb[0].mxu0
        %v5816 = vpop.f32.mrb[0].mxu0
        %v5817 = vadd.f32 0.0, %v5816
        %v5818 = vpop.f32.mrb[0].mxu0
        %5819 = vmatprep.mubr.bf16.mxu0 0
        %5820 = vmatmul.mubr.bf16.gmra.mrb[0].mxu0 %v5677
        %v5821 = vpop.f32.mrb[0].mxu0
        %v5822 = vadd.f32 0.0, %v5821
        %v5823 = vpop.f32.mrb[0].mxu0
        %v5824 = vpop.f32.mrb[0].mxu0
        %v5825 = vadd.f32 0.0, %v5824
        %v5826 = vpop.f32.mrb[0].mxu0
        %5827 = vmatprep.mubr.bf16.mxu0 0
        %5828 = vmatmul.mubr.bf16.gmra.mrb[0].mxu0 %v5678
        %v5829 = vpop.f32.mrb[0].mxu0
        %v5830 = vadd.f32 0.0, %v5829
        %v5831 = vpop.f32.mrb[0].mxu0
        %v5832 = vpop.f32.mrb[0].mxu0
        %v5833 = vadd.f32 0.0, %v5832
        %v5834 = vpop.f32.mrb[0].mxu0
        %5835 = vmatprep.mubr.bf16.mxu0 0
        %5836 = vmatmul.mubr.bf16.gmra.mrb[0].mxu0 %v5679
        %v5837 = vpop.f32.mrb[0].mxu0
        %v5838 = vadd.f32 0.0, %v5837
        %v5839 = vpop.f32.mrb[0].mxu0
        %v5840 = vpop.f32.mrb[0].mxu0
        %v5841 = vadd.f32 0.0, %v5840
        %v5842 = vpop.f32.mrb[0].mxu0
        %5843 = vmatprep.mubr.bf16.mxu0 0
        %5844 = vmatmul.mubr.bf16.gmra.mrb[0].mxu0 %v5680
        %v5845 = vpop.f32.mrb[0].mxu0
        %v5846 = vadd.f32 0.0, %v5845
        %v5847 = vpop.f32.mrb[0].mxu0
        %v5848 = vpop.f32.mrb[0].mxu0
        %v5849 = vadd.f32 0.0, %v5848
        %v5850 = vpop.f32.mrb[0].mxu0
        %5851 = vdwg.mxu0
        %v5852 = vadd.f32 %v5634, %v5774
        %v5853 = vadd.f32 %v5635, %v5777
        %v5854 = vadd.f32 %v5636, %v5782
        %v5855 = vadd.f32 %v5637, %v5785
        %v5856 = vadd.f32 %v5638, %v5790
        %v5857 = vadd.f32 %v5639, %v5793
        %v5858 = vadd.f32 %v5640, %v5798
        %v5859 = vadd.f32 %v5641, %v5801
        %v5860 = vadd.f32 %v5642, %v5806
        %v5861 = vadd.f32 %v5643, %v5809
        %v5862 = vadd.f32 %v5644, %v5814
        %v5863 = vadd.f32 %v5645, %v5817
        %v5864 = vadd.f32 %v5646, %v5822
        %v5865 = vadd.f32 %v5647, %v5825
        %v5866 = vadd.f32 %v5648, %v5830
        %v5867 = vadd.f32 %v5649, %v5833
        %v5868 = vadd.f32 %v5650, %v5838
        %v5869 = vadd.f32 %v5651, %v5841
        %v5870 = vadd.f32 %v5652, %v5846
        %v5871 = vadd.f32 %v5653, %v5849
        %v5872 = vld [vmem:[#allocation3 + $0x18] sm:$0xf]
        %v5873 = vld [vmem:[#allocation3 + $0x1c] sm:$0xf]
        %v5874 = vld [vmem:[#allocation3 + $0x20] sm:$0xf]
        %v5875 = vld [vmem:[#allocation3 + $0x24] sm:$0xf]
        %v5876 = vld [vmem:[#allocation3 + $0x28] sm:$0xf]
        %v5877 = vld [vmem:[#allocation3 + $0x2c] sm:$0xf]
        %v5878 = vld [vmem:[#allocation3 + $0x30] sm:$0xf]
        %v5879 = vld [vmem:[#allocation3 + $0x34] sm:$0xf]
        %v5880 = vld [vmem:[#allocation3 + $0x38] sm:$0xf]
        %v5881 = vld [vmem:[#allocation3 + $0x3c] sm:$0xf]
        %v5882 = vld [vmem:[#allocation3 + $0x40] sm:$0xf]
        %v5883 = vld [vmem:[#allocation3 + $0x44] sm:$0xf]
        %v5884 = vld [vmem:[#allocation3 + $0x48] sm:$0xf]
        %v5885 = vld [vmem:[#allocation3 + $0x4c] sm:$0xf]
        %v5886 = vld [vmem:[#allocation3 + $0x50] sm:$0xf]
        %v5887 = vld [vmem:[#allocation3 + $0x54] sm:$0xf]
        %v5888 = vld [vmem:[#allocation3 + $0x58] sm:$0xf]
        %v5889 = vld [vmem:[#allocation3 + $0x5c] sm:$0xf]
        %v5890 = vld [vmem:[#allocation3 + $0x60] sm:$0xf]
        %v5891 = vld [vmem:[#allocation3 + $0x64] sm:$0xf]
        %v5892 = vld [vmem:[#allocation3 + $0x68] sm:$0x1]
        %s5893 = scalar_lea.vmem [#allocation8], 512
        %v5894 = vld [vmem:[%s5893] sm:$0xf]
        %v5895 = vld [vmem:[%s5893 + $0x4] sm:$0xf]
        %v5896 = vld [vmem:[%s5893 + $0x8] sm:$0xf]
        %v5897 = vld [vmem:[%s5893 + $0xc] sm:$0xf]
        %v5898 = vld [vmem:[%s5893 + $0x10] sm:$0xf]
        %v5899 = vld [vmem:[%s5893 + $0x14] sm:$0xf]
        %v5900 = vld [vmem:[%s5893 + $0x18] sm:$0xf]
        %v5901 = vld [vmem:[%s5893 + $0x1c] sm:$0xf]
        %v5902 = vld [vmem:[%s5893 + $0x20] sm:$0xf]
        %v5903 = vld [vmem:[%s5893 + $0x24] sm:$0xf]
        %v5904 = vld [vmem:[%s5893 + $0x28] sm:$0xf]
        %v5905 = vld [vmem:[%s5893 + $0x2c] sm:$0xf]
        %v5906 = vld [vmem:[%s5893 + $0x30] sm:$0xf]
        %v5907 = vld [vmem:[%s5893 + $0x34] sm:$0xf]
        %v5908 = vld [vmem:[%s5893 + $0x38] sm:$0xf]
        %v5909 = vld [vmem:[%s5893 + $0x3c] sm:$0xf]
        %v5931 = vunpack.c.l.b16 %v5872
        %v5932 = vunpack.c.l.b16 %v5873
        %v5933 = vunpack.c.l.b16 %v5874
        %v5934 = vunpack.c.l.b16 %v5875
        %v5935 = vunpack.c.l.b16 %v5876
        %v5936 = vunpack.c.l.b16 %v5877
        %v5937 = vunpack.c.l.b16 %v5878
        %v5938 = vunpack.c.l.b16 %v5879
        %v5939 = vunpack.c.l.b16 %v5880
        %v5940 = vunpack.c.l.b16 %v5881
        %v5941 = vunpack.c.l.b16 %v5882
        %v5942 = vunpack.c.l.b16 %v5883
        %v5943 = vunpack.c.l.b16 %v5884
        %v5944 = vunpack.c.l.b16 %v5885
        %v5945 = vunpack.c.l.b16 %v5886
        %v5946 = vunpack.c.l.b16 %v5887
        %v5947 = vunpack.c.l.b16 %v5888
        %v5948 = vunpack.c.l.b16 %v5889
        %v5949 = vunpack.c.l.b16 %v5890
        %v5950 = vunpack.c.l.b16 %v5891
        %v5951 = vunpack.c.l.b16 %v5892
        %v5952 = vpack.c.b16 %v5932, %v5931
        %v5953 = vpack.c.b16 %v5934, %v5933
        %v5954 = vpack.c.b16 %v5936, %v5935
        %v5955 = vpack.c.b16 %v5938, %v5937
        %v5956 = vpack.c.b16 %v5940, %v5939
        %v5957 = vpack.c.b16 %v5942, %v5941
        %v5958 = vpack.c.b16 %v5944, %v5943
        %v5959 = vpack.c.b16 %v5946, %v5945
        %v5960 = vpack.c.b16 %v5948, %v5947
        %v5961 = vpack.c.b16 %v5950, %v5949
        %v5962 = vpack.c.b16 %v5951, %v5951
        %v5964 = vshrl.u32 %v5952, 16
        %v5966 = vshll.u32 %v5952, 16
        %v5968 = vrot.slane %v5966, 1
        %v5969 = vor.u32 %v5964, %v5968
        %v5971 = vshll.u32 %v5953, 16
        %v5973 = vrot.slane %v5971, 1
        %v5974 = vsel %vm1910, %v5969, %v5973
        %v5975 = vshrl.u32 %v5953, 16
        %v5977 = vor.u32 %v5975, %v5973
        %v5979 = vshll.u32 %v5954, 16
        %v5981 = vrot.slane %v5979, 1
        %v5982 = vsel %vm1910, %v5977, %v5981
        %v5983 = vshrl.u32 %v5954, 16
        %v5985 = vor.u32 %v5983, %v5981
        %v5987 = vshll.u32 %v5955, 16
        %v5989 = vrot.slane %v5987, 1
        %v5990 = vsel %vm1910, %v5985, %v5989
        %v5991 = vshrl.u32 %v5955, 16
        %v5993 = vor.u32 %v5991, %v5989
        %v5995 = vshll.u32 %v5956, 16
        %v5997 = vrot.slane %v5995, 1
        %v5998 = vsel %vm1910, %v5993, %v5997
        %v5999 = vshrl.u32 %v5956, 16
        %v6001 = vor.u32 %v5999, %v5997
        %v6003 = vshll.u32 %v5957, 16
        %v6005 = vrot.slane %v6003, 1
        %v6006 = vsel %vm1910, %v6001, %v6005
        %v6007 = vshrl.u32 %v5957, 16
        %v6009 = vor.u32 %v6007, %v6005
        %v6011 = vshll.u32 %v5958, 16
        %v6013 = vrot.slane %v6011, 1
        %v6014 = vsel %vm1910, %v6009, %v6013
        %v6015 = vshrl.u32 %v5958, 16
        %v6017 = vor.u32 %v6015, %v6013
        %v6019 = vshll.u32 %v5959, 16
        %v6021 = vrot.slane %v6019, 1
        %v6022 = vsel %vm1910, %v6017, %v6021
        %v6023 = vshrl.u32 %v5959, 16
        %v6025 = vor.u32 %v6023, %v6021
        %v6027 = vshll.u32 %v5960, 16
        %v6029 = vrot.slane %v6027, 1
        %v6030 = vsel %vm1910, %v6025, %v6029
        %v6031 = vshrl.u32 %v5960, 16
        %v6033 = vor.u32 %v6031, %v6029
        %v6035 = vshll.u32 %v5961, 16
        %v6037 = vrot.slane %v6035, 1
        %v6038 = vsel %vm1910, %v6033, %v6037
        %v6039 = vshrl.u32 %v5961, 16
        %v6041 = vor.u32 %v6039, %v6037
        %v6043 = vshll.u32 %v5962, 16
        %v6045 = vrot.slane %v6043, 1
        %v6046 = vsel %vm1910, %v6041, %v6045
        %v6073 = vunpack.c.l.b16 %v5894
        %v6074 = vunpack.c.l.b16 %v5895
        %v6075 = vunpack.c.l.b16 %v5896
        %v6076 = vunpack.c.l.b16 %v5897
        %v6077 = vunpack.c.l.b16 %v5898
        %v6078 = vunpack.c.l.b16 %v5899
        %v6079 = vunpack.c.l.b16 %v5900
        %v6080 = vunpack.c.l.b16 %v5901
        %v6081 = vunpack.c.l.b16 %v5902
        %v6082 = vunpack.c.l.b16 %v5903
        %v6083 = vunpack.c.l.b16 %v5904
        %v6084 = vunpack.c.l.b16 %v5905
        %v6085 = vunpack.c.l.b16 %v5906
        %v6086 = vunpack.c.l.b16 %v5907
        %v6087 = vunpack.c.l.b16 %v5908
        %v6088 = vunpack.c.l.b16 %v5909
        %v6089 = vpack.c.b16 %v6074, %v6073
        %v6090 = vpack.c.b16 %v6076, %v6075
        %v6091 = vpack.c.b16 %v6078, %v6077
        %v6092 = vpack.c.b16 %v6080, %v6079
        %v6093 = vpack.c.b16 %v6082, %v6081
        %v6094 = vpack.c.b16 %v6084, %v6083
        %v6095 = vpack.c.b16 %v6086, %v6085
        %v6096 = vpack.c.b16 %v6088, %v6087
        %6105 = vmatprep.subr.bf16.mxu0 0
        %6106 = vmatpush1.bf16.msra.mxu0 %v6089
        %6107 = vmatprep.subr.bf16.mxu0 0
        %6108 = vmatpush1.bf16.msra.mxu0 %v6090
        %6109 = vmatprep.subr.bf16.mxu0 0
        %6110 = vmatpush1.bf16.msra.mxu0 %v6091
        %6111 = vmatprep.subr.bf16.mxu0 0
        %6112 = vmatpush1.bf16.msra.mxu0 %v6092
        %6113 = vmatprep.subr.bf16.mxu0 0
        %6114 = vmatpush1.bf16.msra.mxu0 %v6093
        %6115 = vmatprep.subr.bf16.mxu0 0
        %6116 = vmatpush1.bf16.msra.mxu0 %v6094
        %6117 = vmatprep.subr.bf16.mxu0 0
        %6118 = vmatpush1.bf16.msra.mxu0 %v6095
        %6119 = vmatprep.subr.bf16.mxu0 0
        %6120 = vmatpush1.bf16.msra.mxu0 %v6096
        %6121 = vmatprep.subr.bf16.mxu0 0
        %6122 = vmatpush1.bf16.msra.mxu0 0
        %6123 = vmatprep.subr.bf16.mxu0 0
        %6124 = vmatpush1.bf16.msra.mxu0 0
        %6125 = vmatprep.subr.bf16.mxu0 0
        %6126 = vmatpush1.bf16.msra.mxu0 0
        %6127 = vmatprep.subr.bf16.mxu0 0
        %6128 = vmatpush1.bf16.msra.mxu0 0
        %6129 = vmatprep.subr.bf16.mxu0 0
        %6130 = vmatpush1.bf16.msra.mxu0 0
        %6131 = vmatprep.subr.bf16.mxu0 0
        %6132 = vmatpush1.bf16.msra.mxu0 0
        %6133 = vmatprep.subr.bf16.mxu0 0
        %6134 = vmatpush1.bf16.msra.mxu0 0
        %6135 = vmatprep.subr.bf16.mxu0 0
        %6136 = vmatpush1.bf16.msra.mxu0 0
        %6137 = vmatprep.mubr.bf16.mxu0 0
        %6138 = vmatmul.mubr.bf16.gmra.mrb[0].mxu0 %v5974
        %v6139 = vpop.f32.mrb[0].mxu0
        %v6140 = vadd.f32 0.0, %v6139
        %v6141 = vpop.f32.mrb[0].mxu0
        %v6142 = vpop.f32.mrb[0].mxu0
        %v6143 = vadd.f32 0.0, %v6142
        %v6144 = vpop.f32.mrb[0].mxu0
        %6145 = vmatprep.mubr.bf16.mxu0 0
        %6146 = vmatmul.mubr.bf16.gmra.mrb[0].mxu0 %v5982
        %v6147 = vpop.f32.mrb[0].mxu0
        %v6148 = vadd.f32 0.0, %v6147
        %v6149 = vpop.f32.mrb[0].mxu0
        %v6150 = vpop.f32.mrb[0].mxu0
        %v6151 = vadd.f32 0.0, %v6150
        %v6152 = vpop.f32.mrb[0].mxu0
        %6153 = vmatprep.mubr.bf16.mxu0 0
        %6154 = vmatmul.mubr.bf16.gmra.mrb[0].mxu0 %v5990
        %v6155 = vpop.f32.mrb[0].mxu0
        %v6156 = vadd.f32 0.0, %v6155
        %v6157 = vpop.f32.mrb[0].mxu0
        %v6158 = vpop.f32.mrb[0].mxu0
        %v6159 = vadd.f32 0.0, %v6158
        %v6160 = vpop.f32.mrb[0].mxu0
        %6161 = vmatprep.mubr.bf16.mxu0 0
        %6162 = vmatmul.mubr.bf16.gmra.mrb[0].mxu0 %v5998
        %v6163 = vpop.f32.mrb[0].mxu0
        %v6164 = vadd.f32 0.0, %v6163
        %v6165 = vpop.f32.mrb[0].mxu0
        %v6166 = vpop.f32.mrb[0].mxu0
        %v6167 = vadd.f32 0.0, %v6166
        %v6168 = vpop.f32.mrb[0].mxu0
        %6169 = vmatprep.mubr.bf16.mxu0 0
        %6170 = vmatmul.mubr.bf16.gmra.mrb[0].mxu0 %v6006
        %v6171 = vpop.f32.mrb[0].mxu0
        %v6172 = vadd.f32 0.0, %v6171
        %v6173 = vpop.f32.mrb[0].mxu0
        %v6174 = vpop.f32.mrb[0].mxu0
        %v6175 = vadd.f32 0.0, %v6174
        %v6176 = vpop.f32.mrb[0].mxu0
        %6177 = vmatprep.mubr.bf16.mxu0 0
        %6178 = vmatmul.mubr.bf16.gmra.mrb[0].mxu0 %v6014
        %v6179 = vpop.f32.mrb[0].mxu0
        %v6180 = vadd.f32 0.0, %v6179
        %v6181 = vpop.f32.mrb[0].mxu0
        %v6182 = vpop.f32.mrb[0].mxu0
        %v6183 = vadd.f32 0.0, %v6182
        %v6184 = vpop.f32.mrb[0].mxu0
        %6185 = vmatprep.mubr.bf16.mxu0 0
        %6186 = vmatmul.mubr.bf16.gmra.mrb[0].mxu0 %v6022
        %v6187 = vpop.f32.mrb[0].mxu0
        %v6188 = vadd.f32 0.0, %v6187
        %v6189 = vpop.f32.mrb[0].mxu0
        %v6190 = vpop.f32.mrb[0].mxu0
        %v6191 = vadd.f32 0.0, %v6190
        %v6192 = vpop.f32.mrb[0].mxu0
        %6193 = vmatprep.mubr.bf16.mxu0 0
        %6194 = vmatmul.mubr.bf16.gmra.mrb[0].mxu0 %v6030
        %v6195 = vpop.f32.mrb[0].mxu0
        %v6196 = vadd.f32 0.0, %v6195
        %v6197 = vpop.f32.mrb[0].mxu0
        %v6198 = vpop.f32.mrb[0].mxu0
        %v6199 = vadd.f32 0.0, %v6198
        %v6200 = vpop.f32.mrb[0].mxu0
        %6201 = vmatprep.mubr.bf16.mxu0 0
        %6202 = vmatmul.mubr.bf16.gmra.mrb[0].mxu0 %v6038
        %v6203 = vpop.f32.mrb[0].mxu0
        %v6204 = vadd.f32 0.0, %v6203
        %v6205 = vpop.f32.mrb[0].mxu0
        %v6206 = vpop.f32.mrb[0].mxu0
        %v6207 = vadd.f32 0.0, %v6206
        %v6208 = vpop.f32.mrb[0].mxu0
        %6209 = vmatprep.mubr.bf16.mxu0 0
        %6210 = vmatmul.mubr.bf16.gmra.mrb[0].mxu0 %v6046
        %v6211 = vpop.f32.mrb[0].mxu0
        %v6212 = vadd.f32 0.0, %v6211
        %v6213 = vpop.f32.mrb[0].mxu0
        %v6214 = vpop.f32.mrb[0].mxu0
        %v6215 = vadd.f32 0.0, %v6214
        %v6216 = vpop.f32.mrb[0].mxu0
        %6217 = vdwg.mxu0
        %v6218 = vadd.f32 %v5852, %v6140
        %v6219 = vadd.f32 %v5853, %v6143
        %v6220 = vadd.f32 %v5854, %v6148
        %v6221 = vadd.f32 %v5855, %v6151
        %v6222 = vadd.f32 %v5856, %v6156
        %v6223 = vadd.f32 %v5857, %v6159
        %v6224 = vadd.f32 %v5858, %v6164
        %v6225 = vadd.f32 %v5859, %v6167
        %v6226 = vadd.f32 %v5860, %v6172
        %v6227 = vadd.f32 %v5861, %v6175
        %v6228 = vadd.f32 %v5862, %v6180
        %v6229 = vadd.f32 %v5863, %v6183
        %v6230 = vadd.f32 %v5864, %v6188
        %v6231 = vadd.f32 %v5865, %v6191
        %v6232 = vadd.f32 %v5866, %v6196
        %v6233 = vadd.f32 %v5867, %v6199
        %v6234 = vadd.f32 %v5868, %v6204
        %v6235 = vadd.f32 %v5869, %v6207
        %v6236 = vadd.f32 %v5870, %v6212
        %v6237 = vadd.f32 %v5871, %v6215
        %v6238 = vld [vmem:[%s4] sm:$0x1]
        %v6240 = vlaneseq
        %v6241 = vshrl.u32 %v6240, 7
        %v6242 = vsub.s32 0, %v6241
        %v6243 = vrot.slane %v6238, %v6242
        %v6245 = vadd.f32 %v6218, %v6243
        %v6246 = vadd.f32 %v6219, %v6243
        %v6247 = vadd.f32 %v6220, %v6243
        %v6248 = vadd.f32 %v6221, %v6243
        %v6249 = vadd.f32 %v6222, %v6243
        %v6250 = vadd.f32 %v6223, %v6243
        %v6251 = vadd.f32 %v6224, %v6243
        %v6252 = vadd.f32 %v6225, %v6243
        %v6253 = vadd.f32 %v6226, %v6243
        %v6254 = vadd.f32 %v6227, %v6243
        %v6255 = vadd.f32 %v6228, %v6243
        %v6256 = vadd.f32 %v6229, %v6243
        %v6257 = vadd.f32 %v6230, %v6243
        %v6258 = vadd.f32 %v6231, %v6243
        %v6259 = vadd.f32 %v6232, %v6243
        %v6260 = vadd.f32 %v6233, %v6243
        %v6261 = vadd.f32 %v6234, %v6243
        %v6262 = vadd.f32 %v6235, %v6243
        %v6263 = vadd.f32 %v6236, %v6243
        %v6264 = vadd.f32 %v6237, %v6243
        %v6265 = vld [vmem:[%s5] sm:$0xf]
        %v6266 = vld [vmem:[%s5 + $0x4] sm:$0xf]
        %v6267 = vld [vmem:[%s5 + $0x8] sm:$0xf]
        %v6268 = vld [vmem:[%s5 + $0xc] sm:$0xf]
        %v6269 = vld [vmem:[%s5 + $0x10] sm:$0xf]
        %v6270 = vld [vmem:[%s5 + $0x14] sm:$0xf]
        %v6271 = vld [vmem:[%s5 + $0x18] sm:$0xf]
        %v6272 = vld [vmem:[%s5 + $0x1c] sm:$0xf]
        %v6273 = vld [vmem:[%s5 + $0x20] sm:$0xf]
        %v6274 = vld [vmem:[%s5 + $0x24] sm:$0xf]
        %v6275 = vld [vmem:[%s5 + $0x28] sm:$0xf]
        %v6276 = vld [vmem:[%s5 + $0x2c] sm:$0xf]
        %v6277 = vld [vmem:[%s5 + $0x30] sm:$0xf]
        %v6278 = vld [vmem:[%s5 + $0x34] sm:$0xf]
        %v6279 = vld [vmem:[%s5 + $0x38] sm:$0xf]
        %v6280 = vld [vmem:[%s5 + $0x3c] sm:$0xf]
        %v6281 = vld [vmem:[%s6] sm:$0x1]
        %v6283 = vlaneseq
        %v6284 = vshrl.u32 %v6283, 7
        %v6285 = vsub.s32 0, %v6284
        %v6286 = vrot.slane %v6281, %v6285
        %v6288 = vpack.c.b16 %v495, %v495
        %v6289 = vrot.slane %v6288, 2
        %v6290 = vsel %vm509, %v2570, %v6289
        %v6308 = vunpack.c.l.b16 %v6265
        %v6309 = vunpack.c.l.b16 %v6266
        %v6310 = vunpack.c.l.b16 %v6267
        %v6311 = vunpack.c.l.b16 %v6268
        %v6312 = vunpack.c.l.b16 %v6269
        %v6313 = vunpack.c.l.b16 %v6270
        %v6314 = vunpack.c.l.b16 %v6271
        %v6315 = vunpack.c.l.b16 %v6272
        %v6316 = vunpack.c.l.b16 %v6273
        %v6317 = vunpack.c.l.b16 %v6274
        %v6318 = vunpack.c.l.b16 %v6275
        %v6319 = vunpack.c.l.b16 %v6276
        %v6320 = vunpack.c.l.b16 %v6277
        %v6321 = vunpack.c.l.b16 %v6278
        %v6322 = vunpack.c.l.b16 %v6279
        %v6323 = vunpack.c.l.b16 %v6280
        %v6324 = vpack.c.b16 %v6309, %v6308
        %v6325 = vpack.c.b16 %v6311, %v6310
        %v6326 = vpack.c.b16 %v6313, %v6312
        %v6327 = vpack.c.b16 %v6315, %v6314
        %v6328 = vpack.c.b16 %v6317, %v6316
        %v6329 = vpack.c.b16 %v6319, %v6318
        %v6330 = vpack.c.b16 %v6321, %v6320
        %v6331 = vpack.c.b16 %v6323, %v6322
        %6340 = vmatprep.subr.bf16.mxu0 0
        %6341 = vmatpush1.bf16.msra.mxu0 %v6324
        %6342 = vmatprep.subr.bf16.mxu0 0
        %6343 = vmatpush1.bf16.msra.mxu0 %v6325
        %6344 = vmatprep.subr.bf16.mxu0 0
        %6345 = vmatpush1.bf16.msra.mxu0 %v6326
        %6346 = vmatprep.subr.bf16.mxu0 0
        %6347 = vmatpush1.bf16.msra.mxu0 %v6327
        %6348 = vmatprep.subr.bf16.mxu0 0
        %6349 = vmatpush1.bf16.msra.mxu0 %v6328
        %6350 = vmatprep.subr.bf16.mxu0 0
        %6351 = vmatpush1.bf16.msra.mxu0 %v6329
        %6352 = vmatprep.subr.bf16.mxu0 0
        %6353 = vmatpush1.bf16.msra.mxu0 %v6330
        %6354 = vmatprep.subr.bf16.mxu0 0
        %6355 = vmatpush1.bf16.msra.mxu0 %v6331
        %6356 = vmatprep.subr.bf16.mxu0 0
        %6357 = vmatpush1.bf16.msra.mxu0 0
        %6358 = vmatprep.subr.bf16.mxu0 0
        %6359 = vmatpush1.bf16.msra.mxu0 0
        %6360 = vmatprep.subr.bf16.mxu0 0
        %6361 = vmatpush1.bf16.msra.mxu0 0
        %6362 = vmatprep.subr.bf16.mxu0 0
        %6363 = vmatpush1.bf16.msra.mxu0 0
        %6364 = vmatprep.subr.bf16.mxu0 0
        %6365 = vmatpush1.bf16.msra.mxu0 0
        %6366 = vmatprep.subr.bf16.mxu0 0
        %6367 = vmatpush1.bf16.msra.mxu0 0
        %6368 = vmatprep.subr.bf16.mxu0 0
        %6369 = vmatpush1.bf16.msra.mxu0 0
        %6370 = vmatprep.subr.bf16.mxu0 0
        %6371 = vmatpush1.bf16.msra.mxu0 0
        %6372 = vmatprep.mubr.bf16.mxu0 0
        %6373 = vmatmul.mubr.bf16.gmra.mrb[0].mxu0 %v2555
        %v6374 = vpop.f32.mrb[0].mxu0
        %v6375 = vadd.f32 %v6286, %v6374
        %v6376 = vpop.f32.mrb[0].mxu0
        %v6377 = vpop.f32.mrb[0].mxu0
        %v6378 = vadd.f32 %v6286, %v6377
        %v6379 = vpop.f32.mrb[0].mxu0
        %6380 = vmatprep.mubr.bf16.mxu0 0
        %6381 = vmatmul.mubr.bf16.gmra.mrb[0].mxu0 %v2557
        %v6382 = vpop.f32.mrb[0].mxu0
        %v6383 = vadd.f32 %v6286, %v6382
        %v6384 = vpop.f32.mrb[0].mxu0
        %v6385 = vpop.f32.mrb[0].mxu0
        %v6386 = vadd.f32 %v6286, %v6385
        %v6387 = vpop.f32.mrb[0].mxu0
        %6388 = vmatprep.mubr.bf16.mxu0 0
        %6389 = vmatmul.mubr.bf16.gmra.mrb[0].mxu0 %v2559
        %v6390 = vpop.f32.mrb[0].mxu0
        %v6391 = vadd.f32 %v6286, %v6390
        %v6392 = vpop.f32.mrb[0].mxu0
        %v6393 = vpop.f32.mrb[0].mxu0
        %v6394 = vadd.f32 %v6286, %v6393
        %v6395 = vpop.f32.mrb[0].mxu0
        %6396 = vmatprep.mubr.bf16.mxu0 0
        %6397 = vmatmul.mubr.bf16.gmra.mrb[0].mxu0 %v2561
        %v6398 = vpop.f32.mrb[0].mxu0
        %v6399 = vadd.f32 %v6286, %v6398
        %v6400 = vpop.f32.mrb[0].mxu0
        %v6401 = vpop.f32.mrb[0].mxu0
        %v6402 = vadd.f32 %v6286, %v6401
        %v6403 = vpop.f32.mrb[0].mxu0
        %6404 = vmatprep.mubr.bf16.mxu0 0
        %6405 = vmatmul.mubr.bf16.gmra.mrb[0].mxu0 %v2563
        %v6406 = vpop.f32.mrb[0].mxu0
        %v6407 = vadd.f32 %v6286, %v6406
        %v6408 = vpop.f32.mrb[0].mxu0
        %v6409 = vpop.f32.mrb[0].mxu0
        %v6410 = vadd.f32 %v6286, %v6409
        %v6411 = vpop.f32.mrb[0].mxu0
        %6412 = vmatprep.mubr.bf16.mxu0 0
        %6413 = vmatmul.mubr.bf16.gmra.mrb[0].mxu0 %v2565
        %v6414 = vpop.f32.mrb[0].mxu0
        %v6415 = vadd.f32 %v6286, %v6414
        %v6416 = vpop.f32.mrb[0].mxu0
        %v6417 = vpop.f32.mrb[0].mxu0
        %v6418 = vadd.f32 %v6286, %v6417
        %v6419 = vpop.f32.mrb[0].mxu0
        %6420 = vmatprep.mubr.bf16.mxu0 0
        %6421 = vmatmul.mubr.bf16.gmra.mrb[0].mxu0 %v2567
        %v6422 = vpop.f32.mrb[0].mxu0
        %v6423 = vadd.f32 %v6286, %v6422
        %v6424 = vpop.f32.mrb[0].mxu0
        %v6425 = vpop.f32.mrb[0].mxu0
        %v6426 = vadd.f32 %v6286, %v6425
        %v6427 = vpop.f32.mrb[0].mxu0
        %6428 = vmatprep.mubr.bf16.mxu0 0
        %6429 = vmatmul.mubr.bf16.gmra.mrb[0].mxu0 %v2569
        %v6430 = vpop.f32.mrb[0].mxu0
        %v6431 = vadd.f32 %v6286, %v6430
        %v6432 = vpop.f32.mrb[0].mxu0
        %v6433 = vpop.f32.mrb[0].mxu0
        %v6434 = vadd.f32 %v6286, %v6433
        %v6435 = vpop.f32.mrb[0].mxu0
        %6436 = vmatprep.mubr.bf16.mxu0 0
        %6437 = vmatmul.mubr.bf16.gmra.mrb[0].mxu0 %v2571
        %v6438 = vpop.f32.mrb[0].mxu0
        %v6439 = vadd.f32 %v6286, %v6438
        %v6440 = vpop.f32.mrb[0].mxu0
        %v6441 = vpop.f32.mrb[0].mxu0
        %v6442 = vadd.f32 %v6286, %v6441
        %v6443 = vpop.f32.mrb[0].mxu0
        %6444 = vmatprep.mubr.bf16.mxu0 0
        %6445 = vmatmul.mubr.bf16.gmra.mrb[0].mxu0 %v6290
        %v6446 = vpop.f32.mrb[0].mxu0
        %v6447 = vadd.f32 %v6286, %v6446
        %v6448 = vpop.f32.mrb[0].mxu0
        %v6449 = vpop.f32.mrb[0].mxu0
        %v6450 = vadd.f32 %v6286, %v6449
        %v6451 = vpop.f32.mrb[0].mxu0
        %6452 = vdwg.mxu0
        %v6453 = vadd.f32 %v6245, %v6375
        %v6454 = vadd.f32 %v6246, %v6378
        %v6455 = vadd.f32 %v6247, %v6383
        %v6456 = vadd.f32 %v6248, %v6386
        %v6457 = vadd.f32 %v6249, %v6391
        %v6458 = vadd.f32 %v6250, %v6394
        %v6459 = vadd.f32 %v6251, %v6399
        %v6460 = vadd.f32 %v6252, %v6402
        %v6461 = vadd.f32 %v6253, %v6407
        %v6462 = vadd.f32 %v6254, %v6410
        %v6463 = vadd.f32 %v6255, %v6415
        %v6464 = vadd.f32 %v6256, %v6418
        %v6465 = vadd.f32 %v6257, %v6423
        %v6466 = vadd.f32 %v6258, %v6426
        %v6467 = vadd.f32 %v6259, %v6431
        %v6468 = vadd.f32 %v6260, %v6434
        %v6469 = vadd.f32 %v6261, %v6439
        %v6470 = vadd.f32 %v6262, %v6442
        %v6471 = vadd.f32 %v6263, %v6447
        %v6472 = vadd.f32 %v6264, %v6450
        %v6473 = vmax.f32 %v6453, 0.0
        %v6474 = vmax.f32 %v6454, 0.0
        %v6475 = vmax.f32 %v6455, 0.0
        %v6476 = vmax.f32 %v6456, 0.0
        %v6477 = vmax.f32 %v6457, 0.0
        %v6478 = vmax.f32 %v6458, 0.0
        %v6479 = vmax.f32 %v6459, 0.0
        %v6480 = vmax.f32 %v6460, 0.0
        %v6481 = vmax.f32 %v6461, 0.0
        %v6482 = vmax.f32 %v6462, 0.0
        %v6483 = vmax.f32 %v6463, 0.0
        %v6484 = vmax.f32 %v6464, 0.0
        %v6485 = vmax.f32 %v6465, 0.0
        %v6486 = vmax.f32 %v6466, 0.0
        %v6487 = vmax.f32 %v6467, 0.0
        %v6488 = vmax.f32 %v6468, 0.0
        %v6489 = vmax.f32 %v6469, 0.0
        %v6490 = vmax.f32 %v6470, 0.0
        %v6491 = vmax.f32 %v6471, 0.0
        %v6492 = vmax.f32 %v6472, 0.0
        %v6513 = vcombine.high %v6473, %v6473
        %v6514 = vcombine.high %v6474, %v6474
        %v6515 = vcombine.high %v6475, %v6475
        %v6516 = vcombine.high %v6476, %v6476
        %v6517 = vcombine.high %v6477, %v6477
        %v6518 = vcombine.high %v6478, %v6478
        %v6519 = vcombine.high %v6479, %v6479
        %v6520 = vcombine.high %v6480, %v6480
        %v6521 = vcombine.high %v6481, %v6481
        %v6522 = vcombine.high %v6482, %v6482
        %v6523 = vcombine.high %v6483, %v6483
        %v6524 = vcombine.high %v6484, %v6484
        %v6525 = vcombine.high %v6485, %v6485
        %v6526 = vcombine.high %v6486, %v6486
        %v6527 = vcombine.high %v6487, %v6487
        %v6528 = vcombine.high %v6488, %v6488
        %v6529 = vcombine.high %v6489, %v6489
        %v6530 = vcombine.high %v6490, %v6490
        %v6531 = vcombine.high %v6491, %v6491
        %v6532 = vcombine.high %v6492, %v6492
        %v6537 = vcombine.low %v6473, %v6513
        %v6538 = vcombine.low %v6474, %v6514
        %v6539 = vcombine.low %v6515, %v6476
        %v6540 = vcombine.low %v6516, %v6477
        %v6541 = vcombine.low %v6478, %v6518
        %v6542 = vcombine.low %v6479, %v6519
        %v6543 = vcombine.low %v6520, %v6481
        %v6544 = vcombine.low %v6521, %v6482
        %v6545 = vcombine.low %v6483, %v6523
        %v6546 = vcombine.low %v6484, %v6524
        %v6547 = vcombine.low %v6525, %v6486
        %v6548 = vcombine.low %v6526, %v6487
        %v6549 = vcombine.low %v6488, %v6528
        %v6550 = vcombine.low %v6489, %v6529
        %v6551 = vcombine.low %v6530, %v6491
        %v6552 = vcombine.low %v6531, %v6492
        %6569 = vst [vmem:[%s301 - $0x2] sm:$0xfc] %v6537
        %6570 = vst [vmem:[%s301 + $0x6] sm:$0xff] %v6538
        %6571 = vst [vmem:[%s301 + $0xe] sm:$0x3] %v6475
        %6572 = vst [vmem:[%s301 + $0xe] sm:$0xfc] %v6539
        %6573 = vst [vmem:[%s301 + $0x16] sm:$0xff] %v6540
        %6574 = vst [vmem:[%s301 + $0x1e] sm:$0x3] %v6517
        %6575 = vst [vmem:[%s301 + $0x1e] sm:$0xfc] %v6541
        %6576 = vst [vmem:[%s301 + $0x26] sm:$0xff] %v6542
        %6577 = vst [vmem:[%s301 + $0x2e] sm:$0x3] %v6480
        %6578 = vst [vmem:[%s301 + $0x2e] sm:$0xfc] %v6543
        %6579 = vst [vmem:[%s301 + $0x36] sm:$0xff] %v6544
        %6580 = vst [vmem:[%s301 + $0x3e] sm:$0x3] %v6522
        %6581 = vst [vmem:[%s301 + $0x3e] sm:$0xfc] %v6545
        %6582 = vst [vmem:[%s301 + $0x46] sm:$0xff] %v6546
        %6583 = vst [vmem:[%s301 + $0x4e] sm:$0x3] %v6485
        %6584 = vst [vmem:[%s301 + $0x4e] sm:$0xfc] %v6547
        %6585 = vst [vmem:[%s301 + $0x56] sm:$0xff] %v6548
        %6586 = vst [vmem:[%s301 + $0x5e] sm:$0x3] %v6527
        %6587 = vst [vmem:[%s301 + $0x5e] sm:$0xfc] %v6549
        %6588 = vst [vmem:[%s301 + $0x66] sm:$0xff] %v6550
        %6589 = vst [vmem:[%s301 + $0x6e] sm:$0x3] %v6490
        %6590 = vst [vmem:[%s301 + $0x6e] sm:$0xfc] %v6551
        %6591 = vst [vmem:[%s301 + $0x76] sm:$0xff] %v6552
        %6592 = vst [vmem:[%s301 + $0x7e] sm:$0x3] %v6532
        %s6593 = sand.u32 %s193, 1
        %s6594 = scalar_lea.sflag [#allocation7], %s6593
        %s6595 = sand.u32 %s193, 1
        %s6596 = smul.addr %s6595, 128
        %s6597 = scalar_lea.vmem [#allocation10], %s6596
        // Predicated region
        $region81: #{tpu_custom_call.1} parent=47 // pred_check
          %p6598 = pneg %p203
        $region82: #{tpu_custom_call.1} parent=47 // pred_check_branch
          %6600 = sbr.rel (%p6598) target = $region84
        $region83: #{tpu_custom_call.1} parent=47 // pred_region
          %s6601 = smul.u32 8, %s29
          %s6603 = ssub.s32 2048, 2048
          %6604 = vsyncadd %s6594, %s6603
          %s6605 = smul.addr %s6601, 2
          %s6606 = smul.addr %s28, 32
          %s6607 = sadd.s32 %s6605, %s6606
          %s6608 = smul.addr %s6607, 128
          %s6609 = scalar_lea.hbm %s8, %s6608
          %s6610 = sshll.u32 %s6597, 4
          %s6611 = int_to_ptr.vmem [resolvable:$true] %s6610
          %6616 = dma.vmem_to_hbm [thread:$0]  %s6611, 2048, %s6609, %s6594, 128, 128, 8
        $region84: #{tpu_custom_call.1} parent=47 // pred_fallthru
          _
      $region48: #{tpu_custom_call.1} parent=5 // pred_fallthru
        _
      %p6617 = scmp.le.s32.totalorder 2, %s19
      // Predicated region
      $region85: #{tpu_custom_call.1} parent=5 // pred_check
        %p6618 = pneg %p6617
      $region86: #{tpu_custom_call.1} parent=5 // pred_check_branch
        %6620 = sbr.rel (%p6618) target = $region88
      $region87: #{tpu_custom_call.1} parent=5 // pred_region
        %s6621 = ssub.s32 %s19, 2
        // Predicated region
        $region89: #{tpu_custom_call.1} parent=87 // pred_check
          %p6622 = pneg %p209
        $region90: #{tpu_custom_call.1} parent=87 // pred_check_branch
          %6624 = sbr.rel (%p6622) target = $region92
        $region91: #{tpu_custom_call.1} parent=87 // pred_region
          %s6625 = sand.u32 %s194, 1
          %s6626 = scalar_lea.sflag [#allocation7], %s6625
          %s6627 = sand.u32 %s194, 1
          %s6628 = smul.addr %s6627, 128
          %s6629 = scalar_lea.vmem [#allocation10], %s6628
          %6630 = dma.done %s6626, 2048
        $region92: #{tpu_custom_call.1} parent=87 // pred_fallthru
          _
      $region88: #{tpu_custom_call.1} parent=5 // pred_fallthru
        _
    $region6: #{tpu_custom_call.1} parent=1 // loop_footer
      %s23 = sadd.s32 1, %s19
    $region7: #{tpu_custom_call.1} parent=1 // loop_footer_branch
      %18 = sbr.rel target = $region3
    $region8: #{tpu_custom_call.1} parent=1 // loop_exit
      _
    %6631 = vsyncpa [#allocation6], 1
    %s6632 = scalar_lea.sflag [#allocation6], 1
    %6633 = vsyncpa %s6632, 1
    %6634 = vsyncpa [#allocation9], 1
    %6635 = vsyncpa [#allocation7], 1
    %s6636 = scalar_lea.sflag [#allocation7], 1
    %6637 = vsyncpa %s6636, 1
  %6638 = vsyncmov [#allocation4]
  %s6639 = vpop.sfrf %6638
  %p6640 = scmp.eq.s32.totalorder %s6639, 0
  %p6641 = pneg %p6640
  %6643 = shalt.err (%p6641)
  %s6644 = scalar_lea.sflag [#allocation4], 1
  %6645 = vsyncmov %s6644
  %s6646 = vpop.sfrf %6645
  %p6647 = scmp.eq.s32.totalorder %s6646, 0
  %p6648 = pneg %p6647
  %6650 = shalt.err (%p6648)

</llo_original>
